<compile_context>
chip_gen: v7x
topology: tpu7x:2x2x1
jax: 0.10.0
libtpu: 0.0.40
codegen_flags: <defaults>
</compile_context>

<pallas_src>
import functools

import jax
import jax.numpy as jnp
from jax import lax
from jax.experimental import pallas as pl
from jax.experimental.pallas import tpu as pltpu


def _dense_rows(v, rows, cols, ch):
    """(rows*cols, ch) -> (rows, cols*ch) lane-dense value.

    Built from a leading-dim split + per-column slices + one lane concat, all of
    which are known to lower in Mosaic (a reshape merging the minor two dims when
    ch < 128 is not guaranteed to)."""
    v3 = v.reshape(rows, cols, ch)
    return jnp.concatenate([v3[:, x, :] for x in range(cols)], axis=-1)


def basic_block_kernel(xp_ref, w1_ref, s1_ref, b1_ref, w2_ref, s2_ref, b2_ref,
                       o_ref, msc_ref, *, TH, W, Cin, Co):
    """One (batch element, row tile) per grid step.

    xp_ref : (H+4, W+2, Cin) bf16  zero-padded input (rows pad 2, cols pad 1), NHWC
    w1_ref : (3, 3*Cin, Co)  bf16  conv1 weight, [kh][kw*Cin + ci, co]
    s1/b1  : (1, Co)         f32   folded BN1 scale / bias
    w2_ref : (3, 3*Co, Co)   bf16  conv2 weight
    s2/b2  : (1, Co)         f32   folded BN2 scale / bias
    o_ref  : (TH, W*Co)            lane-dense output row tile
    msc_ref: (TH+2, W+2, Co) bf16  VMEM scratch: conv2 input incl. zero halo
    """
    r = pl.program_id(1)
    r0 = pl.multiple_of(r * TH, TH)

    # Input window: padded rows r0 .. r0+TH+3 (conv1 halo of conv2's halo).
    xw = xp_ref[pl.ds(r0, TH + 4), :, :]                        # (TH+4, W+2, Cin)

    # ---- conv1: kw taps folded into K = 3*Cin, kh as 3 accumulating MXU matmuls.
    xw_kw = jnp.concatenate([xw[:, dw:dw + W, :] for dw in range(3)], axis=-1)
    xflat = xw_kw.reshape((TH + 4) * W, 3 * Cin)                # row-major (row, x)
    m1 = (TH + 2) * W
    acc1 = jnp.dot(xflat[0:m1, :], w1_ref[0],
                   preferred_element_type=jnp.float32)
    for dh in (1, 2):
        acc1 = acc1 + jnp.dot(xflat[dh * W:dh * W + m1, :], w1_ref[dh],
                              preferred_element_type=jnp.float32)

    # ---- BN1 (folded, eval) + ReLU -> conv2 input staged in VMEM scratch.
    mid = jnp.maximum(acc1 * s1_ref[...] + b1_ref[...], 0.0).astype(jnp.bfloat16)
    msc_ref[:, 1:W + 1, :] = mid.reshape(TH + 2, W, Co)

    # conv2 zero padding: border columns every step (two tiny stores); the
    # out-of-image halo rows only exist on the two boundary row tiles.
    zcol = jnp.zeros((TH + 2, 1, Co), jnp.bfloat16)
    msc_ref[:, 0:1, :] = zcol
    msc_ref[:, W + 1:W + 2, :] = zcol

    @pl.when(r == 0)
    def _():
        msc_ref[0:1, :, :] = jnp.zeros((1, W + 2, Co), jnp.bfloat16)

    @pl.when(r == pl.num_programs(1) - 1)
    def _():
        msc_ref[TH + 1:TH + 2, :, :] = jnp.zeros((1, W + 2, Co), jnp.bfloat16)

    # ---- conv2: same structure, K = 3*Co.
    mid_kw = jnp.concatenate([msc_ref[:, dw:dw + W, :] for dw in range(3)],
                             axis=-1)                           # (TH+2, W, 3*Co)
    mflat = mid_kw.reshape((TH + 2) * W, 3 * Co)
    m2 = TH * W
    acc2 = jnp.dot(mflat[0:m2, :], w2_ref[0],
                   preferred_element_type=jnp.float32)
    for dh in (1, 2):
        acc2 = acc2 + jnp.dot(mflat[dh * W:dh * W + m2, :], w2_ref[dh],
                              preferred_element_type=jnp.float32)

    # ---- BN2 + residual (identity from the already-loaded tile) + ReLU.
    identity = xw[2:2 + TH, 1:W + 1, :].astype(jnp.float32).reshape(m2, Co)
    out = jnp.maximum(acc2 * s2_ref[...] + b2_ref[...] + identity, 0.0)

    # Lane-dense store: (TH, W*Co) instead of a Co(<128)-minor masked store.
    o_ref[...] = _dense_rows(out, TH, W, Co).astype(o_ref.dtype)


def _pick_row_tile(H, N, pref):
    """Largest divisor of H that is <= pref; keep >=2 grid steps when feasible."""
    divs = [d for d in range(1, H + 1) if H % d == 0]
    cands = [d for d in divs if d <= pref]
    th = max(cands) if cands else H
    if N * (H // th) < 2:            # keep both v7x TensorCores busy if we can
        multi = [d for d in cands if H // d >= 2 and d >= 4]
        if multi:
            th = max(multi)
    return th


def _padded_bytes(shape, itemsize, sublane=8):
    """VMEM footprint of a tile after (sublane, lane) padding."""
    s = list(shape)
    s[-1] = -(-s[-1] // 128) * 128
    if len(s) >= 2:
        s[-2] = -(-s[-2] // sublane) * sublane
    n = itemsize
    for d in s:
        n *= d
    return n


def basic_block_pallas(x_nchw, w1_oihw, s1, b1, w2_oihw, s2, b2, *, row_tile=28):
    N, C, H, W = x_nchw.shape
    Co = w1_oihw.shape[0]
    assert C == Co, "stride=1 / no-downsample identity path requires inplanes == planes"

    TH = _pick_row_tile(H, N, row_tile)

    # ---- layout plumbing (plain JAX, fused by XLA) ----
    # NCHW -> NHWC, rows padded by 2 / cols by 1 (pad-2 lets boundary tiles read a
    # full halo; out-of-image halo rows are zeroed in-kernel), cast to bf16.
    x = jnp.transpose(x_nchw, (0, 2, 3, 1))
    xp = jnp.pad(x, ((0, 0), (2, 2), (1, 1), (0, 0))).astype(jnp.bfloat16)

    # OIHW -> (kh, kw, ci, co) -> (3, 3*ci, co): one weight slab per kh tap, bf16.
    w1 = jnp.transpose(w1_oihw, (2, 3, 1, 0)).reshape(3, 3 * C, Co).astype(jnp.bfloat16)
    w2 = jnp.transpose(w2_oihw, (2, 3, 1, 0)).reshape(3, 3 * Co, Co).astype(jnp.bfloat16)
    s1r = s1.reshape(1, Co).astype(jnp.float32)
    b1r = b1.reshape(1, Co).astype(jnp.float32)
    s2r = s2.reshape(1, Co).astype(jnp.float32)
    b2r = b2.reshape(1, Co).astype(jnp.float32)

    # Explicit VMEM budget (lane-padded double-buffered blocks + scratch +
    # headroom for in-kernel temporaries); never below any generation's default.
    est = 2 * (_padded_bytes((H + 4, W + 2, C), 2, 16)
               + _padded_bytes((3, 3 * C, Co), 2, 16)
               + _padded_bytes((3, 3 * Co, Co), 2, 16)
               + 4 * _padded_bytes((1, Co), 4)
               + _padded_bytes((TH, W * Co), 4))
    est += _padded_bytes((TH + 2, W + 2, Co), 2, 16)
    est += 2 * _padded_bytes(((TH + 4) * W, 3 * C), 2, 16)
    est += 2 * _padded_bytes(((TH + 2) * W, 3 * Co), 2, 16)
    est += 3 * _padded_bytes(((TH + 2) * W, Co), 4)
    vmem_limit = int(min(48 * 1024 * 1024, max(32 * 1024 * 1024, 2 * est)))

    kernel = functools.partial(basic_block_kernel, TH=TH, W=W, Cin=C, Co=Co)

    out_flat = pl.pallas_call(
        kernel,
        out_shape=jax.ShapeDtypeStruct((N, H, W * Co), x_nchw.dtype),
        grid_spec=pltpu.PrefetchScalarGridSpec(
            num_scalar_prefetch=0,
            grid=(N, H // TH),
            in_specs=[
                # full padded image per batch element; revisited across the row
                # axis, so it is DMA'd only once per batch element.
                pl.BlockSpec((None, H + 4, W + 2, C), lambda n, r: (n, 0, 0, 0)),
                pl.BlockSpec((3, 3 * C, Co), lambda n, r: (0, 0, 0)),
                pl.BlockSpec((1, Co), lambda n, r: (0, 0)),
                pl.BlockSpec((1, Co), lambda n, r: (0, 0)),
                pl.BlockSpec((3, 3 * Co, Co), lambda n, r: (0, 0, 0)),
                pl.BlockSpec((1, Co), lambda n, r: (0, 0)),
                pl.BlockSpec((1, Co), lambda n, r: (0, 0)),
            ],
            out_specs=pl.BlockSpec((None, TH, W * Co), lambda n, r: (n, r, 0)),
            scratch_shapes=[pltpu.VMEM((TH + 2, W + 2, Co), jnp.bfloat16)],
        ),
        compiler_params=pltpu.CompilerParams(
            dimension_semantics=("parallel", "parallel"),
            vmem_limit_bytes=vmem_limit),
    )(xp, w1, s1r, b1r, w2, s2r, b2r)

    out = out_flat.reshape(N, H, W, Co)
    return jnp.transpose(out, (0, 3, 1, 2))  # back to NCHW


def fold_bn(gamma, beta, running_mean, running_var, eps=1e-5):
    scale = gamma / jnp.sqrt(running_var + eps)
    return scale, beta - running_mean * scale


def reference_forward(x_nchw, w1, s1, b1, w2, s2, b2):
    """Pure-JAX reference mirroring the kernel's bf16-input / f32-accum numerics."""
    dn = ('NCHW', 'OIHW', 'NCHW')
    xb = x_nchw.astype(jnp.bfloat16)
    out = lax.conv_general_dilated(xb, w1.astype(jnp.bfloat16), (1, 1),
                                   ((1, 1), (1, 1)), dimension_numbers=dn,
                                   preferred_element_type=jnp.float32)
    out = out * s1[None, :, None, None] + b1[None, :, None, None]
    out = jnp.maximum(out, 0.0).astype(jnp.bfloat16)
    out = lax.conv_general_dilated(out, w2.astype(jnp.bfloat16), (1, 1),
                                   ((1, 1), (1, 1)), dimension_numbers=dn,
                                   preferred_element_type=jnp.float32)
    out = out * s2[None, :, None, None] + b2[None, :, None, None]
    return jnp.maximum(out + xb.astype(jnp.float32), 0.0)


if __name__ == "__main__":
    N, C, H, W = 2, 4, 16, 16   # inplanes = planes = 4, stride = 1
    planes = 4

    key = jax.random.PRNGKey(0)
    keys = jax.random.split(key, 11)

    x = jax.random.normal(keys[0], (N, C, H, W), jnp.float32)

    # conv weights (PyTorch OIHW shapes from conv3x3)
    w1 = jax.random.normal(keys[1], (planes, C, 3, 3), jnp.float32) * 0.2
    w2 = jax.random.normal(keys[2], (planes, planes, 3, 3), jnp.float32) * 0.2

    # BatchNorm parameters (eval-mode running stats)
    gamma1 = 1.0 + 0.1 * jax.random.normal(keys[3], (planes,), jnp.float32)
    beta1 = 0.1 * jax.random.normal(keys[4], (planes,), jnp.float32)
    mean1 = 0.1 * jax.random.normal(keys[5], (planes,), jnp.float32)
    var1 = 1.0 + 0.1 * jax.random.uniform(keys[6], (planes,), jnp.float32)
    gamma2 = 1.0 + 0.1 * jax.random.normal(keys[7], (planes,), jnp.float32)
    beta2 = 0.1 * jax.random.normal(keys[8], (planes,), jnp.float32)
    mean2 = 0.1 * jax.random.normal(keys[9], (planes,), jnp.float32)
    var2 = 1.0 + 0.1 * jax.random.uniform(keys[10], (planes,), jnp.float32)

    s1, b1 = fold_bn(gamma1, beta1, mean1, var1)
    s2, b2 = fold_bn(gamma2, beta2, mean2, var2)

    out = basic_block_pallas(x, w1, s1, b1, w2, s2, b2)
    out = jax.block_until_ready(out)

    ref = reference_forward(x, w1, s1, b1, w2, s2, b2)
    assert out.shape == (N, planes, H, W)
    max_err = jnp.max(jnp.abs(out - ref))
    assert jnp.allclose(out, ref, atol=2e-2, rtol=2e-2), f"max abs err = {max_err}"

    print("KERNEL_OK")
</pallas_src>

<mosaic_0001>
module attributes {stable_mosaic.version = 11 : i64} {
  func.func @basic_block_kernel(%arg0: i32, %arg1: i32, %arg2: memref<1x20x18x4xbf16, #tpu.memory_space<vmem>>, %arg3: memref<3x12x4xbf16, #tpu.memory_space<vmem>>, %arg4: memref<1x4xf32, #tpu.memory_space<vmem>>, %arg5: memref<1x4xf32, #tpu.memory_space<vmem>>, %arg6: memref<3x12x4xbf16, #tpu.memory_space<vmem>>, %arg7: memref<1x4xf32, #tpu.memory_space<vmem>>, %arg8: memref<1x4xf32, #tpu.memory_space<vmem>>, %arg9: memref<1x16x64xf32, #tpu.memory_space<vmem>>, %arg10: memref<18x18x4xbf16, #tpu.memory_space<vmem>>) attributes {dimension_semantics = [#tpu.dimension_semantics<parallel>, #tpu.dimension_semantics<parallel>], iteration_bounds = array<i64: 2, 1>, scalar_prefetch = 0 : i64, scratch_operands = 1 : i64, tpu.core_type = #tpu.core_type<tc>, window_params = [{transform_indices = @transform_0, window_bounds = array<i64: 1, 20, 18, 4>}, {pipeline_mode = #tpu.pipeline_mode<synchronous>, transform_indices = @transform_1, window_bounds = array<i64: 3, 12, 4>}, {pipeline_mode = #tpu.pipeline_mode<synchronous>, transform_indices = @transform_2, window_bounds = array<i64: 1, 4>}, {pipeline_mode = #tpu.pipeline_mode<synchronous>, transform_indices = @transform_3, window_bounds = array<i64: 1, 4>}, {pipeline_mode = #tpu.pipeline_mode<synchronous>, transform_indices = @transform_4, window_bounds = array<i64: 3, 12, 4>}, {pipeline_mode = #tpu.pipeline_mode<synchronous>, transform_indices = @transform_5, window_bounds = array<i64: 1, 4>}, {pipeline_mode = #tpu.pipeline_mode<synchronous>, transform_indices = @transform_6, window_bounds = array<i64: 1, 4>}, {transform_indices = @transform_7, window_bounds = array<i64: 1, 16, 64>}]} {
    %c16_i32 = arith.constant 16 : i32
    %0 = arith.muli %arg1, %c16_i32 : i32
    %1 = tpu.assume_multiple %0, 16 : i32
    %c0 = arith.constant 0 : index
    %2 = arith.index_cast %1 : i32 to index
    %c0_0 = arith.constant 0 : index
    %c0_1 = arith.constant 0 : index
    %3 = vector.load %arg2[%c0, %2, %c0_0, %c0_1] : memref<1x20x18x4xbf16, #tpu.memory_space<vmem>>, vector<1x20x18x4xbf16>
    %4 = vector.shape_cast %3 : vector<1x20x18x4xbf16> to vector<20x18x4xbf16>
    %5 = vector.extract_strided_slice %4 {offsets = [0, 0, 0], sizes = [20, 16, 4], strides = [1, 1, 1]} : vector<20x18x4xbf16> to vector<20x16x4xbf16>
    %6 = vector.extract_strided_slice %4 {offsets = [0, 1, 0], sizes = [20, 16, 4], strides = [1, 1, 1]} : vector<20x18x4xbf16> to vector<20x16x4xbf16>
    %7 = vector.extract_strided_slice %4 {offsets = [0, 2, 0], sizes = [20, 16, 4], strides = [1, 1, 1]} : vector<20x18x4xbf16> to vector<20x16x4xbf16>
    %8 = tpu.concatenate %5, %6, %7 in 2 : vector<20x16x4xbf16>, vector<20x16x4xbf16>, vector<20x16x4xbf16> -> vector<20x16x12xbf16>
    %9 = vector.shape_cast %8 : vector<20x16x12xbf16> to vector<320x12xbf16>
    %10 = vector.extract_strided_slice %9 {offsets = [0, 0], sizes = [288, 12], strides = [1, 1]} : vector<320x12xbf16> to vector<288x12xbf16>
    %c0_2 = arith.constant 0 : index
    %c0_3 = arith.constant 0 : index
    %c0_4 = arith.constant 0 : index
    %11 = vector.load %arg3[%c0_2, %c0_3, %c0_4] : memref<3x12x4xbf16, #tpu.memory_space<vmem>>, vector<1x12x4xbf16>
    %12 = vector.shape_cast %11 : vector<1x12x4xbf16> to vector<12x4xbf16>
    %cst = arith.constant dense<0.000000e+00> : vector<288x4xf32>
    %13 = tpu.matmul %10, %12, %cst {dimension_numbers = #tpu.dot_dimension_numbers<[1], [0], [0], [1], [0, 0, 1, 1], [], []>} : vector<288x12xbf16>, vector<12x4xbf16>, vector<288x4xf32> -> vector<288x4xf32>
    %14 = vector.extract_strided_slice %9 {offsets = [16, 0], sizes = [288, 12], strides = [1, 1]} : vector<320x12xbf16> to vector<288x12xbf16>
    %c1 = arith.constant 1 : index
    %c0_5 = arith.constant 0 : index
    %c0_6 = arith.constant 0 : index
    %15 = vector.load %arg3[%c1, %c0_5, %c0_6] : memref<3x12x4xbf16, #tpu.memory_space<vmem>>, vector<1x12x4xbf16>
    %16 = vector.shape_cast %15 : vector<1x12x4xbf16> to vector<12x4xbf16>
    %cst_7 = arith.constant dense<0.000000e+00> : vector<288x4xf32>
    %17 = tpu.matmul %14, %16, %cst_7 {dimension_numbers = #tpu.dot_dimension_numbers<[1], [0], [0], [1], [0, 0, 1, 1], [], []>} : vector<288x12xbf16>, vector<12x4xbf16>, vector<288x4xf32> -> vector<288x4xf32>
    %18 = arith.addf %13, %17 : vector<288x4xf32>
    %19 = vector.extract_strided_slice %9 {offsets = [32, 0], sizes = [288, 12], strides = [1, 1]} : vector<320x12xbf16> to vector<288x12xbf16>
    %c2 = arith.constant 2 : index
    %c0_8 = arith.constant 0 : index
    %c0_9 = arith.constant 0 : index
    %20 = vector.load %arg3[%c2, %c0_8, %c0_9] : memref<3x12x4xbf16, #tpu.memory_space<vmem>>, vector<1x12x4xbf16>
    %21 = vector.shape_cast %20 : vector<1x12x4xbf16> to vector<12x4xbf16>
    %cst_10 = arith.constant dense<0.000000e+00> : vector<288x4xf32>
    %22 = tpu.matmul %19, %21, %cst_10 {dimension_numbers = #tpu.dot_dimension_numbers<[1], [0], [0], [1], [0, 0, 1, 1], [], []>} : vector<288x12xbf16>, vector<12x4xbf16>, vector<288x4xf32> -> vector<288x4xf32>
    %23 = arith.addf %18, %22 : vector<288x4xf32>
    %c0_11 = arith.constant 0 : index
    %c0_12 = arith.constant 0 : index
    %24 = vector.load %arg4[%c0_11, %c0_12] : memref<1x4xf32, #tpu.memory_space<vmem>>, vector<1x4xf32>
    %25 = vector.broadcast %24 : vector<1x4xf32> to vector<288x4xf32>
    %26 = arith.mulf %23, %25 : vector<288x4xf32>
    %c0_13 = arith.constant 0 : index
    %c0_14 = arith.constant 0 : index
    %27 = vector.load %arg5[%c0_13, %c0_14] : memref<1x4xf32, #tpu.memory_space<vmem>>, vector<1x4xf32>
    %28 = vector.broadcast %27 : vector<1x4xf32> to vector<288x4xf32>
    %29 = arith.addf %26, %28 : vector<288x4xf32>
    %cst_15 = arith.constant 0.000000e+00 : f32
    %30 = vector.broadcast %cst_15 : f32 to vector<288x4xf32>
    %31 = arith.maximumf %29, %30 : vector<288x4xf32>
    %32 = arith.truncf %31 : vector<288x4xf32> to vector<288x4xbf16>
    %33 = vector.shape_cast %32 : vector<288x4xbf16> to vector<18x16x4xbf16>
    %c0_16 = arith.constant 0 : index
    %c1_17 = arith.constant 1 : index
    %c0_18 = arith.constant 0 : index
    %34 = vector.load %arg10[%c0_16, %c1_17, %c0_18] : memref<18x18x4xbf16, #tpu.memory_space<vmem>>, vector<18x16x4xbf16>
    tpu.vector_store %arg10[%c0_16, %c1_17, %c0_18], %33 {strides = array<i32>} : memref<18x18x4xbf16, #tpu.memory_space<vmem>>, vector<18x16x4xbf16>,
    %cst_19 = arith.constant 0.000000e+00 : bf16
    %35 = vector.broadcast %cst_19 : bf16 to vector<18x1x4xbf16>
    %c0_20 = arith.constant 0 : index
    %c0_21 = arith.constant 0 : index
    %c0_22 = arith.constant 0 : index
    %36 = vector.load %arg10[%c0_20, %c0_21, %c0_22] : memref<18x18x4xbf16, #tpu.memory_space<vmem>>, vector<18x1x4xbf16>
    tpu.vector_store %arg10[%c0_20, %c0_21, %c0_22], %35 {strides = array<i32>} : memref<18x18x4xbf16, #tpu.memory_space<vmem>>, vector<18x1x4xbf16>,
    %c0_23 = arith.constant 0 : index
    %c17 = arith.constant 17 : index
    %c0_24 = arith.constant 0 : index
    %37 = vector.load %arg10[%c0_23, %c17, %c0_24] : memref<18x18x4xbf16, #tpu.memory_space<vmem>>, vector<18x1x4xbf16>
    tpu.vector_store %arg10[%c0_23, %c17, %c0_24], %35 {strides = array<i32>} : memref<18x18x4xbf16, #tpu.memory_space<vmem>>, vector<18x1x4xbf16>,
    %c0_i32 = arith.constant 0 : i32
    %38 = arith.cmpi eq, %arg1, %c0_i32 : i32
    %39 = arith.extui %38 : i1 to i32
    %c0_i32_25 = arith.constant 0 : i32
    %40 = arith.cmpi ne, %39, %c0_i32_25 : i32
    scf.if %40 {
      %cst_57 = arith.constant 0.000000e+00 : bf16
      %112 = vector.broadcast %cst_57 : bf16 to vector<1x18x4xbf16>
      %c0_58 = arith.constant 0 : index
      %c0_59 = arith.constant 0 : index
      %c0_60 = arith.constant 0 : index
      %113 = vector.load %arg10[%c0_58, %c0_59, %c0_60] : memref<18x18x4xbf16, #tpu.memory_space<vmem>>, vector<1x18x4xbf16>
      tpu.vector_store %arg10[%c0_58, %c0_59, %c0_60], %112 {strides = array<i32>} : memref<18x18x4xbf16, #tpu.memory_space<vmem>>, vector<1x18x4xbf16>,
    } else {
    }
    %c0_i32_26 = arith.constant 0 : i32
    %41 = arith.cmpi eq, %arg1, %c0_i32_26 : i32
    %42 = arith.extui %41 : i1 to i32
    %c0_i32_27 = arith.constant 0 : i32
    %43 = arith.cmpi ne, %42, %c0_i32_27 : i32
    scf.if %43 {
      %cst_57 = arith.constant 0.000000e+00 : bf16
      %112 = vector.broadcast %cst_57 : bf16 to vector<1x18x4xbf16>
      %c17_58 = arith.constant 17 : index
      %c0_59 = arith.constant 0 : index
      %c0_60 = arith.constant 0 : index
      %113 = vector.load %arg10[%c17_58, %c0_59, %c0_60] : memref<18x18x4xbf16, #tpu.memory_space<vmem>>, vector<1x18x4xbf16>
      tpu.vector_store %arg10[%c17_58, %c0_59, %c0_60], %112 {strides = array<i32>} : memref<18x18x4xbf16, #tpu.memory_space<vmem>>, vector<1x18x4xbf16>,
    } else {
    }
    %c0_28 = arith.constant 0 : index
    %c0_29 = arith.constant 0 : index
    %c0_30 = arith.constant 0 : index
    %44 = vector.load %arg10[%c0_28, %c0_29, %c0_30] : memref<18x18x4xbf16, #tpu.memory_space<vmem>>, vector<18x16x4xbf16>
    %c0_31 = arith.constant 0 : index
    %c1_32 = arith.constant 1 : index
    %c0_33 = arith.constant 0 : index
    %45 = vector.load %arg10[%c0_31, %c1_32, %c0_33] : memref<18x18x4xbf16, #tpu.memory_space<vmem>>, vector<18x16x4xbf16>
    %c0_34 = arith.constant 0 : index
    %c2_35 = arith.constant 2 : index
    %c0_36 = arith.constant 0 : index
    %46 = vector.load %arg10[%c0_34, %c2_35, %c0_36] : memref<18x18x4xbf16, #tpu.memory_space<vmem>>, vector<18x16x4xbf16>
    %47 = tpu.concatenate %44, %45, %46 in 2 : vector<18x16x4xbf16>, vector<18x16x4xbf16>, vector<18x16x4xbf16> -> vector<18x16x12xbf16>
    %48 = vector.shape_cast %47 : vector<18x16x12xbf16> to vector<288x12xbf16>
    %49 = vector.extract_strided_slice %48 {offsets = [0, 0], sizes = [256, 12], strides = [1, 1]} : vector<288x12xbf16> to vector<256x12xbf16>
    %c0_37 = arith.constant 0 : index
    %c0_38 = arith.constant 0 : index
    %c0_39 = arith.constant 0 : index
    %50 = vector.load %arg6[%c0_37, %c0_38, %c0_39] : memref<3x12x4xbf16, #tpu.memory_space<vmem>>, vector<1x12x4xbf16>
    %51 = vector.shape_cast %50 : vector<1x12x4xbf16> to vector<12x4xbf16>
    %cst_40 = arith.constant dense<0.000000e+00> : vector<256x4xf32>
    %52 = tpu.matmul %49, %51, %cst_40 {dimension_numbers = #tpu.dot_dimension_numbers<[1], [0], [0], [1], [0, 0, 1, 1], [], []>} : vector<256x12xbf16>, vector<12x4xbf16>, vector<256x4xf32> -> vector<256x4xf32>
    %53 = vector.extract_strided_slice %48 {offsets = [16, 0], sizes = [256, 12], strides = [1, 1]} : vector<288x12xbf16> to vector<256x12xbf16>
    %c1_41 = arith.constant 1 : index
    %c0_42 = arith.constant 0 : index
    %c0_43 = arith.constant 0 : index
    %54 = vector.load %arg6[%c1_41, %c0_42, %c0_43] : memref<3x12x4xbf16, #tpu.memory_space<vmem>>, vector<1x12x4xbf16>
    %55 = vector.shape_cast %54 : vector<1x12x4xbf16> to vector<12x4xbf16>
    %cst_44 = arith.constant dense<0.000000e+00> : vector<256x4xf32>
    %56 = tpu.matmul %53, %55, %cst_44 {dimension_numbers = #tpu.dot_dimension_numbers<[1], [0], [0], [1], [0, 0, 1, 1], [], []>} : vector<256x12xbf16>, vector<12x4xbf16>, vector<256x4xf32> -> vector<256x4xf32>
    %57 = arith.addf %52, %56 : vector<256x4xf32>
    %58 = vector.extract_strided_slice %48 {offsets = [32, 0], sizes = [256, 12], strides = [1, 1]} : vector<288x12xbf16> to vector<256x12xbf16>
    %c2_45 = arith.constant 2 : index
    %c0_46 = arith.constant 0 : index
    %c0_47 = arith.constant 0 : index
    %59 = vector.load %arg6[%c2_45, %c0_46, %c0_47] : memref<3x12x4xbf16, #tpu.memory_space<vmem>>, vector<1x12x4xbf16>
    %60 = vector.shape_cast %59 : vector<1x12x4xbf16> to vector<12x4xbf16>
    %cst_48 = arith.constant dense<0.000000e+00> : vector<256x4xf32>
    %61 = tpu.matmul %58, %60, %cst_48 {dimension_numbers = #tpu.dot_dimension_numbers<[1], [0], [0], [1], [0, 0, 1, 1], [], []>} : vector<256x12xbf16>, vector<12x4xbf16>, vector<256x4xf32> -> vector<256x4xf32>
    %62 = arith.addf %57, %61 : vector<256x4xf32>
    %63 = vector.extract_strided_slice %4 {offsets = [2, 1, 0], sizes = [16, 16, 4], strides = [1, 1, 1]} : vector<20x18x4xbf16> to vector<16x16x4xbf16>
    %64 = arith.extf %63 : vector<16x16x4xbf16> to vector<16x16x4xf32>
    %65 = vector.shape_cast %64 : vector<16x16x4xf32> to vector<256x4xf32>
    %c0_49 = arith.constant 0 : index
    %c0_50 = arith.constant 0 : index
    %66 = vector.load %arg7[%c0_49, %c0_50] : memref<1x4xf32, #tpu.memory_space<vmem>>, vector<1x4xf32>
    %67 = vector.broadcast %66 : vector<1x4xf32> to vector<256x4xf32>
    %68 = arith.mulf %62, %67 : vector<256x4xf32>
    %c0_51 = arith.constant 0 : index
    %c0_52 = arith.constant 0 : index
    %69 = vector.load %arg8[%c0_51, %c0_52] : memref<1x4xf32, #tpu.memory_space<vmem>>, vector<1x4xf32>
    %70 = vector.broadcast %69 : vector<1x4xf32> to vector<256x4xf32>
    %71 = arith.addf %68, %70 : vector<256x4xf32>
    %72 = arith.addf %71, %65 : vector<256x4xf32>
    %cst_53 = arith.constant 0.000000e+00 : f32
    %73 = vector.broadcast %cst_53 : f32 to vector<256x4xf32>
    %74 = arith.maximumf %72, %73 : vector<256x4xf32>
    %75 = vector.shape_cast %74 : vector<256x4xf32> to vector<16x16x4xf32>
    %76 = vector.extract_strided_slice %75 {offsets = [0, 0, 0], sizes = [16, 1, 4], strides = [1, 1, 1]} : vector<16x16x4xf32> to vector<16x1x4xf32>
    %77 = vector.shape_cast %76 : vector<16x1x4xf32> to vector<16x4xf32>
    %78 = vector.extract_strided_slice %75 {offsets = [0, 1, 0], sizes = [16, 1, 4], strides = [1, 1, 1]} : vector<16x16x4xf32> to vector<16x1x4xf32>
    %79 = vector.shape_cast %78 : vector<16x1x4xf32> to vector<16x4xf32>
    %80 = vector.extract_strided_slice %75 {offsets = [0, 2, 0], sizes = [16, 1, 4], strides = [1, 1, 1]} : vector<16x16x4xf32> to vector<16x1x4xf32>
    %81 = vector.shape_cast %80 : vector<16x1x4xf32> to vector<16x4xf32>
    %82 = vector.extract_strided_slice %75 {offsets = [0, 3, 0], sizes = [16, 1, 4], strides = [1, 1, 1]} : vector<16x16x4xf32> to vector<16x1x4xf32>
    %83 = vector.shape_cast %82 : vector<16x1x4xf32> to vector<16x4xf32>
    %84 = vector.extract_strided_slice %75 {offsets = [0, 4, 0], sizes = [16, 1, 4], strides = [1, 1, 1]} : vector<16x16x4xf32> to vector<16x1x4xf32>
    %85 = vector.shape_cast %84 : vector<16x1x4xf32> to vector<16x4xf32>
    %86 = vector.extract_strided_slice %75 {offsets = [0, 5, 0], sizes = [16, 1, 4], strides = [1, 1, 1]} : vector<16x16x4xf32> to vector<16x1x4xf32>
    %87 = vector.shape_cast %86 : vector<16x1x4xf32> to vector<16x4xf32>
    %88 = vector.extract_strided_slice %75 {offsets = [0, 6, 0], sizes = [16, 1, 4], strides = [1, 1, 1]} : vector<16x16x4xf32> to vector<16x1x4xf32>
    %89 = vector.shape_cast %88 : vector<16x1x4xf32> to vector<16x4xf32>
    %90 = vector.extract_strided_slice %75 {offsets = [0, 7, 0], sizes = [16, 1, 4], strides = [1, 1, 1]} : vector<16x16x4xf32> to vector<16x1x4xf32>
    %91 = vector.shape_cast %90 : vector<16x1x4xf32> to vector<16x4xf32>
    %92 = vector.extract_strided_slice %75 {offsets = [0, 8, 0], sizes = [16, 1, 4], strides = [1, 1, 1]} : vector<16x16x4xf32> to vector<16x1x4xf32>
    %93 = vector.shape_cast %92 : vector<16x1x4xf32> to vector<16x4xf32>
    %94 = vector.extract_strided_slice %75 {offsets = [0, 9, 0], sizes = [16, 1, 4], strides = [1, 1, 1]} : vector<16x16x4xf32> to vector<16x1x4xf32>
    %95 = vector.shape_cast %94 : vector<16x1x4xf32> to vector<16x4xf32>
    %96 = vector.extract_strided_slice %75 {offsets = [0, 10, 0], sizes = [16, 1, 4], strides = [1, 1, 1]} : vector<16x16x4xf32> to vector<16x1x4xf32>
    %97 = vector.shape_cast %96 : vector<16x1x4xf32> to vector<16x4xf32>
    %98 = vector.extract_strided_slice %75 {offsets = [0, 11, 0], sizes = [16, 1, 4], strides = [1, 1, 1]} : vector<16x16x4xf32> to vector<16x1x4xf32>
    %99 = vector.shape_cast %98 : vector<16x1x4xf32> to vector<16x4xf32>
    %100 = vector.extract_strided_slice %75 {offsets = [0, 12, 0], sizes = [16, 1, 4], strides = [1, 1, 1]} : vector<16x16x4xf32> to vector<16x1x4xf32>
    %101 = vector.shape_cast %100 : vector<16x1x4xf32> to vector<16x4xf32>
    %102 = vector.extract_strided_slice %75 {offsets = [0, 13, 0], sizes = [16, 1, 4], strides = [1, 1, 1]} : vector<16x16x4xf32> to vector<16x1x4xf32>
    %103 = vector.shape_cast %102 : vector<16x1x4xf32> to vector<16x4xf32>
    %104 = vector.extract_strided_slice %75 {offsets = [0, 14, 0], sizes = [16, 1, 4], strides = [1, 1, 1]} : vector<16x16x4xf32> to vector<16x1x4xf32>
    %105 = vector.shape_cast %104 : vector<16x1x4xf32> to vector<16x4xf32>
    %106 = vector.extract_strided_slice %75 {offsets = [0, 15, 0], sizes = [16, 1, 4], strides = [1, 1, 1]} : vector<16x16x4xf32> to vector<16x1x4xf32>
    %107 = vector.shape_cast %106 : vector<16x1x4xf32> to vector<16x4xf32>
    %108 = tpu.concatenate %77, %79, %81, %83, %85, %87, %89, %91, %93, %95, %97, %99, %101, %103, %105, %107 in 1 : vector<16x4xf32>, vector<16x4xf32>, vector<16x4xf32>, vector<16x4xf32>, vector<16x4xf32>, vector<16x4xf32>, vector<16x4xf32>, vector<16x4xf32>, vector<16x4xf32>, vector<16x4xf32>, vector<16x4xf32>, vector<16x4xf32>, vector<16x4xf32>, vector<16x4xf32>, vector<16x4xf32>, vector<16x4xf32> -> vector<16x64xf32>
    %c0_54 = arith.constant 0 : index
    %c0_55 = arith.constant 0 : index
    %c0_56 = arith.constant 0 : index
    %109 = vector.load %arg9[%c0_54, %c0_55, %c0_56] : memref<1x16x64xf32, #tpu.memory_space<vmem>>, vector<1x16x64xf32>
    %110 = vector.shape_cast %109 : vector<1x16x64xf32> to vector<16x64xf32>
    %111 = vector.shape_cast %108 : vector<16x64xf32> to vector<1x16x64xf32>
    tpu.vector_store %arg9[%c0_54, %c0_55, %c0_56], %111 {strides = array<i32>} : memref<1x16x64xf32, #tpu.memory_space<vmem>>, vector<1x16x64xf32>,
    return
  }
  func.func @transform_0(%arg0: i32, %arg1: i32) -> (i32, i32, i32, i32) {
    %c0_i32 = arith.constant 0 : i32
    %c0_i32_0 = arith.constant 0 : i32
    %c0_i32_1 = arith.constant 0 : i32
    %c0_i32_2 = arith.constant 0 : i32
    return %arg0, %c0_i32, %c0_i32_0, %c0_i32_1 : i32, i32, i32, i32
  }
  func.func @transform_1(%arg0: i32, %arg1: i32) -> (i32, i32, i32) {
    %c0_i32 = arith.constant 0 : i32
    %c0_i32_0 = arith.constant 0 : i32
    %c0_i32_1 = arith.constant 0 : i32
    %c0_i32_2 = arith.constant 0 : i32
    return %c0_i32, %c0_i32_0, %c0_i32_1 : i32, i32, i32
  }
  func.func @transform_2(%arg0: i32, %arg1: i32) -> (i32, i32) {
    %c0_i32 = arith.constant 0 : i32
    %c0_i32_0 = arith.constant 0 : i32
    %c0_i32_1 = arith.constant 0 : i32
    return %c0_i32, %c0_i32_0 : i32, i32
  }
  func.func @transform_3(%arg0: i32, %arg1: i32) -> (i32, i32) {
    %c0_i32 = arith.constant 0 : i32
    %c0_i32_0 = arith.constant 0 : i32
    %c0_i32_1 = arith.constant 0 : i32
    return %c0_i32, %c0_i32_0 : i32, i32
  }
  func.func @transform_4(%arg0: i32, %arg1: i32) -> (i32, i32, i32) {
    %c0_i32 = arith.constant 0 : i32
    %c0_i32_0 = arith.constant 0 : i32
    %c0_i32_1 = arith.constant 0 : i32
    %c0_i32_2 = arith.constant 0 : i32
    return %c0_i32, %c0_i32_0, %c0_i32_1 : i32, i32, i32
  }
  func.func @transform_5(%arg0: i32, %arg1: i32) -> (i32, i32) {
    %c0_i32 = arith.constant 0 : i32
    %c0_i32_0 = arith.constant 0 : i32
    %c0_i32_1 = arith.constant 0 : i32
    return %c0_i32, %c0_i32_0 : i32, i32
  }
  func.func @transform_6(%arg0: i32, %arg1: i32) -> (i32, i32) {
    %c0_i32 = arith.constant 0 : i32
    %c0_i32_0 = arith.constant 0 : i32
    %c0_i32_1 = arith.constant 0 : i32
    return %c0_i32, %c0_i32_0 : i32, i32
  }
  func.func @transform_7(%arg0: i32, %arg1: i32) -> (i32, i32, i32) {
    %c0_i32 = arith.constant 0 : i32
    %c0_i32_0 = arith.constant 0 : i32
    return %arg0, %arg1, %c0_i32 : i32, i32, i32
  }
}

</mosaic_0001>

<llo_original>
// kernel: tpu_custom_call.1
$region0: #{tpu_custom_call.1}
  #allocation0 [shape = 'u32[]', space=smem, size = 0x4, offset = 0x4, fixed_abs, tag = 'smem constant byte address 0x4 - core index']
  #allocation1 [shape = 'u32[144,128]{1,0:T(1,128)}', space=vmem, size = 0x12000, scoped, tag = 'internal scratch']
  #allocation2 [shape = 'bf16[18,18,4]{2,1,0:T(8,128)(2,1)}', space=vmem, size = 0x1b000, scoped, tag = 'scratch operand']
  %s0 = inlined_call_operand.vmem [shape: bf16[2,20,18,4], index: 0, kind: input, shape index: {}]
  %s1 = inlined_call_operand.vmem [shape: bf16[3,12,4], index: 1, kind: input, shape index: {}]
  %s2 = inlined_call_operand.vmem [shape: f32[1,4], index: 2, kind: input, shape index: {}]
  %s3 = inlined_call_operand.vmem [shape: f32[1,4], index: 3, kind: input, shape index: {}]
  %s4 = inlined_call_operand.vmem [shape: bf16[3,12,4], index: 4, kind: input, shape index: {}]
  %s5 = inlined_call_operand.vmem [shape: f32[1,4], index: 5, kind: input, shape index: {}]
  %s6 = inlined_call_operand.vmem [shape: f32[1,4], index: 6, kind: input, shape index: {}]
  %s7 = inlined_call_operand.hbm [shape: f32[2,16,64], index: 7, kind: output, shape index: {}]
  %s8 = sld [smem:[#allocation0]]
  $region65: #{tpu_custom_call.1} parent=0
    _
  %s10 = ssub.s32 1, %s8
  %s11 = scalar_select 0, %s10, %s8
  $region1: #{tpu_custom_call.1} parent=0
    #allocation3 [shape = 'u8[16384]{0}', space=vmem, size = 0x4000, scoped, tag = 'output window, operand 0']
    #allocation4 [shape = 's32[2]{0}', space=sflag, size = 0x8, scoped, tag = 'scoped memory for tpu_custom_call.1']
    %12 = vsyncpa [#allocation4], 0
    %s13 = scalar_lea.sflag [#allocation4], 1
    %14 = vsyncpa %s13, 0
    loop: start=0, step=1, limit=4
    $region2: #{tpu_custom_call.1} parent=1 // loop_pre_header
      _
    $region3: #{tpu_custom_call.1} parent=1 // loop_header
      %s16 = sphi 0, %s20
      %p17 = scmp.ge.s32.totalorder %s16, 4
      %s23 = sphi 0, %s35
      %s24 = sphi 0, %s31
      %s25 = sphi 0, %s23
      %s26 = sphi 0, %s24
      %s27 = sphi 0, %s25
      %s28 = sphi 0, %s26
      %s38 = sphi 0, %s40
      %s41 = sphi 0, %s38
      %s42 = sphi 0, %s41
      %s58 = sphi 0, %s42
      %s62 = sphi 0, %s62
      %s64 = sphi 0, %s62
      %s65 = sphi 0, %s64
      %s79 = sphi 0, %s65
      %s83 = sphi 0, %s83
      %s85 = sphi 0, %s83
      %s86 = sphi 0, %s85
      %s100 = sphi 0, %s86
      %s104 = sphi 0, %s104
      %s106 = sphi 0, %s104
      %s107 = sphi 0, %s106
      %s121 = sphi 0, %s107
      %s125 = sphi 0, %s125
      %s127 = sphi 0, %s125
      %s128 = sphi 0, %s127
      %s142 = sphi 0, %s128
      %s146 = sphi 0, %s146
      %s148 = sphi 0, %s146
      %s149 = sphi 0, %s148
      %s163 = sphi 0, %s149
      %s167 = sphi 0, %s167
      %s169 = sphi 0, %s167
      %s170 = sphi 0, %s169
      %s184 = sphi 0, %s170
      %s192 = sphi 0, %s194
      %s195 = sphi 0, %s192
      %s196 = sphi 0, %s195
      %s212 = sphi 0, %s196
    $region4: #{tpu_custom_call.1} parent=1 // loop_header_branch
      %19 = sbr.rel (%p17) target = $region8
    $region5: #{tpu_custom_call.1} parent=1 // loop_body
      %s21 = ssub.s32 %s16, 1
      %s22 = ssub.s32 %s16, 2
      %s29 = sadd.s32 1, %s24
      %p30 = scmp.ge.s32.totalorder %s29, 1
      %s31 = scalar_select %p30, 0, %s29
      %s32 = sadd.s32 1, %s23
      %s33 = scalar_select %p30, %s32, %s23
      %p34 = scmp.ge.s32.totalorder %s33, 2
      %s35 = scalar_select %p34, 0, %s33
      %s36 = ssub.s32 %s23, %s35
      %p37 = scmp.eq.s32.totalorder %s36, 0
      %s39 = sadd.s32 %s38, 1
      %s40 = scalar_select %p37, %s38, %s39
      %p43 = pneg %p37
      %p44 = scmp.eq.s32.totalorder %s16, 1
      %p45 = por %p43, %p44
      %p46 = scmp.ne.s32.totalorder %s38, %s41
      %p47 = scmp.eq.s32.totalorder %s16, 0
      %p48 = por %p46, %p47
      %p49 = scmp.ne.s32.totalorder %s38, %s41
      %p50 = scmp.eq.s32.totalorder %s21, 1
      %p51 = por %p49, %p50
      %p52 = scmp.ne.s32.totalorder %s41, %s42
      %p53 = scmp.eq.s32.totalorder %s21, 0
      %p54 = por %p52, %p53
      %p55 = scmp.ne.s32.totalorder %s41, %s42
      %p56 = scmp.eq.s32.totalorder %s22, 1
      %p57 = por %p55, %p56
      %p59 = scmp.ne.s32.totalorder %s42, %s58
      %p60 = scmp.eq.s32.totalorder %s22, 0
      %p61 = por %p59, %p60
      %s63 = sadd.s32 %s62, 1
      %p66 = scmp.eq.s32.totalorder %s16, 1
      %p67 = scmp.ne.s32.totalorder %s62, %s64
      %p68 = scmp.eq.s32.totalorder %s16, 0
      %p69 = por %p67, %p68
      %p70 = scmp.ne.s32.totalorder %s62, %s64
      %p71 = scmp.eq.s32.totalorder %s21, 1
      %p72 = por %p70, %p71
      %p73 = scmp.ne.s32.totalorder %s64, %s65
      %p74 = scmp.eq.s32.totalorder %s21, 0
      %p75 = por %p73, %p74
      %p76 = scmp.ne.s32.totalorder %s64, %s65
      %p77 = scmp.eq.s32.totalorder %s22, 1
      %p78 = por %p76, %p77
      %p80 = scmp.ne.s32.totalorder %s65, %s79
      %p81 = scmp.eq.s32.totalorder %s22, 0
      %p82 = por %p80, %p81
      %s84 = sadd.s32 %s83, 1
      %p87 = scmp.eq.s32.totalorder %s16, 1
      %p88 = scmp.ne.s32.totalorder %s83, %s85
      %p89 = scmp.eq.s32.totalorder %s16, 0
      %p90 = por %p88, %p89
      %p91 = scmp.ne.s32.totalorder %s83, %s85
      %p92 = scmp.eq.s32.totalorder %s21, 1
      %p93 = por %p91, %p92
      %p94 = scmp.ne.s32.totalorder %s85, %s86
      %p95 = scmp.eq.s32.totalorder %s21, 0
      %p96 = por %p94, %p95
      %p97 = scmp.ne.s32.totalorder %s85, %s86
      %p98 = scmp.eq.s32.totalorder %s22, 1
      %p99 = por %p97, %p98
      %p101 = scmp.ne.s32.totalorder %s86, %s100
      %p102 = scmp.eq.s32.totalorder %s22, 0
      %p103 = por %p101, %p102
      %s105 = sadd.s32 %s104, 1
      %p108 = scmp.eq.s32.totalorder %s16, 1
      %p109 = scmp.ne.s32.totalorder %s104, %s106
      %p110 = scmp.eq.s32.totalorder %s16, 0
      %p111 = por %p109, %p110
      %p112 = scmp.ne.s32.totalorder %s104, %s106
      %p113 = scmp.eq.s32.totalorder %s21, 1
      %p114 = por %p112, %p113
      %p115 = scmp.ne.s32.totalorder %s106, %s107
      %p116 = scmp.eq.s32.totalorder %s21, 0
      %p117 = por %p115, %p116
      %p118 = scmp.ne.s32.totalorder %s106, %s107
      %p119 = scmp.eq.s32.totalorder %s22, 1
      %p120 = por %p118, %p119
      %p122 = scmp.ne.s32.totalorder %s107, %s121
      %p123 = scmp.eq.s32.totalorder %s22, 0
      %p124 = por %p122, %p123
      %s126 = sadd.s32 %s125, 1
      %p129 = scmp.eq.s32.totalorder %s16, 1
      %p130 = scmp.ne.s32.totalorder %s125, %s127
      %p131 = scmp.eq.s32.totalorder %s16, 0
      %p132 = por %p130, %p131
      %p133 = scmp.ne.s32.totalorder %s125, %s127
      %p134 = scmp.eq.s32.totalorder %s21, 1
      %p135 = por %p133, %p134
      %p136 = scmp.ne.s32.totalorder %s127, %s128
      %p137 = scmp.eq.s32.totalorder %s21, 0
      %p138 = por %p136, %p137
      %p139 = scmp.ne.s32.totalorder %s127, %s128
      %p140 = scmp.eq.s32.totalorder %s22, 1
      %p141 = por %p139, %p140
      %p143 = scmp.ne.s32.totalorder %s128, %s142
      %p144 = scmp.eq.s32.totalorder %s22, 0
      %p145 = por %p143, %p144
      %s147 = sadd.s32 %s146, 1
      %p150 = scmp.eq.s32.totalorder %s16, 1
      %p151 = scmp.ne.s32.totalorder %s146, %s148
      %p152 = scmp.eq.s32.totalorder %s16, 0
      %p153 = por %p151, %p152
      %p154 = scmp.ne.s32.totalorder %s146, %s148
      %p155 = scmp.eq.s32.totalorder %s21, 1
      %p156 = por %p154, %p155
      %p157 = scmp.ne.s32.totalorder %s148, %s149
      %p158 = scmp.eq.s32.totalorder %s21, 0
      %p159 = por %p157, %p158
      %p160 = scmp.ne.s32.totalorder %s148, %s149
      %p161 = scmp.eq.s32.totalorder %s22, 1
      %p162 = por %p160, %p161
      %p164 = scmp.ne.s32.totalorder %s149, %s163
      %p165 = scmp.eq.s32.totalorder %s22, 0
      %p166 = por %p164, %p165
      %s168 = sadd.s32 %s167, 1
      %p171 = scmp.eq.s32.totalorder %s16, 1
      %p172 = scmp.ne.s32.totalorder %s167, %s169
      %p173 = scmp.eq.s32.totalorder %s16, 0
      %p174 = por %p172, %p173
      %p175 = scmp.ne.s32.totalorder %s167, %s169
      %p176 = scmp.eq.s32.totalorder %s21, 1
      %p177 = por %p175, %p176
      %p178 = scmp.ne.s32.totalorder %s169, %s170
      %p179 = scmp.eq.s32.totalorder %s21, 0
      %p180 = por %p178, %p179
      %p181 = scmp.ne.s32.totalorder %s169, %s170
      %p182 = scmp.eq.s32.totalorder %s22, 1
      %p183 = por %p181, %p182
      %p185 = scmp.ne.s32.totalorder %s170, %s184
      %p186 = scmp.eq.s32.totalorder %s22, 0
      %p187 = por %p185, %p186
      %s188 = ssub.s32 %s23, %s35
      %s189 = ssub.s32 %s24, %s31
      %s190 = sor.u32 %s188, %s189
      %p191 = scmp.eq.s32.totalorder %s190, 0
      %s193 = sadd.s32 %s192, 1
      %s194 = scalar_select %p191, %s192, %s193
      %p197 = pneg %p191
      %p198 = scmp.eq.s32.totalorder %s16, 1
      %p199 = por %p197, %p198
      %p200 = scmp.ne.s32.totalorder %s192, %s195
      %p201 = scmp.eq.s32.totalorder %s16, 0
      %p202 = por %p200, %p201
      %p203 = scmp.ne.s32.totalorder %s192, %s195
      %p204 = scmp.eq.s32.totalorder %s21, 1
      %p205 = por %p203, %p204
      %p206 = scmp.ne.s32.totalorder %s195, %s196
      %p207 = scmp.eq.s32.totalorder %s21, 0
      %p208 = por %p206, %p207
      %p209 = scmp.ne.s32.totalorder %s195, %s196
      %p210 = scmp.eq.s32.totalorder %s22, 1
      %p211 = por %p209, %p210
      %p213 = scmp.ne.s32.totalorder %s196, %s212
      %p214 = scmp.eq.s32.totalorder %s22, 0
      %p215 = por %p213, %p214
      %p216 = scmp.le.s32.totalorder 1, %s16
      %p217 = scmp.lt.s32.totalorder %s16, 3
      %p218 = pnand %p216, %p217
      %p219 = pneg %p218
      // Predicated region
      $region9: #{tpu_custom_call.1} parent=5 // pred_check
        _
      $region10: #{tpu_custom_call.1} parent=5 // pred_check_branch
        %221 = sbr.rel (%p218) target = $region12
      $region11: #{tpu_custom_call.1} parent=5 // pred_region
        %s222 = ssub.s32 %s16, 1
        // Predicated region
        $region13: #{tpu_custom_call.1} parent=11 // pred_check
          %p223 = pneg %p75
        $region14: #{tpu_custom_call.1} parent=11 // pred_check_branch
          %225 = sbr.rel (%p223) target = $region16
        $region15: #{tpu_custom_call.1} parent=11 // pred_region
          _
        $region16: #{tpu_custom_call.1} parent=11 // pred_fallthru
          _
        // Predicated region
        $region17: #{tpu_custom_call.1} parent=11 // pred_check
          %p226 = pneg %p96
        $region18: #{tpu_custom_call.1} parent=11 // pred_check_branch
          %228 = sbr.rel (%p226) target = $region20
        $region19: #{tpu_custom_call.1} parent=11 // pred_region
          _
        $region20: #{tpu_custom_call.1} parent=11 // pred_fallthru
          _
        // Predicated region
        $region21: #{tpu_custom_call.1} parent=11 // pred_check
          %p229 = pneg %p117
        $region22: #{tpu_custom_call.1} parent=11 // pred_check_branch
          %231 = sbr.rel (%p229) target = $region24
        $region23: #{tpu_custom_call.1} parent=11 // pred_region
          _
        $region24: #{tpu_custom_call.1} parent=11 // pred_fallthru
          _
        // Predicated region
        $region25: #{tpu_custom_call.1} parent=11 // pred_check
          %p232 = pneg %p138
        $region26: #{tpu_custom_call.1} parent=11 // pred_check_branch
          %234 = sbr.rel (%p232) target = $region28
        $region27: #{tpu_custom_call.1} parent=11 // pred_region
          _
        $region28: #{tpu_custom_call.1} parent=11 // pred_fallthru
          _
        // Predicated region
        $region29: #{tpu_custom_call.1} parent=11 // pred_check
          %p235 = pneg %p159
        $region30: #{tpu_custom_call.1} parent=11 // pred_check_branch
          %237 = sbr.rel (%p235) target = $region32
        $region31: #{tpu_custom_call.1} parent=11 // pred_region
          _
        $region32: #{tpu_custom_call.1} parent=11 // pred_fallthru
          _
        // Predicated region
        $region33: #{tpu_custom_call.1} parent=11 // pred_check
          %p238 = pneg %p180
        $region34: #{tpu_custom_call.1} parent=11 // pred_check_branch
          %240 = sbr.rel (%p238) target = $region36
        $region35: #{tpu_custom_call.1} parent=11 // pred_region
          _
        $region36: #{tpu_custom_call.1} parent=11 // pred_fallthru
          _
      $region12: #{tpu_custom_call.1} parent=5 // pred_fallthru
        _
      %p241 = scmp.lt.s32.totalorder %s16, 2
      // Predicated region
      $region37: #{tpu_custom_call.1} parent=5 // pred_check
        %p242 = pneg %p241
      $region38: #{tpu_custom_call.1} parent=5 // pred_check_branch
        %244 = sbr.rel (%p242) target = $region40
      $region39: #{tpu_custom_call.1} parent=5 // pred_region
        // Predicated region
        $region41: #{tpu_custom_call.1} parent=39 // pred_check
          %p245 = pneg %p48
        $region42: #{tpu_custom_call.1} parent=39 // pred_check_branch
          %247 = sbr.rel (%p245) target = $region44
        $region43: #{tpu_custom_call.1} parent=39 // pred_region
          %p248 = scmp.lt.s32.totalorder %s23, 1
          %s249 = scalar_select %p248, %s23, 1
          %s250 = smul.addr %s249, 60
          %s251 = smul.addr %s250, 4
          %s252 = scalar_lea.vmem %s0, %s251
        $region44: #{tpu_custom_call.1} parent=39 // pred_fallthru
          _
      $region40: #{tpu_custom_call.1} parent=5 // pred_fallthru
        _
      %p253 = scmp.le.s32.totalorder 1, %s16
      %p254 = scmp.lt.s32.totalorder %s16, 3
      %p255 = pnand %p253, %p254
      %p256 = pneg %p255
      // Predicated region
      $region45: #{tpu_custom_call.1} parent=5 // pred_check
        _
      $region46: #{tpu_custom_call.1} parent=5 // pred_check_branch
        %258 = sbr.rel (%p255) target = $region48
      $region47: #{tpu_custom_call.1} parent=5 // pred_region
        %s259 = ssub.s32 %s16, 1
        %p260 = scmp.lt.s32.totalorder %s25, 1
        %s261 = scalar_select %p260, %s25, 1
        %s262 = smul.addr %s261, 60
        %s263 = smul.addr %s262, 4
        %s264 = scalar_lea.vmem %s0, %s263
        %p265 = pneg %p54
        %p266 = pneg %p51
        %p267 = pneg %p75
        %p268 = pneg %p72
        %p269 = pneg %p96
        %p270 = pneg %p93
        %p271 = pneg %p117
        %p272 = pneg %p114
        %p273 = pneg %p138
        %p274 = pneg %p135
        %p275 = pneg %p159
        %p276 = pneg %p156
        %p277 = pneg %p180
        %p278 = pneg %p177
        %p279 = pneg %p208
        %p280 = pneg %p205
        %s281 = sand.u32 %s195, 1
        %s282 = scalar_lea.sflag [#allocation4], %s281
        %s283 = sand.u32 %s195, 1
        %s284 = smul.addr %s283, 16
        %s285 = scalar_lea.vmem [#allocation3], %s284
        %p286 = scmp.lt.s32.totalorder %s25, 1
        %s287 = scalar_select %p286, %s25, 1
        %s288 = smul.addr %s287, 60
        %s289 = smul.addr %s288, 4
        %s290 = scalar_lea.vmem %s0, %s289
        %s291 = smul.u32 2, %s26
        %s293 = smul.u32 %s26, 16
        %s294 = smul.u32 %s293, 3
        %s295 = smul.addr %s294, 4
        %s296 = scalar_lea.vmem %s290, %s295
        %v297 = vld [vmem:[%s296] sm:$0xf]
        %v298 = vld [vmem:[%s296 + $0x4] sm:$0xf]
        %v299 = vld [vmem:[%s296 + $0x8] sm:$0x1]
        %v300 = vld [vmem:[%s296 + $0xc] sm:$0xf]
        %v301 = vld [vmem:[%s296 + $0x10] sm:$0xf]
        %v302 = vld [vmem:[%s296 + $0x14] sm:$0x1]
        %v303 = vld [vmem:[%s296 + $0x18] sm:$0xf]
        %v304 = vld [vmem:[%s296 + $0x1c] sm:$0xf]
        %v305 = vld [vmem:[%s296 + $0x20] sm:$0x1]
        %v306 = vld [vmem:[%s296 + $0x24] sm:$0xf]
        %v307 = vld [vmem:[%s296 + $0x28] sm:$0xf]
        %v308 = vld [vmem:[%s296 + $0x2c] sm:$0x1]
        %v309 = vld [vmem:[%s296 + $0x30] sm:$0xf]
        %v310 = vld [vmem:[%s296 + $0x34] sm:$0xf]
        %v311 = vld [vmem:[%s296 + $0x38] sm:$0x1]
        %v312 = vld [vmem:[%s296 + $0x3c] sm:$0xf]
        %v313 = vld [vmem:[%s296 + $0x40] sm:$0xf]
        %v314 = vld [vmem:[%s296 + $0x44] sm:$0x1]
        %v315 = vld [vmem:[%s296 + $0x48] sm:$0xf]
        %v316 = vld [vmem:[%s296 + $0x4c] sm:$0xf]
        %v317 = vld [vmem:[%s296 + $0x50] sm:$0x1]
        %v318 = vld [vmem:[%s296 + $0x54] sm:$0xf]
        %v319 = vld [vmem:[%s296 + $0x58] sm:$0xf]
        %v320 = vld [vmem:[%s296 + $0x5c] sm:$0x1]
        %v321 = vld [vmem:[%s296 + $0x60] sm:$0xf]
        %v322 = vld [vmem:[%s296 + $0x64] sm:$0xf]
        %v323 = vld [vmem:[%s296 + $0x68] sm:$0x1]
        %v324 = vld [vmem:[%s296 + $0x6c] sm:$0xf]
        %v325 = vld [vmem:[%s296 + $0x70] sm:$0xf]
        %v326 = vld [vmem:[%s296 + $0x74] sm:$0x1]
        %v327 = vld [vmem:[%s296 + $0x78] sm:$0xf]
        %v328 = vld [vmem:[%s296 + $0x7c] sm:$0xf]
        %v329 = vld [vmem:[%s296 + $0x80] sm:$0x1]
        %v330 = vld [vmem:[%s296 + $0x84] sm:$0xf]
        %v331 = vld [vmem:[%s296 + $0x88] sm:$0xf]
        %v332 = vld [vmem:[%s296 + $0x8c] sm:$0x1]
        %v333 = vld [vmem:[%s296 + $0x90] sm:$0xf]
        %v334 = vld [vmem:[%s296 + $0x94] sm:$0xf]
        %v335 = vld [vmem:[%s296 + $0x98] sm:$0x1]
        %v336 = vld [vmem:[%s296 + $0x9c] sm:$0xf]
        %v337 = vld [vmem:[%s296 + $0xa0] sm:$0xf]
        %v338 = vld [vmem:[%s296 + $0xa4] sm:$0x1]
        %v339 = vld [vmem:[%s296 + $0xa8] sm:$0xf]
        %v340 = vld [vmem:[%s296 + $0xac] sm:$0xf]
        %v341 = vld [vmem:[%s296 + $0xb0] sm:$0x1]
        %v342 = vld [vmem:[%s296 + $0xb4] sm:$0xf]
        %v343 = vld [vmem:[%s296 + $0xb8] sm:$0xf]
        %v344 = vld [vmem:[%s296 + $0xbc] sm:$0x1]
        %v345 = vld [vmem:[%s296 + $0xc0] sm:$0xf]
        %v346 = vld [vmem:[%s296 + $0xc4] sm:$0xf]
        %v347 = vld [vmem:[%s296 + $0xc8] sm:$0x1]
        %v348 = vld [vmem:[%s296 + $0xcc] sm:$0xf]
        %v349 = vld [vmem:[%s296 + $0xd0] sm:$0xf]
        %v350 = vld [vmem:[%s296 + $0xd4] sm:$0x1]
        %v351 = vld [vmem:[%s296 + $0xd8] sm:$0xf]
        %v352 = vld [vmem:[%s296 + $0xdc] sm:$0xf]
        %v353 = vld [vmem:[%s296 + $0xe0] sm:$0x1]
        %v354 = vld [vmem:[%s296 + $0xe4] sm:$0xf]
        %v355 = vld [vmem:[%s296 + $0xe8] sm:$0xf]
        %v356 = vld [vmem:[%s296 + $0xec] sm:$0x1]
        %v397 = vunpack.c.l.b16 %v297
        %v398 = vunpack.c.l.b16 %v298
        %v399 = vunpack.c.l.b16 %v300
        %v400 = vunpack.c.l.b16 %v301
        %v401 = vunpack.c.l.b16 %v303
        %v402 = vunpack.c.l.b16 %v304
        %v403 = vunpack.c.l.b16 %v306
        %v404 = vunpack.c.l.b16 %v307
        %v405 = vunpack.c.l.b16 %v309
        %v406 = vunpack.c.l.b16 %v310
        %v407 = vunpack.c.l.b16 %v312
        %v408 = vunpack.c.l.b16 %v313
        %v409 = vunpack.c.l.b16 %v315
        %v410 = vunpack.c.l.b16 %v316
        %v411 = vunpack.c.l.b16 %v318
        %v412 = vunpack.c.l.b16 %v319
        %v413 = vunpack.c.l.b16 %v321
        %v414 = vunpack.c.l.b16 %v322
        %v415 = vunpack.c.l.b16 %v324
        %v416 = vunpack.c.l.b16 %v325
        %v417 = vunpack.c.l.b16 %v327
        %v418 = vunpack.c.l.b16 %v328
        %v419 = vunpack.c.l.b16 %v330
        %v420 = vunpack.c.l.b16 %v331
        %v421 = vunpack.c.l.b16 %v333
        %v422 = vunpack.c.l.b16 %v334
        %v423 = vunpack.c.l.b16 %v336
        %v424 = vunpack.c.l.b16 %v337
        %v425 = vunpack.c.l.b16 %v339
        %v426 = vunpack.c.l.b16 %v340
        %v427 = vunpack.c.l.b16 %v342
        %v428 = vunpack.c.l.b16 %v343
        %v429 = vunpack.c.l.b16 %v345
        %v430 = vunpack.c.l.b16 %v346
        %v431 = vunpack.c.l.b16 %v348
        %v432 = vunpack.c.l.b16 %v349
        %v433 = vunpack.c.l.b16 %v351
        %v434 = vunpack.c.l.b16 %v352
        %v435 = vunpack.c.l.b16 %v354
        %v436 = vunpack.c.l.b16 %v355
        %v437 = vpack.c.b16 %v398, %v397
        %v438 = vpack.c.b16 %v400, %v399
        %v439 = vpack.c.b16 %v402, %v401
        %v440 = vpack.c.b16 %v404, %v403
        %v441 = vpack.c.b16 %v406, %v405
        %v442 = vpack.c.b16 %v408, %v407
        %v443 = vpack.c.b16 %v410, %v409
        %v444 = vpack.c.b16 %v412, %v411
        %v445 = vpack.c.b16 %v414, %v413
        %v446 = vpack.c.b16 %v416, %v415
        %v447 = vpack.c.b16 %v418, %v417
        %v448 = vpack.c.b16 %v420, %v419
        %v449 = vpack.c.b16 %v422, %v421
        %v450 = vpack.c.b16 %v424, %v423
        %v451 = vpack.c.b16 %v426, %v425
        %v452 = vpack.c.b16 %v428, %v427
        %v453 = vpack.c.b16 %v430, %v429
        %v454 = vpack.c.b16 %v432, %v431
        %v455 = vpack.c.b16 %v434, %v433
        %v456 = vpack.c.b16 %v436, %v435
        %v477 = vunpack.c.l.b16 %v299
        %v478 = vunpack.c.l.b16 %v302
        %v479 = vunpack.c.l.b16 %v305
        %v480 = vunpack.c.l.b16 %v308
        %v481 = vunpack.c.l.b16 %v311
        %v482 = vunpack.c.l.b16 %v314
        %v483 = vunpack.c.l.b16 %v317
        %v484 = vunpack.c.l.b16 %v320
        %v485 = vunpack.c.l.b16 %v323
        %v486 = vunpack.c.l.b16 %v326
        %v487 = vunpack.c.l.b16 %v329
        %v488 = vunpack.c.l.b16 %v332
        %v489 = vunpack.c.l.b16 %v335
        %v490 = vunpack.c.l.b16 %v338
        %v491 = vunpack.c.l.b16 %v341
        %v492 = vunpack.c.l.b16 %v344
        %v493 = vunpack.c.l.b16 %v347
        %v494 = vunpack.c.l.b16 %v350
        %v495 = vunpack.c.l.b16 %v353
        %v496 = vunpack.c.l.b16 %v356
        %v497 = vpack.c.b16 %v477, %v477
        %v498 = vpack.c.b16 %v478, %v478
        %v499 = vpack.c.b16 %v479, %v479
        %v500 = vpack.c.b16 %v480, %v480
        %v501 = vpack.c.b16 %v481, %v481
        %v502 = vpack.c.b16 %v482, %v482
        %v503 = vpack.c.b16 %v483, %v483
        %v504 = vpack.c.b16 %v484, %v484
        %v505 = vpack.c.b16 %v485, %v485
        %v506 = vpack.c.b16 %v486, %v486
        %v507 = vpack.c.b16 %v487, %v487
        %v508 = vpack.c.b16 %v488, %v488
        %v509 = vpack.c.b16 %v489, %v489
        %v510 = vpack.c.b16 %v490, %v490
        %v511 = vpack.c.b16 %v491, %v491
        %v512 = vpack.c.b16 %v492, %v492
        %v513 = vpack.c.b16 %v493, %v493
        %v514 = vpack.c.b16 %v494, %v494
        %v515 = vpack.c.b16 %v495, %v495
        %v516 = vpack.c.b16 %v496, %v496
        %vm517 = vsmask.f32 7424
        %v519 = vshrl.u32 %v437, 16
        %v521 = vshll.u32 %v437, 16
        %v523 = vrot.slane %v521, 1
        %v524 = vor.u32 %v519, %v523
        %v526 = vshll.u32 %v497, 16
        %v528 = vrot.slane %v526, 1
        %v529 = vsel %vm517, %v524, %v528
        %v531 = vshrl.u32 %v438, 16
        %v533 = vshll.u32 %v438, 16
        %v535 = vrot.slane %v533, 1
        %v536 = vor.u32 %v531, %v535
        %v538 = vshll.u32 %v498, 16
        %v540 = vrot.slane %v538, 1
        %v541 = vsel %vm517, %v536, %v540
        %v543 = vshrl.u32 %v439, 16
        %v545 = vshll.u32 %v439, 16
        %v547 = vrot.slane %v545, 1
        %v548 = vor.u32 %v543, %v547
        %v550 = vshll.u32 %v499, 16
        %v552 = vrot.slane %v550, 1
        %v553 = vsel %vm517, %v548, %v552
        %v555 = vshrl.u32 %v440, 16
        %v557 = vshll.u32 %v440, 16
        %v559 = vrot.slane %v557, 1
        %v560 = vor.u32 %v555, %v559
        %v562 = vshll.u32 %v500, 16
        %v564 = vrot.slane %v562, 1
        %v565 = vsel %vm517, %v560, %v564
        %v567 = vshrl.u32 %v441, 16
        %v569 = vshll.u32 %v441, 16
        %v571 = vrot.slane %v569, 1
        %v572 = vor.u32 %v567, %v571
        %v574 = vshll.u32 %v501, 16
        %v576 = vrot.slane %v574, 1
        %v577 = vsel %vm517, %v572, %v576
        %v579 = vshrl.u32 %v442, 16
        %v581 = vshll.u32 %v442, 16
        %v583 = vrot.slane %v581, 1
        %v584 = vor.u32 %v579, %v583
        %v586 = vshll.u32 %v502, 16
        %v588 = vrot.slane %v586, 1
        %v589 = vsel %vm517, %v584, %v588
        %v591 = vshrl.u32 %v443, 16
        %v593 = vshll.u32 %v443, 16
        %v595 = vrot.slane %v593, 1
        %v596 = vor.u32 %v591, %v595
        %v598 = vshll.u32 %v503, 16
        %v600 = vrot.slane %v598, 1
        %v601 = vsel %vm517, %v596, %v600
        %v603 = vshrl.u32 %v444, 16
        %v605 = vshll.u32 %v444, 16
        %v607 = vrot.slane %v605, 1
        %v608 = vor.u32 %v603, %v607
        %v610 = vshll.u32 %v504, 16
        %v612 = vrot.slane %v610, 1
        %v613 = vsel %vm517, %v608, %v612
        %v615 = vshrl.u32 %v445, 16
        %v617 = vshll.u32 %v445, 16
        %v619 = vrot.slane %v617, 1
        %v620 = vor.u32 %v615, %v619
        %v622 = vshll.u32 %v505, 16
        %v624 = vrot.slane %v622, 1
        %v625 = vsel %vm517, %v620, %v624
        %v627 = vshrl.u32 %v446, 16
        %v629 = vshll.u32 %v446, 16
        %v631 = vrot.slane %v629, 1
        %v632 = vor.u32 %v627, %v631
        %v634 = vshll.u32 %v506, 16
        %v636 = vrot.slane %v634, 1
        %v637 = vsel %vm517, %v632, %v636
        %v639 = vshrl.u32 %v447, 16
        %v641 = vshll.u32 %v447, 16
        %v643 = vrot.slane %v641, 1
        %v644 = vor.u32 %v639, %v643
        %v646 = vshll.u32 %v507, 16
        %v648 = vrot.slane %v646, 1
        %v649 = vsel %vm517, %v644, %v648
        %v651 = vshrl.u32 %v448, 16
        %v653 = vshll.u32 %v448, 16
        %v655 = vrot.slane %v653, 1
        %v656 = vor.u32 %v651, %v655
        %v658 = vshll.u32 %v508, 16
        %v660 = vrot.slane %v658, 1
        %v661 = vsel %vm517, %v656, %v660
        %v663 = vshrl.u32 %v449, 16
        %v665 = vshll.u32 %v449, 16
        %v667 = vrot.slane %v665, 1
        %v668 = vor.u32 %v663, %v667
        %v670 = vshll.u32 %v509, 16
        %v672 = vrot.slane %v670, 1
        %v673 = vsel %vm517, %v668, %v672
        %v675 = vshrl.u32 %v450, 16
        %v677 = vshll.u32 %v450, 16
        %v679 = vrot.slane %v677, 1
        %v680 = vor.u32 %v675, %v679
        %v682 = vshll.u32 %v510, 16
        %v684 = vrot.slane %v682, 1
        %v685 = vsel %vm517, %v680, %v684
        %v687 = vshrl.u32 %v451, 16
        %v689 = vshll.u32 %v451, 16
        %v691 = vrot.slane %v689, 1
        %v692 = vor.u32 %v687, %v691
        %v694 = vshll.u32 %v511, 16
        %v696 = vrot.slane %v694, 1
        %v697 = vsel %vm517, %v692, %v696
        %v699 = vshrl.u32 %v452, 16
        %v701 = vshll.u32 %v452, 16
        %v703 = vrot.slane %v701, 1
        %v704 = vor.u32 %v699, %v703
        %v706 = vshll.u32 %v512, 16
        %v708 = vrot.slane %v706, 1
        %v709 = vsel %vm517, %v704, %v708
        %v711 = vshrl.u32 %v453, 16
        %v713 = vshll.u32 %v453, 16
        %v715 = vrot.slane %v713, 1
        %v716 = vor.u32 %v711, %v715
        %v718 = vshll.u32 %v513, 16
        %v720 = vrot.slane %v718, 1
        %v721 = vsel %vm517, %v716, %v720
        %v723 = vshrl.u32 %v454, 16
        %v725 = vshll.u32 %v454, 16
        %v727 = vrot.slane %v725, 1
        %v728 = vor.u32 %v723, %v727
        %v730 = vshll.u32 %v514, 16
        %v732 = vrot.slane %v730, 1
        %v733 = vsel %vm517, %v728, %v732
        %v735 = vshrl.u32 %v455, 16
        %v737 = vshll.u32 %v455, 16
        %v739 = vrot.slane %v737, 1
        %v740 = vor.u32 %v735, %v739
        %v742 = vshll.u32 %v515, 16
        %v744 = vrot.slane %v742, 1
        %v745 = vsel %vm517, %v740, %v744
        %v747 = vshrl.u32 %v456, 16
        %v749 = vshll.u32 %v456, 16
        %v751 = vrot.slane %v749, 1
        %v752 = vor.u32 %v747, %v751
        %v754 = vshll.u32 %v516, 16
        %v756 = vrot.slane %v754, 1
        %v757 = vsel %vm517, %v752, %v756
        %758 = vrot.lane.b32.xlu0 %v529, 4
        %v759 = vpop.permute.xlu0 %758
        %760 = vrot.lane.b32.xlu0 %v541, 4
        %v761 = vpop.permute.xlu0 %760
        %762 = vrot.lane.b32.xlu0 %v553, 4
        %v763 = vpop.permute.xlu0 %762
        %764 = vrot.lane.b32.xlu0 %v565, 4
        %v765 = vpop.permute.xlu0 %764
        %766 = vrot.lane.b32.xlu0 %v577, 4
        %v767 = vpop.permute.xlu0 %766
        %768 = vrot.lane.b32.xlu0 %v589, 4
        %v769 = vpop.permute.xlu0 %768
        %770 = vrot.lane.b32.xlu0 %v601, 4
        %v771 = vpop.permute.xlu0 %770
        %772 = vrot.lane.b32.xlu0 %v613, 4
        %v773 = vpop.permute.xlu0 %772
        %774 = vrot.lane.b32.xlu0 %v625, 4
        %v775 = vpop.permute.xlu0 %774
        %776 = vrot.lane.b32.xlu0 %v637, 4
        %v777 = vpop.permute.xlu0 %776
        %778 = vrot.lane.b32.xlu0 %v649, 4
        %v779 = vpop.permute.xlu0 %778
        %780 = vrot.lane.b32.xlu0 %v661, 4
        %v781 = vpop.permute.xlu0 %780
        %782 = vrot.lane.b32.xlu0 %v673, 4
        %v783 = vpop.permute.xlu0 %782
        %784 = vrot.lane.b32.xlu0 %v685, 4
        %v785 = vpop.permute.xlu0 %784
        %786 = vrot.lane.b32.xlu0 %v697, 4
        %v787 = vpop.permute.xlu0 %786
        %788 = vrot.lane.b32.xlu0 %v709, 4
        %v789 = vpop.permute.xlu0 %788
        %790 = vrot.lane.b32.xlu0 %v721, 4
        %v791 = vpop.permute.xlu0 %790
        %792 = vrot.lane.b32.xlu0 %v733, 4
        %v793 = vpop.permute.xlu0 %792
        %794 = vrot.lane.b32.xlu0 %v745, 4
        %v795 = vpop.permute.xlu0 %794
        %796 = vrot.lane.b32.xlu0 %v757, 4
        %v797 = vpop.permute.xlu0 %796
        %vm798 = vcmask 1046528
        %v799 = vrot.slane %v437, 1
        %v800 = vrot.slane %v497, 1
        %v801 = vsel %vm798, %v799, %v800
        %v802 = vrot.slane %v438, 1
        %v803 = vrot.slane %v498, 1
        %v804 = vsel %vm798, %v802, %v803
        %v805 = vrot.slane %v439, 1
        %v806 = vrot.slane %v499, 1
        %v807 = vsel %vm798, %v805, %v806
        %v808 = vrot.slane %v440, 1
        %v809 = vrot.slane %v500, 1
        %v810 = vsel %vm798, %v808, %v809
        %v811 = vrot.slane %v441, 1
        %v812 = vrot.slane %v501, 1
        %v813 = vsel %vm798, %v811, %v812
        %v814 = vrot.slane %v442, 1
        %v815 = vrot.slane %v502, 1
        %v816 = vsel %vm798, %v814, %v815
        %v817 = vrot.slane %v443, 1
        %v818 = vrot.slane %v503, 1
        %v819 = vsel %vm798, %v817, %v818
        %v820 = vrot.slane %v444, 1
        %v821 = vrot.slane %v504, 1
        %v822 = vsel %vm798, %v820, %v821
        %v823 = vrot.slane %v445, 1
        %v824 = vrot.slane %v505, 1
        %v825 = vsel %vm798, %v823, %v824
        %v826 = vrot.slane %v446, 1
        %v827 = vrot.slane %v506, 1
        %v828 = vsel %vm798, %v826, %v827
        %v829 = vrot.slane %v447, 1
        %v830 = vrot.slane %v507, 1
        %v831 = vsel %vm798, %v829, %v830
        %v832 = vrot.slane %v448, 1
        %v833 = vrot.slane %v508, 1
        %v834 = vsel %vm798, %v832, %v833
        %v835 = vrot.slane %v449, 1
        %v836 = vrot.slane %v509, 1
        %v837 = vsel %vm798, %v835, %v836
        %v838 = vrot.slane %v450, 1
        %v839 = vrot.slane %v510, 1
        %v840 = vsel %vm798, %v838, %v839
        %v841 = vrot.slane %v451, 1
        %v842 = vrot.slane %v511, 1
        %v843 = vsel %vm798, %v841, %v842
        %v844 = vrot.slane %v452, 1
        %v845 = vrot.slane %v512, 1
        %v846 = vsel %vm798, %v844, %v845
        %v847 = vrot.slane %v453, 1
        %v848 = vrot.slane %v513, 1
        %v849 = vsel %vm798, %v847, %v848
        %v850 = vrot.slane %v454, 1
        %v851 = vrot.slane %v514, 1
        %v852 = vsel %vm798, %v850, %v851
        %v853 = vrot.slane %v455, 1
        %v854 = vrot.slane %v515, 1
        %v855 = vsel %vm798, %v853, %v854
        %v856 = vrot.slane %v456, 1
        %v857 = vrot.slane %v516, 1
        %v858 = vsel %vm798, %v856, %v857
        %859 = vrot.lane.b32.xlu0 %v801, 8
        %v860 = vpop.permute.xlu0 %859
        %861 = vrot.lane.b32.xlu0 %v804, 8
        %v862 = vpop.permute.xlu0 %861
        %863 = vrot.lane.b32.xlu0 %v807, 8
        %v864 = vpop.permute.xlu0 %863
        %865 = vrot.lane.b32.xlu0 %v810, 8
        %v866 = vpop.permute.xlu0 %865
        %867 = vrot.lane.b32.xlu0 %v813, 8
        %v868 = vpop.permute.xlu0 %867
        %869 = vrot.lane.b32.xlu0 %v816, 8
        %v870 = vpop.permute.xlu0 %869
        %871 = vrot.lane.b32.xlu0 %v819, 8
        %v872 = vpop.permute.xlu0 %871
        %873 = vrot.lane.b32.xlu0 %v822, 8
        %v874 = vpop.permute.xlu0 %873
        %875 = vrot.lane.b32.xlu0 %v825, 8
        %v876 = vpop.permute.xlu0 %875
        %877 = vrot.lane.b32.xlu0 %v828, 8
        %v878 = vpop.permute.xlu0 %877
        %879 = vrot.lane.b32.xlu0 %v831, 8
        %v880 = vpop.permute.xlu0 %879
        %881 = vrot.lane.b32.xlu0 %v834, 8
        %v882 = vpop.permute.xlu0 %881
        %883 = vrot.lane.b32.xlu0 %v837, 8
        %v884 = vpop.permute.xlu0 %883
        %885 = vrot.lane.b32.xlu0 %v840, 8
        %v886 = vpop.permute.xlu0 %885
        %887 = vrot.lane.b32.xlu0 %v843, 8
        %v888 = vpop.permute.xlu0 %887
        %889 = vrot.lane.b32.xlu0 %v846, 8
        %v890 = vpop.permute.xlu0 %889
        %891 = vrot.lane.b32.xlu0 %v849, 8
        %v892 = vpop.permute.xlu0 %891
        %893 = vrot.lane.b32.xlu0 %v852, 8
        %v894 = vpop.permute.xlu0 %893
        %895 = vrot.lane.b32.xlu0 %v855, 8
        %v896 = vpop.permute.xlu0 %895
        %897 = vrot.lane.b32.xlu0 %v858, 8
        %v898 = vpop.permute.xlu0 %897
        %vm899 = vcmask 31744
        %v901 = vsel %vm899, %v437, %v759
        %v903 = vsel %vm899, %v438, %v761
        %v905 = vsel %vm899, %v439, %v763
        %v907 = vsel %vm899, %v440, %v765
        %v909 = vsel %vm899, %v441, %v767
        %v911 = vsel %vm899, %v442, %v769
        %v913 = vsel %vm899, %v443, %v771
        %v915 = vsel %vm899, %v444, %v773
        %v917 = vsel %vm899, %v445, %v775
        %v919 = vsel %vm899, %v446, %v777
        %v921 = vsel %vm899, %v447, %v779
        %v923 = vsel %vm899, %v448, %v781
        %v925 = vsel %vm899, %v449, %v783
        %v927 = vsel %vm899, %v450, %v785
        %v929 = vsel %vm899, %v451, %v787
        %v931 = vsel %vm899, %v452, %v789
        %v933 = vsel %vm899, %v453, %v791
        %v935 = vsel %vm899, %v454, %v793
        %v937 = vsel %vm899, %v455, %v795
        %v939 = vsel %vm899, %v456, %v797
        %vm940 = vcmask 64512
        %v942 = vsel %vm940, %v901, %v860
        %v944 = vsel %vm940, %v903, %v862
        %v946 = vsel %vm940, %v905, %v864
        %v948 = vsel %vm940, %v907, %v866
        %v950 = vsel %vm940, %v909, %v868
        %v952 = vsel %vm940, %v911, %v870
        %v954 = vsel %vm940, %v913, %v872
        %v956 = vsel %vm940, %v915, %v874
        %v958 = vsel %vm940, %v917, %v876
        %v960 = vsel %vm940, %v919, %v878
        %v962 = vsel %vm940, %v921, %v880
        %v964 = vsel %vm940, %v923, %v882
        %v966 = vsel %vm940, %v925, %v884
        %v968 = vsel %vm940, %v927, %v886
        %v970 = vsel %vm940, %v929, %v888
        %v972 = vsel %vm940, %v931, %v890
        %v974 = vsel %vm940, %v933, %v892
        %v976 = vsel %vm940, %v935, %v894
        %v978 = vsel %vm940, %v937, %v896
        %v980 = vsel %vm940, %v939, %v898
        %v981 = vld [vmem:[%s1] sm:$0xf]
        %v982 = vld [vmem:[%s1 + $0x4] sm:$0x3]
        %s983 = scalar_lea.vmem %s1, 8
        %v984 = vld [vmem:[%s983] sm:$0xf]
        %v985 = vld [vmem:[%s983 + $0x4] sm:$0x3]
        %v988 = vunpack.c.l.b16 %v984
        %v989 = vunpack.c.l.b16 %v985
        %v990 = vpack.c.b16 %v989, %v988
        %vm991 = vcmask 97280
        %v992 = vsel %vm991, %v944, 0
        %v994 = vsel %vm991, %v946, 0
        %v996 = vsel %vm991, %v948, 0
        %v998 = vsel %vm991, %v950, 0
        %v1000 = vsel %vm991, %v952, 0
        %v1002 = vsel %vm991, %v954, 0
        %v1004 = vsel %vm991, %v956, 0
        %v1006 = vsel %vm991, %v958, 0
        %v1008 = vsel %vm991, %v960, 0
        %v1010 = vsel %vm991, %v962, 0
        %v1012 = vsel %vm991, %v964, 0
        %v1014 = vsel %vm991, %v966, 0
        %v1016 = vsel %vm991, %v968, 0
        %v1018 = vsel %vm991, %v970, 0
        %v1020 = vsel %vm991, %v972, 0
        %v1022 = vsel %vm991, %v974, 0
        %v1024 = vsel %vm991, %v976, 0
        %v1026 = vsel %vm991, %v978, 0
        %vm1028 = vcmask 1045504
        %v1030 = vsel %vm1028, %v990, 0
        %1032 = vmatprep.subr.bf16.mxu0 0
        %1033 = vmatpush1.bf16.msra.mxu0 %v1030
        %1034 = vmatprep.subr.bf16.mxu0 0
        %1035 = vmatpush1.bf16.msra.mxu0 0
        %1036 = vmatprep.subr.bf16.mxu0 0
        %1037 = vmatpush1.bf16.msra.mxu0 0
        %1038 = vmatprep.subr.bf16.mxu0 0
        %1039 = vmatpush1.bf16.msra.mxu0 0
        %1040 = vmatprep.subr.bf16.mxu0 0
        %1041 = vmatpush1.bf16.msra.mxu0 0
        %1042 = vmatprep.subr.bf16.mxu0 0
        %1043 = vmatpush1.bf16.msra.mxu0 0
        %1044 = vmatprep.subr.bf16.mxu0 0
        %1045 = vmatpush1.bf16.msra.mxu0 0
        %1046 = vmatprep.subr.bf16.mxu0 0
        %1047 = vmatpush1.bf16.msra.mxu0 0
        %1048 = vmatprep.subr.bf16.mxu0 0
        %1049 = vmatpush1.bf16.msra.mxu0 0
        %1050 = vmatprep.subr.bf16.mxu0 0
        %1051 = vmatpush1.bf16.msra.mxu0 0
        %1052 = vmatprep.subr.bf16.mxu0 0
        %1053 = vmatpush1.bf16.msra.mxu0 0
        %1054 = vmatprep.subr.bf16.mxu0 0
        %1055 = vmatpush1.bf16.msra.mxu0 0
        %1056 = vmatprep.subr.bf16.mxu0 0
        %1057 = vmatpush1.bf16.msra.mxu0 0
        %1058 = vmatprep.subr.bf16.mxu0 0
        %1059 = vmatpush1.bf16.msra.mxu0 0
        %1060 = vmatprep.subr.bf16.mxu0 0
        %1061 = vmatpush1.bf16.msra.mxu0 0
        %1062 = vmatprep.subr.bf16.mxu0 0
        %1063 = vmatpush1.bf16.msra.mxu0 0
        %1064 = vmatprep.mubr.bf16.mxu0 0
        %1065 = vmatmul.mubr.bf16.gmra.mrb[0].mxu0 %v992
        %v1066 = vpop.f32.mrb[0].mxu0
        %v1067 = vadd.f32 0.0, %v1066
        %v1068 = vpop.f32.mrb[0].mxu0
        %v1069 = vpop.f32.mrb[0].mxu0
        %v1070 = vadd.f32 0.0, %v1069
        %v1071 = vpop.f32.mrb[0].mxu0
        %1072 = vmatprep.mubr.bf16.mxu0 0
        %1073 = vmatmul.mubr.bf16.gmra.mrb[0].mxu0 %v994
        %v1074 = vpop.f32.mrb[0].mxu0
        %v1075 = vadd.f32 0.0, %v1074
        %v1076 = vpop.f32.mrb[0].mxu0
        %v1077 = vpop.f32.mrb[0].mxu0
        %v1078 = vadd.f32 0.0, %v1077
        %v1079 = vpop.f32.mrb[0].mxu0
        %1080 = vmatprep.mubr.bf16.mxu0 0
        %1081 = vmatmul.mubr.bf16.gmra.mrb[0].mxu0 %v996
        %v1082 = vpop.f32.mrb[0].mxu0
        %v1083 = vadd.f32 0.0, %v1082
        %v1084 = vpop.f32.mrb[0].mxu0
        %v1085 = vpop.f32.mrb[0].mxu0
        %v1086 = vadd.f32 0.0, %v1085
        %v1087 = vpop.f32.mrb[0].mxu0
        %1088 = vmatprep.mubr.bf16.mxu0 0
        %1089 = vmatmul.mubr.bf16.gmra.mrb[0].mxu0 %v998
        %v1090 = vpop.f32.mrb[0].mxu0
        %v1091 = vadd.f32 0.0, %v1090
        %v1092 = vpop.f32.mrb[0].mxu0
        %v1093 = vpop.f32.mrb[0].mxu0
        %v1094 = vadd.f32 0.0, %v1093
        %v1095 = vpop.f32.mrb[0].mxu0
        %1096 = vmatprep.mubr.bf16.mxu0 0
        %1097 = vmatmul.mubr.bf16.gmra.mrb[0].mxu0 %v1000
        %v1098 = vpop.f32.mrb[0].mxu0
        %v1099 = vadd.f32 0.0, %v1098
        %v1100 = vpop.f32.mrb[0].mxu0
        %v1101 = vpop.f32.mrb[0].mxu0
        %v1102 = vadd.f32 0.0, %v1101
        %v1103 = vpop.f32.mrb[0].mxu0
        %1104 = vmatprep.mubr.bf16.mxu0 0
        %1105 = vmatmul.mubr.bf16.gmra.mrb[0].mxu0 %v1002
        %v1106 = vpop.f32.mrb[0].mxu0
        %v1107 = vadd.f32 0.0, %v1106
        %v1108 = vpop.f32.mrb[0].mxu0
        %v1109 = vpop.f32.mrb[0].mxu0
        %v1110 = vadd.f32 0.0, %v1109
        %v1111 = vpop.f32.mrb[0].mxu0
        %1112 = vmatprep.mubr.bf16.mxu0 0
        %1113 = vmatmul.mubr.bf16.gmra.mrb[0].mxu0 %v1004
        %v1114 = vpop.f32.mrb[0].mxu0
        %v1115 = vadd.f32 0.0, %v1114
        %v1116 = vpop.f32.mrb[0].mxu0
        %v1117 = vpop.f32.mrb[0].mxu0
        %v1118 = vadd.f32 0.0, %v1117
        %v1119 = vpop.f32.mrb[0].mxu0
        %1120 = vmatprep.mubr.bf16.mxu0 0
        %1121 = vmatmul.mubr.bf16.gmra.mrb[0].mxu0 %v1006
        %v1122 = vpop.f32.mrb[0].mxu0
        %v1123 = vadd.f32 0.0, %v1122
        %v1124 = vpop.f32.mrb[0].mxu0
        %v1125 = vpop.f32.mrb[0].mxu0
        %v1126 = vadd.f32 0.0, %v1125
        %v1127 = vpop.f32.mrb[0].mxu0
        %1128 = vmatprep.mubr.bf16.mxu0 0
        %1129 = vmatmul.mubr.bf16.gmra.mrb[0].mxu0 %v1008
        %v1130 = vpop.f32.mrb[0].mxu0
        %v1131 = vadd.f32 0.0, %v1130
        %v1132 = vpop.f32.mrb[0].mxu0
        %v1133 = vpop.f32.mrb[0].mxu0
        %v1134 = vadd.f32 0.0, %v1133
        %v1135 = vpop.f32.mrb[0].mxu0
        %1136 = vmatprep.mubr.bf16.mxu0 0
        %1137 = vmatmul.mubr.bf16.gmra.mrb[0].mxu0 %v1010
        %v1138 = vpop.f32.mrb[0].mxu0
        %v1139 = vadd.f32 0.0, %v1138
        %v1140 = vpop.f32.mrb[0].mxu0
        %v1141 = vpop.f32.mrb[0].mxu0
        %v1142 = vadd.f32 0.0, %v1141
        %v1143 = vpop.f32.mrb[0].mxu0
        %1144 = vmatprep.mubr.bf16.mxu0 0
        %1145 = vmatmul.mubr.bf16.gmra.mrb[0].mxu0 %v1012
        %v1146 = vpop.f32.mrb[0].mxu0
        %v1147 = vadd.f32 0.0, %v1146
        %v1148 = vpop.f32.mrb[0].mxu0
        %v1149 = vpop.f32.mrb[0].mxu0
        %v1150 = vadd.f32 0.0, %v1149
        %v1151 = vpop.f32.mrb[0].mxu0
        %1152 = vmatprep.mubr.bf16.mxu0 0
        %1153 = vmatmul.mubr.bf16.gmra.mrb[0].mxu0 %v1014
        %v1154 = vpop.f32.mrb[0].mxu0
        %v1155 = vadd.f32 0.0, %v1154
        %v1156 = vpop.f32.mrb[0].mxu0
        %v1157 = vpop.f32.mrb[0].mxu0
        %v1158 = vadd.f32 0.0, %v1157
        %v1159 = vpop.f32.mrb[0].mxu0
        %1160 = vmatprep.mubr.bf16.mxu0 0
        %1161 = vmatmul.mubr.bf16.gmra.mrb[0].mxu0 %v1016
        %v1162 = vpop.f32.mrb[0].mxu0
        %v1163 = vadd.f32 0.0, %v1162
        %v1164 = vpop.f32.mrb[0].mxu0
        %v1165 = vpop.f32.mrb[0].mxu0
        %v1166 = vadd.f32 0.0, %v1165
        %v1167 = vpop.f32.mrb[0].mxu0
        %1168 = vmatprep.mubr.bf16.mxu0 0
        %1169 = vmatmul.mubr.bf16.gmra.mrb[0].mxu0 %v1018
        %v1170 = vpop.f32.mrb[0].mxu0
        %v1171 = vadd.f32 0.0, %v1170
        %v1172 = vpop.f32.mrb[0].mxu0
        %v1173 = vpop.f32.mrb[0].mxu0
        %v1174 = vadd.f32 0.0, %v1173
        %v1175 = vpop.f32.mrb[0].mxu0
        %1176 = vmatprep.mubr.bf16.mxu0 0
        %1177 = vmatmul.mubr.bf16.gmra.mrb[0].mxu0 %v1020
        %v1178 = vpop.f32.mrb[0].mxu0
        %v1179 = vadd.f32 0.0, %v1178
        %v1180 = vpop.f32.mrb[0].mxu0
        %v1181 = vpop.f32.mrb[0].mxu0
        %v1182 = vadd.f32 0.0, %v1181
        %v1183 = vpop.f32.mrb[0].mxu0
        %1184 = vmatprep.mubr.bf16.mxu0 0
        %1185 = vmatmul.mubr.bf16.gmra.mrb[0].mxu0 %v1022
        %v1186 = vpop.f32.mrb[0].mxu0
        %v1187 = vadd.f32 0.0, %v1186
        %v1188 = vpop.f32.mrb[0].mxu0
        %v1189 = vpop.f32.mrb[0].mxu0
        %v1190 = vadd.f32 0.0, %v1189
        %v1191 = vpop.f32.mrb[0].mxu0
        %1192 = vmatprep.mubr.bf16.mxu0 0
        %1193 = vmatmul.mubr.bf16.gmra.mrb[0].mxu0 %v1024
        %v1194 = vpop.f32.mrb[0].mxu0
        %v1195 = vadd.f32 0.0, %v1194
        %v1196 = vpop.f32.mrb[0].mxu0
        %v1197 = vpop.f32.mrb[0].mxu0
        %v1198 = vadd.f32 0.0, %v1197
        %v1199 = vpop.f32.mrb[0].mxu0
        %1200 = vmatprep.mubr.bf16.mxu0 0
        %1201 = vmatmul.mubr.bf16.gmra.mrb[0].mxu0 %v1026
        %v1202 = vpop.f32.mrb[0].mxu0
        %v1203 = vadd.f32 0.0, %v1202
        %v1204 = vpop.f32.mrb[0].mxu0
        %v1205 = vpop.f32.mrb[0].mxu0
        %v1206 = vadd.f32 0.0, %v1205
        %v1207 = vpop.f32.mrb[0].mxu0
        %1208 = vdwg.mxu0
        %v1211 = vunpack.c.l.b16 %v981
        %v1212 = vunpack.c.l.b16 %v982
        %v1213 = vpack.c.b16 %v1212, %v1211
        %v1214 = vsel %vm991, %v942, 0
        %v1217 = vsel %vm1028, %v1213, 0
        %1219 = vmatprep.subr.bf16.mxu0 0
        %1220 = vmatpush1.bf16.msra.mxu0 %v1217
        %1221 = vmatprep.subr.bf16.mxu0 0
        %1222 = vmatpush1.bf16.msra.mxu0 0
        %1223 = vmatprep.subr.bf16.mxu0 0
        %1224 = vmatpush1.bf16.msra.mxu0 0
        %1225 = vmatprep.subr.bf16.mxu0 0
        %1226 = vmatpush1.bf16.msra.mxu0 0
        %1227 = vmatprep.subr.bf16.mxu0 0
        %1228 = vmatpush1.bf16.msra.mxu0 0
        %1229 = vmatprep.subr.bf16.mxu0 0
        %1230 = vmatpush1.bf16.msra.mxu0 0
        %1231 = vmatprep.subr.bf16.mxu0 0
        %1232 = vmatpush1.bf16.msra.mxu0 0
        %1233 = vmatprep.subr.bf16.mxu0 0
        %1234 = vmatpush1.bf16.msra.mxu0 0
        %1235 = vmatprep.subr.bf16.mxu0 0
        %1236 = vmatpush1.bf16.msra.mxu0 0
        %1237 = vmatprep.subr.bf16.mxu0 0
        %1238 = vmatpush1.bf16.msra.mxu0 0
        %1239 = vmatprep.subr.bf16.mxu0 0
        %1240 = vmatpush1.bf16.msra.mxu0 0
        %1241 = vmatprep.subr.bf16.mxu0 0
        %1242 = vmatpush1.bf16.msra.mxu0 0
        %1243 = vmatprep.subr.bf16.mxu0 0
        %1244 = vmatpush1.bf16.msra.mxu0 0
        %1245 = vmatprep.subr.bf16.mxu0 0
        %1246 = vmatpush1.bf16.msra.mxu0 0
        %1247 = vmatprep.subr.bf16.mxu0 0
        %1248 = vmatpush1.bf16.msra.mxu0 0
        %1249 = vmatprep.subr.bf16.mxu0 0
        %1250 = vmatpush1.bf16.msra.mxu0 0
        %1251 = vmatprep.mubr.bf16.mxu0 0
        %1252 = vmatmul.mubr.bf16.gmra.mrb[0].mxu0 %v1214
        %v1253 = vpop.f32.mrb[0].mxu0
        %v1254 = vadd.f32 %v1067, %v1253
        %v1255 = vpop.f32.mrb[0].mxu0
        %v1256 = vpop.f32.mrb[0].mxu0
        %v1257 = vadd.f32 %v1070, %v1256
        %v1258 = vpop.f32.mrb[0].mxu0
        %1259 = vmatprep.mubr.bf16.mxu0 0
        %1260 = vmatmul.mubr.bf16.gmra.mrb[0].mxu0 %v992
        %v1261 = vpop.f32.mrb[0].mxu0
        %v1262 = vadd.f32 %v1075, %v1261
        %v1263 = vpop.f32.mrb[0].mxu0
        %v1264 = vpop.f32.mrb[0].mxu0
        %v1265 = vadd.f32 %v1078, %v1264
        %v1266 = vpop.f32.mrb[0].mxu0
        %1267 = vmatprep.mubr.bf16.mxu0 0
        %1268 = vmatmul.mubr.bf16.gmra.mrb[0].mxu0 %v994
        %v1269 = vpop.f32.mrb[0].mxu0
        %v1270 = vadd.f32 %v1083, %v1269
        %v1271 = vpop.f32.mrb[0].mxu0
        %v1272 = vpop.f32.mrb[0].mxu0
        %v1273 = vadd.f32 %v1086, %v1272
        %v1274 = vpop.f32.mrb[0].mxu0
        %1275 = vmatprep.mubr.bf16.mxu0 0
        %1276 = vmatmul.mubr.bf16.gmra.mrb[0].mxu0 %v996
        %v1277 = vpop.f32.mrb[0].mxu0
        %v1278 = vadd.f32 %v1091, %v1277
        %v1279 = vpop.f32.mrb[0].mxu0
        %v1280 = vpop.f32.mrb[0].mxu0
        %v1281 = vadd.f32 %v1094, %v1280
        %v1282 = vpop.f32.mrb[0].mxu0
        %1283 = vmatprep.mubr.bf16.mxu0 0
        %1284 = vmatmul.mubr.bf16.gmra.mrb[0].mxu0 %v998
        %v1285 = vpop.f32.mrb[0].mxu0
        %v1286 = vadd.f32 %v1099, %v1285
        %v1287 = vpop.f32.mrb[0].mxu0
        %v1288 = vpop.f32.mrb[0].mxu0
        %v1289 = vadd.f32 %v1102, %v1288
        %v1290 = vpop.f32.mrb[0].mxu0
        %1291 = vmatprep.mubr.bf16.mxu0 0
        %1292 = vmatmul.mubr.bf16.gmra.mrb[0].mxu0 %v1000
        %v1293 = vpop.f32.mrb[0].mxu0
        %v1294 = vadd.f32 %v1107, %v1293
        %v1295 = vpop.f32.mrb[0].mxu0
        %v1296 = vpop.f32.mrb[0].mxu0
        %v1297 = vadd.f32 %v1110, %v1296
        %v1298 = vpop.f32.mrb[0].mxu0
        %1299 = vmatprep.mubr.bf16.mxu0 0
        %1300 = vmatmul.mubr.bf16.gmra.mrb[0].mxu0 %v1002
        %v1301 = vpop.f32.mrb[0].mxu0
        %v1302 = vadd.f32 %v1115, %v1301
        %v1303 = vpop.f32.mrb[0].mxu0
        %v1304 = vpop.f32.mrb[0].mxu0
        %v1305 = vadd.f32 %v1118, %v1304
        %v1306 = vpop.f32.mrb[0].mxu0
        %1307 = vmatprep.mubr.bf16.mxu0 0
        %1308 = vmatmul.mubr.bf16.gmra.mrb[0].mxu0 %v1004
        %v1309 = vpop.f32.mrb[0].mxu0
        %v1310 = vadd.f32 %v1123, %v1309
        %v1311 = vpop.f32.mrb[0].mxu0
        %v1312 = vpop.f32.mrb[0].mxu0
        %v1313 = vadd.f32 %v1126, %v1312
        %v1314 = vpop.f32.mrb[0].mxu0
        %1315 = vmatprep.mubr.bf16.mxu0 0
        %1316 = vmatmul.mubr.bf16.gmra.mrb[0].mxu0 %v1006
        %v1317 = vpop.f32.mrb[0].mxu0
        %v1318 = vadd.f32 %v1131, %v1317
        %v1319 = vpop.f32.mrb[0].mxu0
        %v1320 = vpop.f32.mrb[0].mxu0
        %v1321 = vadd.f32 %v1134, %v1320
        %v1322 = vpop.f32.mrb[0].mxu0
        %1323 = vmatprep.mubr.bf16.mxu0 0
        %1324 = vmatmul.mubr.bf16.gmra.mrb[0].mxu0 %v1008
        %v1325 = vpop.f32.mrb[0].mxu0
        %v1326 = vadd.f32 %v1139, %v1325
        %v1327 = vpop.f32.mrb[0].mxu0
        %v1328 = vpop.f32.mrb[0].mxu0
        %v1329 = vadd.f32 %v1142, %v1328
        %v1330 = vpop.f32.mrb[0].mxu0
        %1331 = vmatprep.mubr.bf16.mxu0 0
        %1332 = vmatmul.mubr.bf16.gmra.mrb[0].mxu0 %v1010
        %v1333 = vpop.f32.mrb[0].mxu0
        %v1334 = vadd.f32 %v1147, %v1333
        %v1335 = vpop.f32.mrb[0].mxu0
        %v1336 = vpop.f32.mrb[0].mxu0
        %v1337 = vadd.f32 %v1150, %v1336
        %v1338 = vpop.f32.mrb[0].mxu0
        %1339 = vmatprep.mubr.bf16.mxu0 0
        %1340 = vmatmul.mubr.bf16.gmra.mrb[0].mxu0 %v1012
        %v1341 = vpop.f32.mrb[0].mxu0
        %v1342 = vadd.f32 %v1155, %v1341
        %v1343 = vpop.f32.mrb[0].mxu0
        %v1344 = vpop.f32.mrb[0].mxu0
        %v1345 = vadd.f32 %v1158, %v1344
        %v1346 = vpop.f32.mrb[0].mxu0
        %1347 = vmatprep.mubr.bf16.mxu0 0
        %1348 = vmatmul.mubr.bf16.gmra.mrb[0].mxu0 %v1014
        %v1349 = vpop.f32.mrb[0].mxu0
        %v1350 = vadd.f32 %v1163, %v1349
        %v1351 = vpop.f32.mrb[0].mxu0
        %v1352 = vpop.f32.mrb[0].mxu0
        %v1353 = vadd.f32 %v1166, %v1352
        %v1354 = vpop.f32.mrb[0].mxu0
        %1355 = vmatprep.mubr.bf16.mxu0 0
        %1356 = vmatmul.mubr.bf16.gmra.mrb[0].mxu0 %v1016
        %v1357 = vpop.f32.mrb[0].mxu0
        %v1358 = vadd.f32 %v1171, %v1357
        %v1359 = vpop.f32.mrb[0].mxu0
        %v1360 = vpop.f32.mrb[0].mxu0
        %v1361 = vadd.f32 %v1174, %v1360
        %v1362 = vpop.f32.mrb[0].mxu0
        %1363 = vmatprep.mubr.bf16.mxu0 0
        %1364 = vmatmul.mubr.bf16.gmra.mrb[0].mxu0 %v1018
        %v1365 = vpop.f32.mrb[0].mxu0
        %v1366 = vadd.f32 %v1179, %v1365
        %v1367 = vpop.f32.mrb[0].mxu0
        %v1368 = vpop.f32.mrb[0].mxu0
        %v1369 = vadd.f32 %v1182, %v1368
        %v1370 = vpop.f32.mrb[0].mxu0
        %1371 = vmatprep.mubr.bf16.mxu0 0
        %1372 = vmatmul.mubr.bf16.gmra.mrb[0].mxu0 %v1020
        %v1373 = vpop.f32.mrb[0].mxu0
        %v1374 = vadd.f32 %v1187, %v1373
        %v1375 = vpop.f32.mrb[0].mxu0
        %v1376 = vpop.f32.mrb[0].mxu0
        %v1377 = vadd.f32 %v1190, %v1376
        %v1378 = vpop.f32.mrb[0].mxu0
        %1379 = vmatprep.mubr.bf16.mxu0 0
        %1380 = vmatmul.mubr.bf16.gmra.mrb[0].mxu0 %v1022
        %v1381 = vpop.f32.mrb[0].mxu0
        %v1382 = vadd.f32 %v1195, %v1381
        %v1383 = vpop.f32.mrb[0].mxu0
        %v1384 = vpop.f32.mrb[0].mxu0
        %v1385 = vadd.f32 %v1198, %v1384
        %v1386 = vpop.f32.mrb[0].mxu0
        %1387 = vmatprep.mubr.bf16.mxu0 0
        %1388 = vmatmul.mubr.bf16.gmra.mrb[0].mxu0 %v1024
        %v1389 = vpop.f32.mrb[0].mxu0
        %v1390 = vadd.f32 %v1203, %v1389
        %v1391 = vpop.f32.mrb[0].mxu0
        %v1392 = vpop.f32.mrb[0].mxu0
        %v1393 = vadd.f32 %v1206, %v1392
        %v1394 = vpop.f32.mrb[0].mxu0
        %1395 = vdwg.mxu0
        %s1396 = scalar_lea.vmem %s1, 16
        %v1397 = vld [vmem:[%s1396] sm:$0xf]
        %v1398 = vld [vmem:[%s1396 + $0x4] sm:$0x3]
        %v1401 = vunpack.c.l.b16 %v1397
        %v1402 = vunpack.c.l.b16 %v1398
        %v1403 = vpack.c.b16 %v1402, %v1401
        %v1404 = vsel %vm991, %v980, 0
        %v1407 = vsel %vm1028, %v1403, 0
        %1409 = vmatprep.subr.bf16.mxu0 0
        %1410 = vmatpush1.bf16.msra.mxu0 %v1407
        %1411 = vmatprep.subr.bf16.mxu0 0
        %1412 = vmatpush1.bf16.msra.mxu0 0
        %1413 = vmatprep.subr.bf16.mxu0 0
        %1414 = vmatpush1.bf16.msra.mxu0 0
        %1415 = vmatprep.subr.bf16.mxu0 0
        %1416 = vmatpush1.bf16.msra.mxu0 0
        %1417 = vmatprep.subr.bf16.mxu0 0
        %1418 = vmatpush1.bf16.msra.mxu0 0
        %1419 = vmatprep.subr.bf16.mxu0 0
        %1420 = vmatpush1.bf16.msra.mxu0 0
        %1421 = vmatprep.subr.bf16.mxu0 0
        %1422 = vmatpush1.bf16.msra.mxu0 0
        %1423 = vmatprep.subr.bf16.mxu0 0
        %1424 = vmatpush1.bf16.msra.mxu0 0
        %1425 = vmatprep.subr.bf16.mxu0 0
        %1426 = vmatpush1.bf16.msra.mxu0 0
        %1427 = vmatprep.subr.bf16.mxu0 0
        %1428 = vmatpush1.bf16.msra.mxu0 0
        %1429 = vmatprep.subr.bf16.mxu0 0
        %1430 = vmatpush1.bf16.msra.mxu0 0
        %1431 = vmatprep.subr.bf16.mxu0 0
        %1432 = vmatpush1.bf16.msra.mxu0 0
        %1433 = vmatprep.subr.bf16.mxu0 0
        %1434 = vmatpush1.bf16.msra.mxu0 0
        %1435 = vmatprep.subr.bf16.mxu0 0
        %1436 = vmatpush1.bf16.msra.mxu0 0
        %1437 = vmatprep.subr.bf16.mxu0 0
        %1438 = vmatpush1.bf16.msra.mxu0 0
        %1439 = vmatprep.subr.bf16.mxu0 0
        %1440 = vmatpush1.bf16.msra.mxu0 0
        %1441 = vmatprep.mubr.bf16.mxu0 0
        %1442 = vmatmul.mubr.bf16.gmra.mrb[0].mxu0 %v994
        %v1443 = vpop.f32.mrb[0].mxu0
        %v1444 = vadd.f32 0.0, %v1443
        %v1445 = vpop.f32.mrb[0].mxu0
        %v1446 = vpop.f32.mrb[0].mxu0
        %v1447 = vadd.f32 0.0, %v1446
        %v1448 = vpop.f32.mrb[0].mxu0
        %1449 = vmatprep.mubr.bf16.mxu0 0
        %1450 = vmatmul.mubr.bf16.gmra.mrb[0].mxu0 %v996
        %v1451 = vpop.f32.mrb[0].mxu0
        %v1452 = vadd.f32 0.0, %v1451
        %v1453 = vpop.f32.mrb[0].mxu0
        %v1454 = vpop.f32.mrb[0].mxu0
        %v1455 = vadd.f32 0.0, %v1454
        %v1456 = vpop.f32.mrb[0].mxu0
        %1457 = vmatprep.mubr.bf16.mxu0 0
        %1458 = vmatmul.mubr.bf16.gmra.mrb[0].mxu0 %v998
        %v1459 = vpop.f32.mrb[0].mxu0
        %v1460 = vadd.f32 0.0, %v1459
        %v1461 = vpop.f32.mrb[0].mxu0
        %v1462 = vpop.f32.mrb[0].mxu0
        %v1463 = vadd.f32 0.0, %v1462
        %v1464 = vpop.f32.mrb[0].mxu0
        %1465 = vmatprep.mubr.bf16.mxu0 0
        %1466 = vmatmul.mubr.bf16.gmra.mrb[0].mxu0 %v1000
        %v1467 = vpop.f32.mrb[0].mxu0
        %v1468 = vadd.f32 0.0, %v1467
        %v1469 = vpop.f32.mrb[0].mxu0
        %v1470 = vpop.f32.mrb[0].mxu0
        %v1471 = vadd.f32 0.0, %v1470
        %v1472 = vpop.f32.mrb[0].mxu0
        %1473 = vmatprep.mubr.bf16.mxu0 0
        %1474 = vmatmul.mubr.bf16.gmra.mrb[0].mxu0 %v1002
        %v1475 = vpop.f32.mrb[0].mxu0
        %v1476 = vadd.f32 0.0, %v1475
        %v1477 = vpop.f32.mrb[0].mxu0
        %v1478 = vpop.f32.mrb[0].mxu0
        %v1479 = vadd.f32 0.0, %v1478
        %v1480 = vpop.f32.mrb[0].mxu0
        %1481 = vmatprep.mubr.bf16.mxu0 0
        %1482 = vmatmul.mubr.bf16.gmra.mrb[0].mxu0 %v1004
        %v1483 = vpop.f32.mrb[0].mxu0
        %v1484 = vadd.f32 0.0, %v1483
        %v1485 = vpop.f32.mrb[0].mxu0
        %v1486 = vpop.f32.mrb[0].mxu0
        %v1487 = vadd.f32 0.0, %v1486
        %v1488 = vpop.f32.mrb[0].mxu0
        %1489 = vmatprep.mubr.bf16.mxu0 0
        %1490 = vmatmul.mubr.bf16.gmra.mrb[0].mxu0 %v1006
        %v1491 = vpop.f32.mrb[0].mxu0
        %v1492 = vadd.f32 0.0, %v1491
        %v1493 = vpop.f32.mrb[0].mxu0
        %v1494 = vpop.f32.mrb[0].mxu0
        %v1495 = vadd.f32 0.0, %v1494
        %v1496 = vpop.f32.mrb[0].mxu0
        %1497 = vmatprep.mubr.bf16.mxu0 0
        %1498 = vmatmul.mubr.bf16.gmra.mrb[0].mxu0 %v1008
        %v1499 = vpop.f32.mrb[0].mxu0
        %v1500 = vadd.f32 0.0, %v1499
        %v1501 = vpop.f32.mrb[0].mxu0
        %v1502 = vpop.f32.mrb[0].mxu0
        %v1503 = vadd.f32 0.0, %v1502
        %v1504 = vpop.f32.mrb[0].mxu0
        %1505 = vmatprep.mubr.bf16.mxu0 0
        %1506 = vmatmul.mubr.bf16.gmra.mrb[0].mxu0 %v1010
        %v1507 = vpop.f32.mrb[0].mxu0
        %v1508 = vadd.f32 0.0, %v1507
        %v1509 = vpop.f32.mrb[0].mxu0
        %v1510 = vpop.f32.mrb[0].mxu0
        %v1511 = vadd.f32 0.0, %v1510
        %v1512 = vpop.f32.mrb[0].mxu0
        %1513 = vmatprep.mubr.bf16.mxu0 0
        %1514 = vmatmul.mubr.bf16.gmra.mrb[0].mxu0 %v1012
        %v1515 = vpop.f32.mrb[0].mxu0
        %v1516 = vadd.f32 0.0, %v1515
        %v1517 = vpop.f32.mrb[0].mxu0
        %v1518 = vpop.f32.mrb[0].mxu0
        %v1519 = vadd.f32 0.0, %v1518
        %v1520 = vpop.f32.mrb[0].mxu0
        %1521 = vmatprep.mubr.bf16.mxu0 0
        %1522 = vmatmul.mubr.bf16.gmra.mrb[0].mxu0 %v1014
        %v1523 = vpop.f32.mrb[0].mxu0
        %v1524 = vadd.f32 0.0, %v1523
        %v1525 = vpop.f32.mrb[0].mxu0
        %v1526 = vpop.f32.mrb[0].mxu0
        %v1527 = vadd.f32 0.0, %v1526
        %v1528 = vpop.f32.mrb[0].mxu0
        %1529 = vmatprep.mubr.bf16.mxu0 0
        %1530 = vmatmul.mubr.bf16.gmra.mrb[0].mxu0 %v1016
        %v1531 = vpop.f32.mrb[0].mxu0
        %v1532 = vadd.f32 0.0, %v1531
        %v1533 = vpop.f32.mrb[0].mxu0
        %v1534 = vpop.f32.mrb[0].mxu0
        %v1535 = vadd.f32 0.0, %v1534
        %v1536 = vpop.f32.mrb[0].mxu0
        %1537 = vmatprep.mubr.bf16.mxu0 0
        %1538 = vmatmul.mubr.bf16.gmra.mrb[0].mxu0 %v1018
        %v1539 = vpop.f32.mrb[0].mxu0
        %v1540 = vadd.f32 0.0, %v1539
        %v1541 = vpop.f32.mrb[0].mxu0
        %v1542 = vpop.f32.mrb[0].mxu0
        %v1543 = vadd.f32 0.0, %v1542
        %v1544 = vpop.f32.mrb[0].mxu0
        %1545 = vmatprep.mubr.bf16.mxu0 0
        %1546 = vmatmul.mubr.bf16.gmra.mrb[0].mxu0 %v1020
        %v1547 = vpop.f32.mrb[0].mxu0
        %v1548 = vadd.f32 0.0, %v1547
        %v1549 = vpop.f32.mrb[0].mxu0
        %v1550 = vpop.f32.mrb[0].mxu0
        %v1551 = vadd.f32 0.0, %v1550
        %v1552 = vpop.f32.mrb[0].mxu0
        %1553 = vmatprep.mubr.bf16.mxu0 0
        %1554 = vmatmul.mubr.bf16.gmra.mrb[0].mxu0 %v1022
        %v1555 = vpop.f32.mrb[0].mxu0
        %v1556 = vadd.f32 0.0, %v1555
        %v1557 = vpop.f32.mrb[0].mxu0
        %v1558 = vpop.f32.mrb[0].mxu0
        %v1559 = vadd.f32 0.0, %v1558
        %v1560 = vpop.f32.mrb[0].mxu0
        %1561 = vmatprep.mubr.bf16.mxu0 0
        %1562 = vmatmul.mubr.bf16.gmra.mrb[0].mxu0 %v1024
        %v1563 = vpop.f32.mrb[0].mxu0
        %v1564 = vadd.f32 0.0, %v1563
        %v1565 = vpop.f32.mrb[0].mxu0
        %v1566 = vpop.f32.mrb[0].mxu0
        %v1567 = vadd.f32 0.0, %v1566
        %v1568 = vpop.f32.mrb[0].mxu0
        %1569 = vmatprep.mubr.bf16.mxu0 0
        %1570 = vmatmul.mubr.bf16.gmra.mrb[0].mxu0 %v1026
        %v1571 = vpop.f32.mrb[0].mxu0
        %v1572 = vadd.f32 0.0, %v1571
        %v1573 = vpop.f32.mrb[0].mxu0
        %v1574 = vpop.f32.mrb[0].mxu0
        %v1575 = vadd.f32 0.0, %v1574
        %v1576 = vpop.f32.mrb[0].mxu0
        %1577 = vmatprep.mubr.bf16.mxu0 0
        %1578 = vmatmul.mubr.bf16.gmra.mrb[0].mxu0 %v1404
        %v1579 = vpop.f32.mrb[0].mxu0
        %v1580 = vadd.f32 0.0, %v1579
        %v1581 = vpop.f32.mrb[0].mxu0
        %v1582 = vpop.f32.mrb[0].mxu0
        %v1583 = vadd.f32 0.0, %v1582
        %v1584 = vpop.f32.mrb[0].mxu0
        %1585 = vdwg.mxu0
        %v1586 = vadd.f32 %v1254, %v1444
        %v1587 = vadd.f32 %v1257, %v1447
        %v1588 = vadd.f32 %v1262, %v1452
        %v1589 = vadd.f32 %v1265, %v1455
        %v1590 = vadd.f32 %v1270, %v1460
        %v1591 = vadd.f32 %v1273, %v1463
        %v1592 = vadd.f32 %v1278, %v1468
        %v1593 = vadd.f32 %v1281, %v1471
        %v1594 = vadd.f32 %v1286, %v1476
        %v1595 = vadd.f32 %v1289, %v1479
        %v1596 = vadd.f32 %v1294, %v1484
        %v1597 = vadd.f32 %v1297, %v1487
        %v1598 = vadd.f32 %v1302, %v1492
        %v1599 = vadd.f32 %v1305, %v1495
        %v1600 = vadd.f32 %v1310, %v1500
        %v1601 = vadd.f32 %v1313, %v1503
        %v1602 = vadd.f32 %v1318, %v1508
        %v1603 = vadd.f32 %v1321, %v1511
        %v1604 = vadd.f32 %v1326, %v1516
        %v1605 = vadd.f32 %v1329, %v1519
        %v1606 = vadd.f32 %v1334, %v1524
        %v1607 = vadd.f32 %v1337, %v1527
        %v1608 = vadd.f32 %v1342, %v1532
        %v1609 = vadd.f32 %v1345, %v1535
        %v1610 = vadd.f32 %v1350, %v1540
        %v1611 = vadd.f32 %v1353, %v1543
        %v1612 = vadd.f32 %v1358, %v1548
        %v1613 = vadd.f32 %v1361, %v1551
        %v1614 = vadd.f32 %v1366, %v1556
        %v1615 = vadd.f32 %v1369, %v1559
        %v1616 = vadd.f32 %v1374, %v1564
        %v1617 = vadd.f32 %v1377, %v1567
        %v1618 = vadd.f32 %v1382, %v1572
        %v1619 = vadd.f32 %v1385, %v1575
        %v1620 = vadd.f32 %v1390, %v1580
        %v1621 = vadd.f32 %v1393, %v1583
        %v1622 = vld [vmem:[%s2] sm:$0x1]
        %v1624 = vlaneseq
        %v1625 = vshrl.u32 %v1624, 7
        %v1626 = vsub.s32 0, %v1625
        %v1627 = vrot.slane %v1622, %v1626
        %v1629 = vmul.f32 %v1586, %v1627
        %v1630 = vmul.f32 %v1587, %v1627
        %v1631 = vmul.f32 %v1588, %v1627
        %v1632 = vmul.f32 %v1589, %v1627
        %v1633 = vmul.f32 %v1590, %v1627
        %v1634 = vmul.f32 %v1591, %v1627
        %v1635 = vmul.f32 %v1592, %v1627
        %v1636 = vmul.f32 %v1593, %v1627
        %v1637 = vmul.f32 %v1594, %v1627
        %v1638 = vmul.f32 %v1595, %v1627
        %v1639 = vmul.f32 %v1596, %v1627
        %v1640 = vmul.f32 %v1597, %v1627
        %v1641 = vmul.f32 %v1598, %v1627
        %v1642 = vmul.f32 %v1599, %v1627
        %v1643 = vmul.f32 %v1600, %v1627
        %v1644 = vmul.f32 %v1601, %v1627
        %v1645 = vmul.f32 %v1602, %v1627
        %v1646 = vmul.f32 %v1603, %v1627
        %v1647 = vmul.f32 %v1604, %v1627
        %v1648 = vmul.f32 %v1605, %v1627
        %v1649 = vmul.f32 %v1606, %v1627
        %v1650 = vmul.f32 %v1607, %v1627
        %v1651 = vmul.f32 %v1608, %v1627
        %v1652 = vmul.f32 %v1609, %v1627
        %v1653 = vmul.f32 %v1610, %v1627
        %v1654 = vmul.f32 %v1611, %v1627
        %v1655 = vmul.f32 %v1612, %v1627
        %v1656 = vmul.f32 %v1613, %v1627
        %v1657 = vmul.f32 %v1614, %v1627
        %v1658 = vmul.f32 %v1615, %v1627
        %v1659 = vmul.f32 %v1616, %v1627
        %v1660 = vmul.f32 %v1617, %v1627
        %v1661 = vmul.f32 %v1618, %v1627
        %v1662 = vmul.f32 %v1619, %v1627
        %v1663 = vmul.f32 %v1620, %v1627
        %v1664 = vmul.f32 %v1621, %v1627
        %v1665 = vld [vmem:[%s3] sm:$0x1]
        %v1667 = vlaneseq
        %v1668 = vshrl.u32 %v1667, 7
        %v1669 = vsub.s32 0, %v1668
        %v1670 = vrot.slane %v1665, %v1669
        %v1672 = vadd.f32 %v1629, %v1670
        %v1673 = vadd.f32 %v1630, %v1670
        %v1674 = vadd.f32 %v1631, %v1670
        %v1675 = vadd.f32 %v1632, %v1670
        %v1676 = vadd.f32 %v1633, %v1670
        %v1677 = vadd.f32 %v1634, %v1670
        %v1678 = vadd.f32 %v1635, %v1670
        %v1679 = vadd.f32 %v1636, %v1670
        %v1680 = vadd.f32 %v1637, %v1670
        %v1681 = vadd.f32 %v1638, %v1670
        %v1682 = vadd.f32 %v1639, %v1670
        %v1683 = vadd.f32 %v1640, %v1670
        %v1684 = vadd.f32 %v1641, %v1670
        %v1685 = vadd.f32 %v1642, %v1670
        %v1686 = vadd.f32 %v1643, %v1670
        %v1687 = vadd.f32 %v1644, %v1670
        %v1688 = vadd.f32 %v1645, %v1670
        %v1689 = vadd.f32 %v1646, %v1670
        %v1690 = vadd.f32 %v1647, %v1670
        %v1691 = vadd.f32 %v1648, %v1670
        %v1692 = vadd.f32 %v1649, %v1670
        %v1693 = vadd.f32 %v1650, %v1670
        %v1694 = vadd.f32 %v1651, %v1670
        %v1695 = vadd.f32 %v1652, %v1670
        %v1696 = vadd.f32 %v1653, %v1670
        %v1697 = vadd.f32 %v1654, %v1670
        %v1698 = vadd.f32 %v1655, %v1670
        %v1699 = vadd.f32 %v1656, %v1670
        %v1700 = vadd.f32 %v1657, %v1670
        %v1701 = vadd.f32 %v1658, %v1670
        %v1702 = vadd.f32 %v1659, %v1670
        %v1703 = vadd.f32 %v1660, %v1670
        %v1704 = vadd.f32 %v1661, %v1670
        %v1705 = vadd.f32 %v1662, %v1670
        %v1706 = vadd.f32 %v1663, %v1670
        %v1707 = vadd.f32 %v1664, %v1670
        %v1708 = vmax.f32 %v1672, 0.0
        %v1709 = vmax.f32 %v1673, 0.0
        %v1710 = vmax.f32 %v1674, 0.0
        %v1711 = vmax.f32 %v1675, 0.0
        %v1712 = vmax.f32 %v1676, 0.0
        %v1713 = vmax.f32 %v1677, 0.0
        %v1714 = vmax.f32 %v1678, 0.0
        %v1715 = vmax.f32 %v1679, 0.0
        %v1716 = vmax.f32 %v1680, 0.0
        %v1717 = vmax.f32 %v1681, 0.0
        %v1718 = vmax.f32 %v1682, 0.0
        %v1719 = vmax.f32 %v1683, 0.0
        %v1720 = vmax.f32 %v1684, 0.0
        %v1721 = vmax.f32 %v1685, 0.0
        %v1722 = vmax.f32 %v1686, 0.0
        %v1723 = vmax.f32 %v1687, 0.0
        %v1724 = vmax.f32 %v1688, 0.0
        %v1725 = vmax.f32 %v1689, 0.0
        %v1726 = vmax.f32 %v1690, 0.0
        %v1727 = vmax.f32 %v1691, 0.0
        %v1728 = vmax.f32 %v1692, 0.0
        %v1729 = vmax.f32 %v1693, 0.0
        %v1730 = vmax.f32 %v1694, 0.0
        %v1731 = vmax.f32 %v1695, 0.0
        %v1732 = vmax.f32 %v1696, 0.0
        %v1733 = vmax.f32 %v1697, 0.0
        %v1734 = vmax.f32 %v1698, 0.0
        %v1735 = vmax.f32 %v1699, 0.0
        %v1736 = vmax.f32 %v1700, 0.0
        %v1737 = vmax.f32 %v1701, 0.0
        %v1738 = vmax.f32 %v1702, 0.0
        %v1739 = vmax.f32 %v1703, 0.0
        %v1740 = vmax.f32 %v1704, 0.0
        %v1741 = vmax.f32 %v1705, 0.0
        %v1742 = vmax.f32 %v1706, 0.0
        %v1743 = vmax.f32 %v1707, 0.0
        %v1744 = vpack.c.bf16 %v1709, %v1708
        %v1745 = vpack.c.bf16 %v1711, %v1710
        %v1746 = vpack.c.bf16 %v1713, %v1712
        %v1747 = vpack.c.bf16 %v1715, %v1714
        %v1748 = vpack.c.bf16 %v1717, %v1716
        %v1749 = vpack.c.bf16 %v1719, %v1718
        %v1750 = vpack.c.bf16 %v1721, %v1720
        %v1751 = vpack.c.bf16 %v1723, %v1722
        %v1752 = vpack.c.bf16 %v1725, %v1724
        %v1753 = vpack.c.bf16 %v1727, %v1726
        %v1754 = vpack.c.bf16 %v1729, %v1728
        %v1755 = vpack.c.bf16 %v1731, %v1730
        %v1756 = vpack.c.bf16 %v1733, %v1732
        %v1757 = vpack.c.bf16 %v1735, %v1734
        %v1758 = vpack.c.bf16 %v1737, %v1736
        %v1759 = vpack.c.bf16 %v1739, %v1738
        %v1760 = vpack.c.bf16 %v1741, %v1740
        %v1761 = vpack.c.bf16 %v1743, %v1742
        %v1780 = vunpack.c.l.b16 %v1744
        %v1781 = vunpack.c.h.b16 %v1744
        %v1782 = vunpack.c.l.b16 %v1745
        %v1783 = vunpack.c.h.b16 %v1745
        %v1784 = vunpack.c.l.b16 %v1746
        %v1785 = vunpack.c.h.b16 %v1746
        %v1786 = vunpack.c.l.b16 %v1747
        %v1787 = vunpack.c.h.b16 %v1747
        %v1788 = vunpack.c.l.b16 %v1748
        %v1789 = vunpack.c.h.b16 %v1748
        %v1790 = vunpack.c.l.b16 %v1749
        %v1791 = vunpack.c.h.b16 %v1749
        %v1792 = vunpack.c.l.b16 %v1750
        %v1793 = vunpack.c.h.b16 %v1750
        %v1794 = vunpack.c.l.b16 %v1751
        %v1795 = vunpack.c.h.b16 %v1751
        %v1796 = vunpack.c.l.b16 %v1752
        %v1797 = vunpack.c.h.b16 %v1752
        %v1798 = vunpack.c.l.b16 %v1753
        %v1799 = vunpack.c.h.b16 %v1753
        %v1800 = vunpack.c.l.b16 %v1754
        %v1801 = vunpack.c.h.b16 %v1754
        %v1802 = vunpack.c.l.b16 %v1755
        %v1803 = vunpack.c.h.b16 %v1755
        %v1804 = vunpack.c.l.b16 %v1756
        %v1805 = vunpack.c.h.b16 %v1756
        %v1806 = vunpack.c.l.b16 %v1757
        %v1807 = vunpack.c.h.b16 %v1757
        %v1808 = vunpack.c.l.b16 %v1758
        %v1809 = vunpack.c.h.b16 %v1758
        %v1810 = vunpack.c.l.b16 %v1759
        %v1811 = vunpack.c.h.b16 %v1759
        %v1812 = vunpack.c.l.b16 %v1760
        %v1813 = vunpack.c.h.b16 %v1760
        %v1814 = vunpack.c.l.b16 %v1761
        %v1815 = vunpack.c.h.b16 %v1761
        %v1816 = vpack.c.b16 %v1780, %v1780
        %v1817 = vpack.c.b16 %v1781, %v1781
        %v1818 = vpack.c.b16 %v1782, %v1782
        %v1819 = vpack.c.b16 %v1783, %v1783
        %v1820 = vpack.c.b16 %v1784, %v1784
        %v1821 = vpack.c.b16 %v1785, %v1785
        %v1822 = vpack.c.b16 %v1786, %v1786
        %v1823 = vpack.c.b16 %v1787, %v1787
        %v1824 = vpack.c.b16 %v1788, %v1788
        %v1825 = vpack.c.b16 %v1789, %v1789
        %v1826 = vpack.c.b16 %v1790, %v1790
        %v1827 = vpack.c.b16 %v1791, %v1791
        %v1828 = vpack.c.b16 %v1792, %v1792
        %v1829 = vpack.c.b16 %v1793, %v1793
        %v1830 = vpack.c.b16 %v1794, %v1794
        %v1831 = vpack.c.b16 %v1795, %v1795
        %v1832 = vpack.c.b16 %v1796, %v1796
        %v1833 = vpack.c.b16 %v1797, %v1797
        %v1834 = vpack.c.b16 %v1798, %v1798
        %v1835 = vpack.c.b16 %v1799, %v1799
        %v1836 = vpack.c.b16 %v1800, %v1800
        %v1837 = vpack.c.b16 %v1801, %v1801
        %v1838 = vpack.c.b16 %v1802, %v1802
        %v1839 = vpack.c.b16 %v1803, %v1803
        %v1840 = vpack.c.b16 %v1804, %v1804
        %v1841 = vpack.c.b16 %v1805, %v1805
        %v1842 = vpack.c.b16 %v1806, %v1806
        %v1843 = vpack.c.b16 %v1807, %v1807
        %v1844 = vpack.c.b16 %v1808, %v1808
        %v1845 = vpack.c.b16 %v1809, %v1809
        %v1846 = vpack.c.b16 %v1810, %v1810
        %v1847 = vpack.c.b16 %v1811, %v1811
        %v1848 = vpack.c.b16 %v1812, %v1812
        %v1849 = vpack.c.b16 %v1813, %v1813
        %v1850 = vpack.c.b16 %v1814, %v1814
        %v1851 = vpack.c.b16 %v1815, %v1815
        %vm1852 = vsmask.f32 256
        %vm1853 = vsmask.f32 4368
        %vm1854 = vmor %vm1852, %vm1853
        %v1856 = vshrl.u32 %v1816, 16
        %v1858 = vrot.slane %v1856, 7
        %v1859 = vshll.u32 %v1816, 16
        %v1861 = vor.u32 %v1858, %v1859
        %v1862 = vrot.slane %v1858, 4
        %v1864 = vshrl.u32 %v1817, 16
        %v1866 = vrot.slane %v1864, 7
        %v1867 = vshll.u32 %v1817, 16
        %v1869 = vor.u32 %v1866, %v1867
        %v1870 = vsel %vm1854, %v1862, %v1869
        %v1871 = vrot.slane %v1866, 4
        %v1873 = vshrl.u32 %v1818, 16
        %v1875 = vrot.slane %v1873, 7
        %v1876 = vshll.u32 %v1818, 16
        %v1878 = vor.u32 %v1875, %v1876
        %v1879 = vrot.slane %v1875, 4
        %v1881 = vshrl.u32 %v1819, 16
        %v1883 = vrot.slane %v1881, 7
        %v1884 = vshll.u32 %v1819, 16
        %v1886 = vor.u32 %v1883, %v1884
        %v1887 = vsel %vm1854, %v1879, %v1886
        %v1888 = vrot.slane %v1883, 4
        %v1890 = vshrl.u32 %v1820, 16
        %v1892 = vrot.slane %v1890, 7
        %v1893 = vshll.u32 %v1820, 16
        %v1895 = vor.u32 %v1892, %v1893
        %v1896 = vrot.slane %v1892, 4
        %v1898 = vshrl.u32 %v1821, 16
        %v1900 = vrot.slane %v1898, 7
        %v1901 = vshll.u32 %v1821, 16
        %v1903 = vor.u32 %v1900, %v1901
        %v1904 = vsel %vm1854, %v1896, %v1903
        %v1905 = vrot.slane %v1900, 4
        %v1907 = vshrl.u32 %v1822, 16
        %v1909 = vrot.slane %v1907, 7
        %v1910 = vshll.u32 %v1822, 16
        %v1912 = vor.u32 %v1909, %v1910
        %v1913 = vrot.slane %v1909, 4
        %v1915 = vshrl.u32 %v1823, 16
        %v1917 = vrot.slane %v1915, 7
        %v1918 = vshll.u32 %v1823, 16
        %v1920 = vor.u32 %v1917, %v1918
        %v1921 = vsel %vm1854, %v1913, %v1920
        %v1922 = vrot.slane %v1917, 4
        %v1924 = vshrl.u32 %v1824, 16
        %v1926 = vrot.slane %v1924, 7
        %v1927 = vshll.u32 %v1824, 16
        %v1929 = vor.u32 %v1926, %v1927
        %v1930 = vrot.slane %v1926, 4
        %v1932 = vshrl.u32 %v1825, 16
        %v1934 = vrot.slane %v1932, 7
        %v1935 = vshll.u32 %v1825, 16
        %v1937 = vor.u32 %v1934, %v1935
        %v1938 = vsel %vm1854, %v1930, %v1937
        %v1939 = vrot.slane %v1934, 4
        %v1941 = vshrl.u32 %v1826, 16
        %v1943 = vrot.slane %v1941, 7
        %v1944 = vshll.u32 %v1826, 16
        %v1946 = vor.u32 %v1943, %v1944
        %v1947 = vrot.slane %v1943, 4
        %v1949 = vshrl.u32 %v1827, 16
        %v1951 = vrot.slane %v1949, 7
        %v1952 = vshll.u32 %v1827, 16
        %v1954 = vor.u32 %v1951, %v1952
        %v1955 = vsel %vm1854, %v1947, %v1954
        %v1956 = vrot.slane %v1951, 4
        %v1958 = vshrl.u32 %v1828, 16
        %v1960 = vrot.slane %v1958, 7
        %v1961 = vshll.u32 %v1828, 16
        %v1963 = vor.u32 %v1960, %v1961
        %v1964 = vrot.slane %v1960, 4
        %v1966 = vshrl.u32 %v1829, 16
        %v1968 = vrot.slane %v1966, 7
        %v1969 = vshll.u32 %v1829, 16
        %v1971 = vor.u32 %v1968, %v1969
        %v1972 = vsel %vm1854, %v1964, %v1971
        %v1973 = vrot.slane %v1968, 4
        %v1975 = vshrl.u32 %v1830, 16
        %v1977 = vrot.slane %v1975, 7
        %v1978 = vshll.u32 %v1830, 16
        %v1980 = vor.u32 %v1977, %v1978
        %v1981 = vrot.slane %v1977, 4
        %v1983 = vshrl.u32 %v1831, 16
        %v1985 = vrot.slane %v1983, 7
        %v1986 = vshll.u32 %v1831, 16
        %v1988 = vor.u32 %v1985, %v1986
        %v1989 = vsel %vm1854, %v1981, %v1988
        %v1990 = vrot.slane %v1985, 4
        %v1992 = vshrl.u32 %v1832, 16
        %v1994 = vrot.slane %v1992, 7
        %v1995 = vshll.u32 %v1832, 16
        %v1997 = vor.u32 %v1994, %v1995
        %v1998 = vrot.slane %v1994, 4
        %v2000 = vshrl.u32 %v1833, 16
        %v2002 = vrot.slane %v2000, 7
        %v2003 = vshll.u32 %v1833, 16
        %v2005 = vor.u32 %v2002, %v2003
        %v2006 = vsel %vm1854, %v1998, %v2005
        %v2007 = vrot.slane %v2002, 4
        %v2009 = vshrl.u32 %v1834, 16
        %v2011 = vrot.slane %v2009, 7
        %v2012 = vshll.u32 %v1834, 16
        %v2014 = vor.u32 %v2011, %v2012
        %v2015 = vrot.slane %v2011, 4
        %v2017 = vshrl.u32 %v1835, 16
        %v2019 = vrot.slane %v2017, 7
        %v2020 = vshll.u32 %v1835, 16
        %v2022 = vor.u32 %v2019, %v2020
        %v2023 = vsel %vm1854, %v2015, %v2022
        %v2024 = vrot.slane %v2019, 4
        %v2026 = vshrl.u32 %v1836, 16
        %v2028 = vrot.slane %v2026, 7
        %v2029 = vshll.u32 %v1836, 16
        %v2031 = vor.u32 %v2028, %v2029
        %v2032 = vrot.slane %v2028, 4
        %v2034 = vshrl.u32 %v1837, 16
        %v2036 = vrot.slane %v2034, 7
        %v2037 = vshll.u32 %v1837, 16
        %v2039 = vor.u32 %v2036, %v2037
        %v2040 = vsel %vm1854, %v2032, %v2039
        %v2041 = vrot.slane %v2036, 4
        %v2043 = vshrl.u32 %v1838, 16
        %v2045 = vrot.slane %v2043, 7
        %v2046 = vshll.u32 %v1838, 16
        %v2048 = vor.u32 %v2045, %v2046
        %v2049 = vrot.slane %v2045, 4
        %v2051 = vshrl.u32 %v1839, 16
        %v2053 = vrot.slane %v2051, 7
        %v2054 = vshll.u32 %v1839, 16
        %v2056 = vor.u32 %v2053, %v2054
        %v2057 = vsel %vm1854, %v2049, %v2056
        %v2058 = vrot.slane %v2053, 4
        %v2060 = vshrl.u32 %v1840, 16
        %v2062 = vrot.slane %v2060, 7
        %v2063 = vshll.u32 %v1840, 16
        %v2065 = vor.u32 %v2062, %v2063
        %v2066 = vrot.slane %v2062, 4
        %v2068 = vshrl.u32 %v1841, 16
        %v2070 = vrot.slane %v2068, 7
        %v2071 = vshll.u32 %v1841, 16
        %v2073 = vor.u32 %v2070, %v2071
        %v2074 = vsel %vm1854, %v2066, %v2073
        %v2075 = vrot.slane %v2070, 4
        %v2077 = vshrl.u32 %v1842, 16
        %v2079 = vrot.slane %v2077, 7
        %v2080 = vshll.u32 %v1842, 16
        %v2082 = vor.u32 %v2079, %v2080
        %v2083 = vrot.slane %v2079, 4
        %v2085 = vshrl.u32 %v1843, 16
        %v2087 = vrot.slane %v2085, 7
        %v2088 = vshll.u32 %v1843, 16
        %v2090 = vor.u32 %v2087, %v2088
        %v2091 = vsel %vm1854, %v2083, %v2090
        %v2092 = vrot.slane %v2087, 4
        %v2094 = vshrl.u32 %v1844, 16
        %v2096 = vrot.slane %v2094, 7
        %v2097 = vshll.u32 %v1844, 16
        %v2099 = vor.u32 %v2096, %v2097
        %v2100 = vrot.slane %v2096, 4
        %v2102 = vshrl.u32 %v1845, 16
        %v2104 = vrot.slane %v2102, 7
        %v2105 = vshll.u32 %v1845, 16
        %v2107 = vor.u32 %v2104, %v2105
        %v2108 = vsel %vm1854, %v2100, %v2107
        %v2109 = vrot.slane %v2104, 4
        %v2111 = vshrl.u32 %v1846, 16
        %v2113 = vrot.slane %v2111, 7
        %v2114 = vshll.u32 %v1846, 16
        %v2116 = vor.u32 %v2113, %v2114
        %v2117 = vrot.slane %v2113, 4
        %v2119 = vshrl.u32 %v1847, 16
        %v2121 = vrot.slane %v2119, 7
        %v2122 = vshll.u32 %v1847, 16
        %v2124 = vor.u32 %v2121, %v2122
        %v2125 = vsel %vm1854, %v2117, %v2124
        %v2126 = vrot.slane %v2121, 4
        %v2128 = vshrl.u32 %v1848, 16
        %v2130 = vrot.slane %v2128, 7
        %v2131 = vshll.u32 %v1848, 16
        %v2133 = vor.u32 %v2130, %v2131
        %v2134 = vrot.slane %v2130, 4
        %v2136 = vshrl.u32 %v1849, 16
        %v2138 = vrot.slane %v2136, 7
        %v2139 = vshll.u32 %v1849, 16
        %v2141 = vor.u32 %v2138, %v2139
        %v2142 = vsel %vm1854, %v2134, %v2141
        %v2143 = vrot.slane %v2138, 4
        %v2145 = vshrl.u32 %v1850, 16
        %v2147 = vrot.slane %v2145, 7
        %v2148 = vshll.u32 %v1850, 16
        %v2150 = vor.u32 %v2147, %v2148
        %v2151 = vrot.slane %v2147, 4
        %v2153 = vshrl.u32 %v1851, 16
        %v2155 = vrot.slane %v2153, 7
        %v2156 = vshll.u32 %v1851, 16
        %v2158 = vor.u32 %v2155, %v2156
        %v2159 = vsel %vm1854, %v2151, %v2158
        %v2160 = vrot.slane %v2155, 4
        %vm2215 = vcmask 27648
        %vm2216 = vsmask.f32 7938
        %vm2217 = vmand %vm2215, %vm2216
        %v2218 = vld [vmem:[#allocation2] sm:$0xf]
        %v2219 = vsel %vm2217, %v1861, %v2218
        %2220 = vst [vmem:[#allocation2] sm:$0xf] %v2219
        %vm2221 = vcmask 27648
        %2222 = vst.msk [vmem:[#allocation2 + $0x4] sm:$0xf] %vm2221, %v1870
        %vm2223 = vcmask 24576
        %vm2224 = vmand %vm2223, %vm1852
        %v2225 = vld [vmem:[#allocation2 + $0x8] sm:$0x1]
        %v2226 = vsel %vm2224, %v1871, %v2225
        %2227 = vst [vmem:[#allocation2 + $0x8] sm:$0x1] %v2226
        %v2228 = vld [vmem:[#allocation2 + $0xc] sm:$0xf]
        %v2229 = vsel %vm2217, %v1878, %v2228
        %2230 = vst [vmem:[#allocation2 + $0xc] sm:$0xf] %v2229
        %2231 = vst.msk [vmem:[#allocation2 + $0x10] sm:$0xf] %vm2221, %v1887
        %v2232 = vld [vmem:[#allocation2 + $0x14] sm:$0x1]
        %v2233 = vsel %vm2224, %v1888, %v2232
        %2234 = vst [vmem:[#allocation2 + $0x14] sm:$0x1] %v2233
        %v2235 = vld [vmem:[#allocation2 + $0x18] sm:$0xf]
        %v2236 = vsel %vm2217, %v1895, %v2235
        %2237 = vst [vmem:[#allocation2 + $0x18] sm:$0xf] %v2236
        %2238 = vst.msk [vmem:[#allocation2 + $0x1c] sm:$0xf] %vm2221, %v1904
        %v2239 = vld [vmem:[#allocation2 + $0x20] sm:$0x1]
        %v2240 = vsel %vm2224, %v1905, %v2239
        %2241 = vst [vmem:[#allocation2 + $0x20] sm:$0x1] %v2240
        %v2242 = vld [vmem:[#allocation2 + $0x24] sm:$0xf]
        %v2243 = vsel %vm2217, %v1912, %v2242
        %2244 = vst [vmem:[#allocation2 + $0x24] sm:$0xf] %v2243
        %2245 = vst.msk [vmem:[#allocation2 + $0x28] sm:$0xf] %vm2221, %v1921
        %v2246 = vld [vmem:[#allocation2 + $0x2c] sm:$0x1]
        %v2247 = vsel %vm2224, %v1922, %v2246
        %2248 = vst [vmem:[#allocation2 + $0x2c] sm:$0x1] %v2247
        %v2249 = vld [vmem:[#allocation2 + $0x30] sm:$0xf]
        %v2250 = vsel %vm2217, %v1929, %v2249
        %2251 = vst [vmem:[#allocation2 + $0x30] sm:$0xf] %v2250
        %2252 = vst.msk [vmem:[#allocation2 + $0x34] sm:$0xf] %vm2221, %v1938
        %v2253 = vld [vmem:[#allocation2 + $0x38] sm:$0x1]
        %v2254 = vsel %vm2224, %v1939, %v2253
        %2255 = vst [vmem:[#allocation2 + $0x38] sm:$0x1] %v2254
        %v2256 = vld [vmem:[#allocation2 + $0x3c] sm:$0xf]
        %v2257 = vsel %vm2217, %v1946, %v2256
        %2258 = vst [vmem:[#allocation2 + $0x3c] sm:$0xf] %v2257
        %2259 = vst.msk [vmem:[#allocation2 + $0x40] sm:$0xf] %vm2221, %v1955
        %v2260 = vld [vmem:[#allocation2 + $0x44] sm:$0x1]
        %v2261 = vsel %vm2224, %v1956, %v2260
        %2262 = vst [vmem:[#allocation2 + $0x44] sm:$0x1] %v2261
        %v2263 = vld [vmem:[#allocation2 + $0x48] sm:$0xf]
        %v2264 = vsel %vm2217, %v1963, %v2263
        %2265 = vst [vmem:[#allocation2 + $0x48] sm:$0xf] %v2264
        %2266 = vst.msk [vmem:[#allocation2 + $0x4c] sm:$0xf] %vm2221, %v1972
        %v2267 = vld [vmem:[#allocation2 + $0x50] sm:$0x1]
        %v2268 = vsel %vm2224, %v1973, %v2267
        %2269 = vst [vmem:[#allocation2 + $0x50] sm:$0x1] %v2268
        %v2270 = vld [vmem:[#allocation2 + $0x54] sm:$0xf]
        %v2271 = vsel %vm2217, %v1980, %v2270
        %2272 = vst [vmem:[#allocation2 + $0x54] sm:$0xf] %v2271
        %2273 = vst.msk [vmem:[#allocation2 + $0x58] sm:$0xf] %vm2221, %v1989
        %v2274 = vld [vmem:[#allocation2 + $0x5c] sm:$0x1]
        %v2275 = vsel %vm2224, %v1990, %v2274
        %2276 = vst [vmem:[#allocation2 + $0x5c] sm:$0x1] %v2275
        %v2277 = vld [vmem:[#allocation2 + $0x60] sm:$0xf]
        %v2278 = vsel %vm2217, %v1997, %v2277
        %2279 = vst [vmem:[#allocation2 + $0x60] sm:$0xf] %v2278
        %2280 = vst.msk [vmem:[#allocation2 + $0x64] sm:$0xf] %vm2221, %v2006
        %v2281 = vld [vmem:[#allocation2 + $0x68] sm:$0x1]
        %v2282 = vsel %vm2224, %v2007, %v2281
        %2283 = vst [vmem:[#allocation2 + $0x68] sm:$0x1] %v2282
        %v2284 = vld [vmem:[#allocation2 + $0x6c] sm:$0xf]
        %v2285 = vsel %vm2217, %v2014, %v2284
        %2286 = vst [vmem:[#allocation2 + $0x6c] sm:$0xf] %v2285
        %2287 = vst.msk [vmem:[#allocation2 + $0x70] sm:$0xf] %vm2221, %v2023
        %v2288 = vld [vmem:[#allocation2 + $0x74] sm:$0x1]
        %v2289 = vsel %vm2224, %v2024, %v2288
        %2290 = vst [vmem:[#allocation2 + $0x74] sm:$0x1] %v2289
        %v2291 = vld [vmem:[#allocation2 + $0x78] sm:$0xf]
        %v2292 = vsel %vm2217, %v2031, %v2291
        %2293 = vst [vmem:[#allocation2 + $0x78] sm:$0xf] %v2292
        %2294 = vst.msk [vmem:[#allocation2 + $0x7c] sm:$0xf] %vm2221, %v2040
        %v2295 = vld [vmem:[#allocation2 + $0x80] sm:$0x1]
        %v2296 = vsel %vm2224, %v2041, %v2295
        %2297 = vst [vmem:[#allocation2 + $0x80] sm:$0x1] %v2296
        %v2298 = vld [vmem:[#allocation2 + $0x84] sm:$0xf]
        %v2299 = vsel %vm2217, %v2048, %v2298
        %2300 = vst [vmem:[#allocation2 + $0x84] sm:$0xf] %v2299
        %2301 = vst.msk [vmem:[#allocation2 + $0x88] sm:$0xf] %vm2221, %v2057
        %v2302 = vld [vmem:[#allocation2 + $0x8c] sm:$0x1]
        %v2303 = vsel %vm2224, %v2058, %v2302
        %2304 = vst [vmem:[#allocation2 + $0x8c] sm:$0x1] %v2303
        %v2305 = vld [vmem:[#allocation2 + $0x90] sm:$0xf]
        %v2306 = vsel %vm2217, %v2065, %v2305
        %2307 = vst [vmem:[#allocation2 + $0x90] sm:$0xf] %v2306
        %2308 = vst.msk [vmem:[#allocation2 + $0x94] sm:$0xf] %vm2221, %v2074
        %v2309 = vld [vmem:[#allocation2 + $0x98] sm:$0x1]
        %v2310 = vsel %vm2224, %v2075, %v2309
        %2311 = vst [vmem:[#allocation2 + $0x98] sm:$0x1] %v2310
        %v2312 = vld [vmem:[#allocation2 + $0x9c] sm:$0xf]
        %v2313 = vsel %vm2217, %v2082, %v2312
        %2314 = vst [vmem:[#allocation2 + $0x9c] sm:$0xf] %v2313
        %2315 = vst.msk [vmem:[#allocation2 + $0xa0] sm:$0xf] %vm2221, %v2091
        %v2316 = vld [vmem:[#allocation2 + $0xa4] sm:$0x1]
        %v2317 = vsel %vm2224, %v2092, %v2316
        %2318 = vst [vmem:[#allocation2 + $0xa4] sm:$0x1] %v2317
        %v2319 = vld [vmem:[#allocation2 + $0xa8] sm:$0xf]
        %v2320 = vsel %vm2217, %v2099, %v2319
        %2321 = vst [vmem:[#allocation2 + $0xa8] sm:$0xf] %v2320
        %2322 = vst.msk [vmem:[#allocation2 + $0xac] sm:$0xf] %vm2221, %v2108
        %v2323 = vld [vmem:[#allocation2 + $0xb0] sm:$0x1]
        %v2324 = vsel %vm2224, %v2109, %v2323
        %2325 = vst [vmem:[#allocation2 + $0xb0] sm:$0x1] %v2324
        %v2326 = vld [vmem:[#allocation2 + $0xb4] sm:$0xf]
        %v2327 = vsel %vm2217, %v2116, %v2326
        %2328 = vst [vmem:[#allocation2 + $0xb4] sm:$0xf] %v2327
        %2329 = vst.msk [vmem:[#allocation2 + $0xb8] sm:$0xf] %vm2221, %v2125
        %v2330 = vld [vmem:[#allocation2 + $0xbc] sm:$0x1]
        %v2331 = vsel %vm2224, %v2126, %v2330
        %2332 = vst [vmem:[#allocation2 + $0xbc] sm:$0x1] %v2331
        %v2333 = vld [vmem:[#allocation2 + $0xc0] sm:$0xf]
        %v2334 = vsel %vm2217, %v2133, %v2333
        %2335 = vst [vmem:[#allocation2 + $0xc0] sm:$0xf] %v2334
        %2336 = vst.msk [vmem:[#allocation2 + $0xc4] sm:$0xf] %vm2221, %v2142
        %v2337 = vld [vmem:[#allocation2 + $0xc8] sm:$0x1]
        %v2338 = vsel %vm2224, %v2143, %v2337
        %2339 = vst [vmem:[#allocation2 + $0xc8] sm:$0x1] %v2338
        %v2340 = vld [vmem:[#allocation2 + $0xcc] sm:$0xf]
        %v2341 = vsel %vm2217, %v2150, %v2340
        %2342 = vst [vmem:[#allocation2 + $0xcc] sm:$0xf] %v2341
        %2343 = vst.msk [vmem:[#allocation2 + $0xd0] sm:$0xf] %vm2221, %v2159
        %v2344 = vld [vmem:[#allocation2 + $0xd4] sm:$0x1]
        %v2345 = vsel %vm2224, %v2160, %v2344
        %2346 = vst [vmem:[#allocation2 + $0xd4] sm:$0x1] %v2345
        %v2347 = vld [vmem:[#allocation2] sm:$0x1]
        %v2348 = vsel %vm2224, 0, %v2347
        %2349 = vst [vmem:[#allocation2] sm:$0x1] %v2348
        %v2350 = vld [vmem:[#allocation2 + $0xc] sm:$0x1]
        %v2351 = vsel %vm2224, 0, %v2350
        %2352 = vst [vmem:[#allocation2 + $0xc] sm:$0x1] %v2351
        %v2353 = vld [vmem:[#allocation2 + $0x18] sm:$0x1]
        %v2354 = vsel %vm2224, 0, %v2353
        %2355 = vst [vmem:[#allocation2 + $0x18] sm:$0x1] %v2354
        %v2356 = vld [vmem:[#allocation2 + $0x24] sm:$0x1]
        %v2357 = vsel %vm2224, 0, %v2356
        %2358 = vst [vmem:[#allocation2 + $0x24] sm:$0x1] %v2357
        %v2359 = vld [vmem:[#allocation2 + $0x30] sm:$0x1]
        %v2360 = vsel %vm2224, 0, %v2359
        %2361 = vst [vmem:[#allocation2 + $0x30] sm:$0x1] %v2360
        %v2362 = vld [vmem:[#allocation2 + $0x3c] sm:$0x1]
        %v2363 = vsel %vm2224, 0, %v2362
        %2364 = vst [vmem:[#allocation2 + $0x3c] sm:$0x1] %v2363
        %v2365 = vld [vmem:[#allocation2 + $0x48] sm:$0x1]
        %v2366 = vsel %vm2224, 0, %v2365
        %2367 = vst [vmem:[#allocation2 + $0x48] sm:$0x1] %v2366
        %v2368 = vld [vmem:[#allocation2 + $0x54] sm:$0x1]
        %v2369 = vsel %vm2224, 0, %v2368
        %2370 = vst [vmem:[#allocation2 + $0x54] sm:$0x1] %v2369
        %v2371 = vld [vmem:[#allocation2 + $0x60] sm:$0x1]
        %v2372 = vsel %vm2224, 0, %v2371
        %2373 = vst [vmem:[#allocation2 + $0x60] sm:$0x1] %v2372
        %v2374 = vld [vmem:[#allocation2 + $0x6c] sm:$0x1]
        %v2375 = vsel %vm2224, 0, %v2374
        %2376 = vst [vmem:[#allocation2 + $0x6c] sm:$0x1] %v2375
        %v2377 = vld [vmem:[#allocation2 + $0x78] sm:$0x1]
        %v2378 = vsel %vm2224, 0, %v2377
        %2379 = vst [vmem:[#allocation2 + $0x78] sm:$0x1] %v2378
        %v2380 = vld [vmem:[#allocation2 + $0x84] sm:$0x1]
        %v2381 = vsel %vm2224, 0, %v2380
        %2382 = vst [vmem:[#allocation2 + $0x84] sm:$0x1] %v2381
        %v2383 = vld [vmem:[#allocation2 + $0x90] sm:$0x1]
        %v2384 = vsel %vm2224, 0, %v2383
        %2385 = vst [vmem:[#allocation2 + $0x90] sm:$0x1] %v2384
        %v2386 = vld [vmem:[#allocation2 + $0x9c] sm:$0x1]
        %v2387 = vsel %vm2224, 0, %v2386
        %2388 = vst [vmem:[#allocation2 + $0x9c] sm:$0x1] %v2387
        %v2389 = vld [vmem:[#allocation2 + $0xa8] sm:$0x1]
        %v2390 = vsel %vm2224, 0, %v2389
        %2391 = vst [vmem:[#allocation2 + $0xa8] sm:$0x1] %v2390
        %v2392 = vld [vmem:[#allocation2 + $0xb4] sm:$0x1]
        %v2393 = vsel %vm2224, 0, %v2392
        %2394 = vst [vmem:[#allocation2 + $0xb4] sm:$0x1] %v2393
        %v2395 = vld [vmem:[#allocation2 + $0xc0] sm:$0x1]
        %v2396 = vsel %vm2224, 0, %v2395
        %2397 = vst [vmem:[#allocation2 + $0xc0] sm:$0x1] %v2396
        %v2398 = vld [vmem:[#allocation2 + $0xcc] sm:$0x1]
        %v2399 = vsel %vm2224, 0, %v2398
        %2400 = vst [vmem:[#allocation2 + $0xcc] sm:$0x1] %v2399
        %vm2401 = vmand %vm2223, %vm2216
        %v2402 = vld [vmem:[#allocation2 + $0x8] sm:$0x1]
        %v2403 = vsel %vm2401, 0, %v2402
        %2404 = vst [vmem:[#allocation2 + $0x8] sm:$0x1] %v2403
        %v2405 = vld [vmem:[#allocation2 + $0x14] sm:$0x1]
        %v2406 = vsel %vm2401, 0, %v2405
        %2407 = vst [vmem:[#allocation2 + $0x14] sm:$0x1] %v2406
        %v2408 = vld [vmem:[#allocation2 + $0x20] sm:$0x1]
        %v2409 = vsel %vm2401, 0, %v2408
        %2410 = vst [vmem:[#allocation2 + $0x20] sm:$0x1] %v2409
        %v2411 = vld [vmem:[#allocation2 + $0x2c] sm:$0x1]
        %v2412 = vsel %vm2401, 0, %v2411
        %2413 = vst [vmem:[#allocation2 + $0x2c] sm:$0x1] %v2412
        %v2414 = vld [vmem:[#allocation2 + $0x38] sm:$0x1]
        %v2415 = vsel %vm2401, 0, %v2414
        %2416 = vst [vmem:[#allocation2 + $0x38] sm:$0x1] %v2415
        %v2417 = vld [vmem:[#allocation2 + $0x44] sm:$0x1]
        %v2418 = vsel %vm2401, 0, %v2417
        %2419 = vst [vmem:[#allocation2 + $0x44] sm:$0x1] %v2418
        %v2420 = vld [vmem:[#allocation2 + $0x50] sm:$0x1]
        %v2421 = vsel %vm2401, 0, %v2420
        %2422 = vst [vmem:[#allocation2 + $0x50] sm:$0x1] %v2421
        %v2423 = vld [vmem:[#allocation2 + $0x5c] sm:$0x1]
        %v2424 = vsel %vm2401, 0, %v2423
        %2425 = vst [vmem:[#allocation2 + $0x5c] sm:$0x1] %v2424
        %v2426 = vld [vmem:[#allocation2 + $0x68] sm:$0x1]
        %v2427 = vsel %vm2401, 0, %v2426
        %2428 = vst [vmem:[#allocation2 + $0x68] sm:$0x1] %v2427
        %v2429 = vld [vmem:[#allocation2 + $0x74] sm:$0x1]
        %v2430 = vsel %vm2401, 0, %v2429
        %2431 = vst [vmem:[#allocation2 + $0x74] sm:$0x1] %v2430
        %v2432 = vld [vmem:[#allocation2 + $0x80] sm:$0x1]
        %v2433 = vsel %vm2401, 0, %v2432
        %2434 = vst [vmem:[#allocation2 + $0x80] sm:$0x1] %v2433
        %v2435 = vld [vmem:[#allocation2 + $0x8c] sm:$0x1]
        %v2436 = vsel %vm2401, 0, %v2435
        %2437 = vst [vmem:[#allocation2 + $0x8c] sm:$0x1] %v2436
        %v2438 = vld [vmem:[#allocation2 + $0x98] sm:$0x1]
        %v2439 = vsel %vm2401, 0, %v2438
        %2440 = vst [vmem:[#allocation2 + $0x98] sm:$0x1] %v2439
        %v2441 = vld [vmem:[#allocation2 + $0xa4] sm:$0x1]
        %v2442 = vsel %vm2401, 0, %v2441
        %2443 = vst [vmem:[#allocation2 + $0xa4] sm:$0x1] %v2442
        %v2444 = vld [vmem:[#allocation2 + $0xb0] sm:$0x1]
        %v2445 = vsel %vm2401, 0, %v2444
        %2446 = vst [vmem:[#allocation2 + $0xb0] sm:$0x1] %v2445
        %v2447 = vld [vmem:[#allocation2 + $0xbc] sm:$0x1]
        %v2448 = vsel %vm2401, 0, %v2447
        %2449 = vst [vmem:[#allocation2 + $0xbc] sm:$0x1] %v2448
        %v2450 = vld [vmem:[#allocation2 + $0xc8] sm:$0x1]
        %v2451 = vsel %vm2401, 0, %v2450
        %2452 = vst [vmem:[#allocation2 + $0xc8] sm:$0x1] %v2451
        %v2453 = vld [vmem:[#allocation2 + $0xd4] sm:$0x1]
        %v2454 = vsel %vm2401, 0, %v2453
        %2455 = vst [vmem:[#allocation2 + $0xd4] sm:$0x1] %v2454
        %p2456 = scmp.eq.s32.totalorder %s26, 0
        // Predicated region
        $region49: #{tpu_custom_call.1} parent=47 // pred_check
          %p2457 = pneg %p2456
        $region50: #{tpu_custom_call.1} parent=47 // pred_check_branch
          %2459 = sbr.rel (%p2457) target = $region52
        $region51: #{tpu_custom_call.1} parent=47 // pred_region
          %2460 = vst.msk [vmem:[#allocation2] sm:$0xf] %vm2221, 0
          %2461 = vst.msk [vmem:[#allocation2 + $0x4] sm:$0xf] %vm2221, 0
          %vm2462 = vcmask 24576
          %2463 = vst.msk [vmem:[#allocation2 + $0x8] sm:$0x1] %vm2462, 0
          %s2464 = scalar_lea.vmem [#allocation2], 204
          %2465 = vst.msk [vmem:[%s2464] sm:$0xf] %vm2221, 0
          %2466 = vst.msk [vmem:[%s2464 + $0x4] sm:$0xf] %vm2221, 0
          %2467 = vst.msk [vmem:[%s2464 + $0x8] sm:$0x1] %vm2462, 0
        $region52: #{tpu_custom_call.1} parent=47 // pred_fallthru
          _
        %v2468 = vld [vmem:[#allocation2] sm:$0xf]
        %v2469 = vld [vmem:[#allocation2 + $0x4] sm:$0xf]
        %v2470 = vld [vmem:[#allocation2 + $0xc] sm:$0xf]
        %v2471 = vld [vmem:[#allocation2 + $0x10] sm:$0xf]
        %v2472 = vld [vmem:[#allocation2 + $0x18] sm:$0xf]
        %v2473 = vld [vmem:[#allocation2 + $0x1c] sm:$0xf]
        %v2474 = vld [vmem:[#allocation2 + $0x24] sm:$0xf]
        %v2475 = vld [vmem:[#allocation2 + $0x28] sm:$0xf]
        %v2476 = vld [vmem:[#allocation2 + $0x30] sm:$0xf]
        %v2477 = vld [vmem:[#allocation2 + $0x34] sm:$0xf]
        %v2478 = vld [vmem:[#allocation2 + $0x3c] sm:$0xf]
        %v2479 = vld [vmem:[#allocation2 + $0x40] sm:$0xf]
        %v2480 = vld [vmem:[#allocation2 + $0x48] sm:$0xf]
        %v2481 = vld [vmem:[#allocation2 + $0x4c] sm:$0xf]
        %v2482 = vld [vmem:[#allocation2 + $0x54] sm:$0xf]
        %v2483 = vld [vmem:[#allocation2 + $0x58] sm:$0xf]
        %v2484 = vld [vmem:[#allocation2 + $0x60] sm:$0xf]
        %v2485 = vld [vmem:[#allocation2 + $0x64] sm:$0xf]
        %v2486 = vld [vmem:[#allocation2 + $0x6c] sm:$0xf]
        %v2487 = vld [vmem:[#allocation2 + $0x70] sm:$0xf]
        %v2488 = vld [vmem:[#allocation2 + $0x78] sm:$0xf]
        %v2489 = vld [vmem:[#allocation2 + $0x7c] sm:$0xf]
        %v2490 = vld [vmem:[#allocation2 + $0x84] sm:$0xf]
        %v2491 = vld [vmem:[#allocation2 + $0x88] sm:$0xf]
        %v2492 = vld [vmem:[#allocation2 + $0x90] sm:$0xf]
        %v2493 = vld [vmem:[#allocation2 + $0x94] sm:$0xf]
        %v2494 = vld [vmem:[#allocation2 + $0x9c] sm:$0xf]
        %v2495 = vld [vmem:[#allocation2 + $0xa0] sm:$0xf]
        %v2496 = vld [vmem:[#allocation2 + $0xa8] sm:$0xf]
        %v2497 = vld [vmem:[#allocation2 + $0xac] sm:$0xf]
        %v2498 = vld [vmem:[#allocation2 + $0xb4] sm:$0xf]
        %v2499 = vld [vmem:[#allocation2 + $0xb8] sm:$0xf]
        %v2500 = vld [vmem:[#allocation2 + $0xc0] sm:$0xf]
        %v2501 = vld [vmem:[#allocation2 + $0xc4] sm:$0xf]
        %v2502 = vld [vmem:[#allocation2 + $0xcc] sm:$0xf]
        %v2503 = vld [vmem:[#allocation2 + $0xd0] sm:$0xf]
        %v2504 = vld [vmem:[#allocation2 + $0x8] sm:$0x1]
        %v2505 = vld [vmem:[#allocation2 + $0x14] sm:$0x1]
        %v2506 = vld [vmem:[#allocation2 + $0x20] sm:$0x1]
        %v2507 = vld [vmem:[#allocation2 + $0x2c] sm:$0x1]
        %v2508 = vld [vmem:[#allocation2 + $0x38] sm:$0x1]
        %v2509 = vld [vmem:[#allocation2 + $0x44] sm:$0x1]
        %v2510 = vld [vmem:[#allocation2 + $0x50] sm:$0x1]
        %v2511 = vld [vmem:[#allocation2 + $0x5c] sm:$0x1]
        %v2512 = vld [vmem:[#allocation2 + $0x68] sm:$0x1]
        %v2513 = vld [vmem:[#allocation2 + $0x74] sm:$0x1]
        %v2514 = vld [vmem:[#allocation2 + $0x80] sm:$0x1]
        %v2515 = vld [vmem:[#allocation2 + $0x8c] sm:$0x1]
        %v2516 = vld [vmem:[#allocation2 + $0x98] sm:$0x1]
        %v2517 = vld [vmem:[#allocation2 + $0xa4] sm:$0x1]
        %v2518 = vld [vmem:[#allocation2 + $0xb0] sm:$0x1]
        %v2519 = vld [vmem:[#allocation2 + $0xbc] sm:$0x1]
        %v2520 = vld [vmem:[#allocation2 + $0xc8] sm:$0x1]
        %v2521 = vld [vmem:[#allocation2 + $0xd4] sm:$0x1]
        %v2522 = vld [vmem:[#allocation2] sm:$0xe]
        %v2523 = vld [vmem:[#allocation2 + $0xc] sm:$0xe]
        %v2524 = vld [vmem:[#allocation2 + $0x18] sm:$0xe]
        %v2525 = vld [vmem:[#allocation2 + $0x24] sm:$0xe]
        %v2526 = vld [vmem:[#allocation2 + $0x30] sm:$0xe]
        %v2527 = vld [vmem:[#allocation2 + $0x3c] sm:$0xe]
        %v2528 = vld [vmem:[#allocation2 + $0x48] sm:$0xe]
        %v2529 = vld [vmem:[#allocation2 + $0x54] sm:$0xe]
        %v2530 = vld [vmem:[#allocation2 + $0x60] sm:$0xe]
        %v2531 = vld [vmem:[#allocation2 + $0x6c] sm:$0xe]
        %v2532 = vld [vmem:[#allocation2 + $0x78] sm:$0xe]
        %v2533 = vld [vmem:[#allocation2 + $0x84] sm:$0xe]
        %v2534 = vld [vmem:[#allocation2 + $0x90] sm:$0xe]
        %v2535 = vld [vmem:[#allocation2 + $0x9c] sm:$0xe]
        %v2536 = vld [vmem:[#allocation2 + $0xa8] sm:$0xe]
        %v2537 = vld [vmem:[#allocation2 + $0xb4] sm:$0xe]
        %v2538 = vld [vmem:[#allocation2 + $0xc0] sm:$0xe]
        %v2539 = vld [vmem:[#allocation2 + $0xcc] sm:$0xe]
        %v2576 = vunpack.c.l.b16 %v2468
        %v2577 = vunpack.c.l.b16 %v2469
        %v2578 = vunpack.c.l.b16 %v2470
        %v2579 = vunpack.c.l.b16 %v2471
        %v2580 = vunpack.c.l.b16 %v2472
        %v2581 = vunpack.c.l.b16 %v2473
        %v2582 = vunpack.c.l.b16 %v2474
        %v2583 = vunpack.c.l.b16 %v2475
        %v2584 = vunpack.c.l.b16 %v2476
        %v2585 = vunpack.c.l.b16 %v2477
        %v2586 = vunpack.c.l.b16 %v2478
        %v2587 = vunpack.c.l.b16 %v2479
        %v2588 = vunpack.c.l.b16 %v2480
        %v2589 = vunpack.c.l.b16 %v2481
        %v2590 = vunpack.c.l.b16 %v2482
        %v2591 = vunpack.c.l.b16 %v2483
        %v2592 = vunpack.c.l.b16 %v2484
        %v2593 = vunpack.c.l.b16 %v2485
        %v2594 = vunpack.c.l.b16 %v2486
        %v2595 = vunpack.c.l.b16 %v2487
        %v2596 = vunpack.c.l.b16 %v2488
        %v2597 = vunpack.c.l.b16 %v2489
        %v2598 = vunpack.c.l.b16 %v2490
        %v2599 = vunpack.c.l.b16 %v2491
        %v2600 = vunpack.c.l.b16 %v2492
        %v2601 = vunpack.c.l.b16 %v2493
        %v2602 = vunpack.c.l.b16 %v2494
        %v2603 = vunpack.c.l.b16 %v2495
        %v2604 = vunpack.c.l.b16 %v2496
        %v2605 = vunpack.c.l.b16 %v2497
        %v2606 = vunpack.c.l.b16 %v2498
        %v2607 = vunpack.c.l.b16 %v2499
        %v2608 = vunpack.c.l.b16 %v2500
        %v2609 = vunpack.c.l.b16 %v2501
        %v2610 = vunpack.c.l.b16 %v2502
        %v2611 = vunpack.c.l.b16 %v2503
        %v2612 = vpack.c.b16 %v2577, %v2576
        %v2613 = vpack.c.b16 %v2579, %v2578
        %v2614 = vpack.c.b16 %v2581, %v2580
        %v2615 = vpack.c.b16 %v2583, %v2582
        %v2616 = vpack.c.b16 %v2585, %v2584
        %v2617 = vpack.c.b16 %v2587, %v2586
        %v2618 = vpack.c.b16 %v2589, %v2588
        %v2619 = vpack.c.b16 %v2591, %v2590
        %v2620 = vpack.c.b16 %v2593, %v2592
        %v2621 = vpack.c.b16 %v2595, %v2594
        %v2622 = vpack.c.b16 %v2597, %v2596
        %v2623 = vpack.c.b16 %v2599, %v2598
        %v2624 = vpack.c.b16 %v2601, %v2600
        %v2625 = vpack.c.b16 %v2603, %v2602
        %v2626 = vpack.c.b16 %v2605, %v2604
        %v2627 = vpack.c.b16 %v2607, %v2606
        %v2628 = vpack.c.b16 %v2609, %v2608
        %v2629 = vpack.c.b16 %v2611, %v2610
        %v2648 = vunpack.c.l.b16 %v2504
        %v2649 = vunpack.c.l.b16 %v2505
        %v2650 = vunpack.c.l.b16 %v2506
        %v2651 = vunpack.c.l.b16 %v2507
        %v2652 = vunpack.c.l.b16 %v2508
        %v2653 = vunpack.c.l.b16 %v2509
        %v2654 = vunpack.c.l.b16 %v2510
        %v2655 = vunpack.c.l.b16 %v2511
        %v2656 = vunpack.c.l.b16 %v2512
        %v2657 = vunpack.c.l.b16 %v2513
        %v2658 = vunpack.c.l.b16 %v2514
        %v2659 = vunpack.c.l.b16 %v2515
        %v2660 = vunpack.c.l.b16 %v2516
        %v2661 = vunpack.c.l.b16 %v2517
        %v2662 = vunpack.c.l.b16 %v2518
        %v2663 = vunpack.c.l.b16 %v2519
        %v2664 = vunpack.c.l.b16 %v2520
        %v2665 = vunpack.c.l.b16 %v2521
        %v2666 = vpack.c.b16 %v2648, %v2648
        %v2667 = vpack.c.b16 %v2649, %v2649
        %v2668 = vpack.c.b16 %v2650, %v2650
        %v2669 = vpack.c.b16 %v2651, %v2651
        %v2670 = vpack.c.b16 %v2652, %v2652
        %v2671 = vpack.c.b16 %v2653, %v2653
        %v2672 = vpack.c.b16 %v2654, %v2654
        %v2673 = vpack.c.b16 %v2655, %v2655
        %v2674 = vpack.c.b16 %v2656, %v2656
        %v2675 = vpack.c.b16 %v2657, %v2657
        %v2676 = vpack.c.b16 %v2658, %v2658
        %v2677 = vpack.c.b16 %v2659, %v2659
        %v2678 = vpack.c.b16 %v2660, %v2660
        %v2679 = vpack.c.b16 %v2661, %v2661
        %v2680 = vpack.c.b16 %v2662, %v2662
        %v2681 = vpack.c.b16 %v2663, %v2663
        %v2682 = vpack.c.b16 %v2664, %v2664
        %v2683 = vpack.c.b16 %v2665, %v2665
        %v2685 = vshrl.u32 %v2612, 16
        %v2687 = vshll.u32 %v2612, 16
        %v2689 = vrot.slane %v2687, 1
        %v2690 = vor.u32 %v2685, %v2689
        %v2692 = vshll.u32 %v2666, 16
        %v2694 = vrot.slane %v2692, 1
        %v2695 = vsel %vm517, %v2690, %v2694
        %v2697 = vshrl.u32 %v2613, 16
        %v2699 = vshll.u32 %v2613, 16
        %v2701 = vrot.slane %v2699, 1
        %v2702 = vor.u32 %v2697, %v2701
        %v2704 = vshll.u32 %v2667, 16
        %v2706 = vrot.slane %v2704, 1
        %v2707 = vsel %vm517, %v2702, %v2706
        %v2709 = vshrl.u32 %v2614, 16
        %v2711 = vshll.u32 %v2614, 16
        %v2713 = vrot.slane %v2711, 1
        %v2714 = vor.u32 %v2709, %v2713
        %v2716 = vshll.u32 %v2668, 16
        %v2718 = vrot.slane %v2716, 1
        %v2719 = vsel %vm517, %v2714, %v2718
        %v2721 = vshrl.u32 %v2615, 16
        %v2723 = vshll.u32 %v2615, 16
        %v2725 = vrot.slane %v2723, 1
        %v2726 = vor.u32 %v2721, %v2725
        %v2728 = vshll.u32 %v2669, 16
        %v2730 = vrot.slane %v2728, 1
        %v2731 = vsel %vm517, %v2726, %v2730
        %v2733 = vshrl.u32 %v2616, 16
        %v2735 = vshll.u32 %v2616, 16
        %v2737 = vrot.slane %v2735, 1
        %v2738 = vor.u32 %v2733, %v2737
        %v2740 = vshll.u32 %v2670, 16
        %v2742 = vrot.slane %v2740, 1
        %v2743 = vsel %vm517, %v2738, %v2742
        %v2745 = vshrl.u32 %v2617, 16
        %v2747 = vshll.u32 %v2617, 16
        %v2749 = vrot.slane %v2747, 1
        %v2750 = vor.u32 %v2745, %v2749
        %v2752 = vshll.u32 %v2671, 16
        %v2754 = vrot.slane %v2752, 1
        %v2755 = vsel %vm517, %v2750, %v2754
        %v2757 = vshrl.u32 %v2618, 16
        %v2759 = vshll.u32 %v2618, 16
        %v2761 = vrot.slane %v2759, 1
        %v2762 = vor.u32 %v2757, %v2761
        %v2764 = vshll.u32 %v2672, 16
        %v2766 = vrot.slane %v2764, 1
        %v2767 = vsel %vm517, %v2762, %v2766
        %v2769 = vshrl.u32 %v2619, 16
        %v2771 = vshll.u32 %v2619, 16
        %v2773 = vrot.slane %v2771, 1
        %v2774 = vor.u32 %v2769, %v2773
        %v2776 = vshll.u32 %v2673, 16
        %v2778 = vrot.slane %v2776, 1
        %v2779 = vsel %vm517, %v2774, %v2778
        %v2781 = vshrl.u32 %v2620, 16
        %v2783 = vshll.u32 %v2620, 16
        %v2785 = vrot.slane %v2783, 1
        %v2786 = vor.u32 %v2781, %v2785
        %v2788 = vshll.u32 %v2674, 16
        %v2790 = vrot.slane %v2788, 1
        %v2791 = vsel %vm517, %v2786, %v2790
        %v2793 = vshrl.u32 %v2621, 16
        %v2795 = vshll.u32 %v2621, 16
        %v2797 = vrot.slane %v2795, 1
        %v2798 = vor.u32 %v2793, %v2797
        %v2800 = vshll.u32 %v2675, 16
        %v2802 = vrot.slane %v2800, 1
        %v2803 = vsel %vm517, %v2798, %v2802
        %v2805 = vshrl.u32 %v2622, 16
        %v2807 = vshll.u32 %v2622, 16
        %v2809 = vrot.slane %v2807, 1
        %v2810 = vor.u32 %v2805, %v2809
        %v2812 = vshll.u32 %v2676, 16
        %v2814 = vrot.slane %v2812, 1
        %v2815 = vsel %vm517, %v2810, %v2814
        %v2817 = vshrl.u32 %v2623, 16
        %v2819 = vshll.u32 %v2623, 16
        %v2821 = vrot.slane %v2819, 1
        %v2822 = vor.u32 %v2817, %v2821
        %v2824 = vshll.u32 %v2677, 16
        %v2826 = vrot.slane %v2824, 1
        %v2827 = vsel %vm517, %v2822, %v2826
        %v2829 = vshrl.u32 %v2624, 16
        %v2831 = vshll.u32 %v2624, 16
        %v2833 = vrot.slane %v2831, 1
        %v2834 = vor.u32 %v2829, %v2833
        %v2836 = vshll.u32 %v2678, 16
        %v2838 = vrot.slane %v2836, 1
        %v2839 = vsel %vm517, %v2834, %v2838
        %v2841 = vshrl.u32 %v2625, 16
        %v2843 = vshll.u32 %v2625, 16
        %v2845 = vrot.slane %v2843, 1
        %v2846 = vor.u32 %v2841, %v2845
        %v2848 = vshll.u32 %v2679, 16
        %v2850 = vrot.slane %v2848, 1
        %v2851 = vsel %vm517, %v2846, %v2850
        %v2853 = vshrl.u32 %v2626, 16
        %v2855 = vshll.u32 %v2626, 16
        %v2857 = vrot.slane %v2855, 1
        %v2858 = vor.u32 %v2853, %v2857
        %v2860 = vshll.u32 %v2680, 16
        %v2862 = vrot.slane %v2860, 1
        %v2863 = vsel %vm517, %v2858, %v2862
        %v2865 = vshrl.u32 %v2627, 16
        %v2867 = vshll.u32 %v2627, 16
        %v2869 = vrot.slane %v2867, 1
        %v2870 = vor.u32 %v2865, %v2869
        %v2872 = vshll.u32 %v2681, 16
        %v2874 = vrot.slane %v2872, 1
        %v2875 = vsel %vm517, %v2870, %v2874
        %v2877 = vshrl.u32 %v2628, 16
        %v2879 = vshll.u32 %v2628, 16
        %v2881 = vrot.slane %v2879, 1
        %v2882 = vor.u32 %v2877, %v2881
        %v2884 = vshll.u32 %v2682, 16
        %v2886 = vrot.slane %v2884, 1
        %v2887 = vsel %vm517, %v2882, %v2886
        %v2889 = vshrl.u32 %v2629, 16
        %v2891 = vshll.u32 %v2629, 16
        %v2893 = vrot.slane %v2891, 1
        %v2894 = vor.u32 %v2889, %v2893
        %v2896 = vshll.u32 %v2683, 16
        %v2898 = vrot.slane %v2896, 1
        %v2899 = vsel %vm517, %v2894, %v2898
        %2900 = vrot.lane.b32.xlu0 %v2695, 4
        %v2901 = vpop.permute.xlu0 %2900
        %2902 = vrot.lane.b32.xlu0 %v2707, 4
        %v2903 = vpop.permute.xlu0 %2902
        %2904 = vrot.lane.b32.xlu0 %v2719, 4
        %v2905 = vpop.permute.xlu0 %2904
        %2906 = vrot.lane.b32.xlu0 %v2731, 4
        %v2907 = vpop.permute.xlu0 %2906
        %2908 = vrot.lane.b32.xlu0 %v2743, 4
        %v2909 = vpop.permute.xlu0 %2908
        %2910 = vrot.lane.b32.xlu0 %v2755, 4
        %v2911 = vpop.permute.xlu0 %2910
        %2912 = vrot.lane.b32.xlu0 %v2767, 4
        %v2913 = vpop.permute.xlu0 %2912
        %2914 = vrot.lane.b32.xlu0 %v2779, 4
        %v2915 = vpop.permute.xlu0 %2914
        %2916 = vrot.lane.b32.xlu0 %v2791, 4
        %v2917 = vpop.permute.xlu0 %2916
        %2918 = vrot.lane.b32.xlu0 %v2803, 4
        %v2919 = vpop.permute.xlu0 %2918
        %2920 = vrot.lane.b32.xlu0 %v2815, 4
        %v2921 = vpop.permute.xlu0 %2920
        %2922 = vrot.lane.b32.xlu0 %v2827, 4
        %v2923 = vpop.permute.xlu0 %2922
        %2924 = vrot.lane.b32.xlu0 %v2839, 4
        %v2925 = vpop.permute.xlu0 %2924
        %2926 = vrot.lane.b32.xlu0 %v2851, 4
        %v2927 = vpop.permute.xlu0 %2926
        %2928 = vrot.lane.b32.xlu0 %v2863, 4
        %v2929 = vpop.permute.xlu0 %2928
        %2930 = vrot.lane.b32.xlu0 %v2875, 4
        %v2931 = vpop.permute.xlu0 %2930
        %2932 = vrot.lane.b32.xlu0 %v2887, 4
        %v2933 = vpop.permute.xlu0 %2932
        %2934 = vrot.lane.b32.xlu0 %v2899, 4
        %v2935 = vpop.permute.xlu0 %2934
        %v2954 = vunpack.c.l.b16 %v2522
        %v2955 = vunpack.c.l.b16 %v2523
        %v2956 = vunpack.c.l.b16 %v2524
        %v2957 = vunpack.c.l.b16 %v2525
        %v2958 = vunpack.c.l.b16 %v2526
        %v2959 = vunpack.c.l.b16 %v2527
        %v2960 = vunpack.c.l.b16 %v2528
        %v2961 = vunpack.c.l.b16 %v2529
        %v2962 = vunpack.c.l.b16 %v2530
        %v2963 = vunpack.c.l.b16 %v2531
        %v2964 = vunpack.c.l.b16 %v2532
        %v2965 = vunpack.c.l.b16 %v2533
        %v2966 = vunpack.c.l.b16 %v2534
        %v2967 = vunpack.c.l.b16 %v2535
        %v2968 = vunpack.c.l.b16 %v2536
        %v2969 = vunpack.c.l.b16 %v2537
        %v2970 = vunpack.c.l.b16 %v2538
        %v2971 = vunpack.c.l.b16 %v2539
        %v2972 = vpack.c.b16 %v2577, %v2954
        %v2973 = vpack.c.b16 %v2579, %v2955
        %v2974 = vpack.c.b16 %v2581, %v2956
        %v2975 = vpack.c.b16 %v2583, %v2957
        %v2976 = vpack.c.b16 %v2585, %v2958
        %v2977 = vpack.c.b16 %v2587, %v2959
        %v2978 = vpack.c.b16 %v2589, %v2960
        %v2979 = vpack.c.b16 %v2591, %v2961
        %v2980 = vpack.c.b16 %v2593, %v2962
        %v2981 = vpack.c.b16 %v2595, %v2963
        %v2982 = vpack.c.b16 %v2597, %v2964
        %v2983 = vpack.c.b16 %v2599, %v2965
        %v2984 = vpack.c.b16 %v2601, %v2966
        %v2985 = vpack.c.b16 %v2603, %v2967
        %v2986 = vpack.c.b16 %v2605, %v2968
        %v2987 = vpack.c.b16 %v2607, %v2969
        %v2988 = vpack.c.b16 %v2609, %v2970
        %v2989 = vpack.c.b16 %v2611, %v2971
        %v2990 = vrot.slane %v2972, 1
        %v2991 = vrot.slane %v2666, 1
        %v2992 = vsel %vm798, %v2990, %v2991
        %v2993 = vrot.slane %v2973, 1
        %v2994 = vrot.slane %v2667, 1
        %v2995 = vsel %vm798, %v2993, %v2994
        %v2996 = vrot.slane %v2974, 1
        %v2997 = vrot.slane %v2668, 1
        %v2998 = vsel %vm798, %v2996, %v2997
        %v2999 = vrot.slane %v2975, 1
        %v3000 = vrot.slane %v2669, 1
        %v3001 = vsel %vm798, %v2999, %v3000
        %v3002 = vrot.slane %v2976, 1
        %v3003 = vrot.slane %v2670, 1
        %v3004 = vsel %vm798, %v3002, %v3003
        %v3005 = vrot.slane %v2977, 1
        %v3006 = vrot.slane %v2671, 1
        %v3007 = vsel %vm798, %v3005, %v3006
        %v3008 = vrot.slane %v2978, 1
        %v3009 = vrot.slane %v2672, 1
        %v3010 = vsel %vm798, %v3008, %v3009
        %v3011 = vrot.slane %v2979, 1
        %v3012 = vrot.slane %v2673, 1
        %v3013 = vsel %vm798, %v3011, %v3012
        %v3014 = vrot.slane %v2980, 1
        %v3015 = vrot.slane %v2674, 1
        %v3016 = vsel %vm798, %v3014, %v3015
        %v3017 = vrot.slane %v2981, 1
        %v3018 = vrot.slane %v2675, 1
        %v3019 = vsel %vm798, %v3017, %v3018
        %v3020 = vrot.slane %v2982, 1
        %v3021 = vrot.slane %v2676, 1
        %v3022 = vsel %vm798, %v3020, %v3021
        %v3023 = vrot.slane %v2983, 1
        %v3024 = vrot.slane %v2677, 1
        %v3025 = vsel %vm798, %v3023, %v3024
        %v3026 = vrot.slane %v2984, 1
        %v3027 = vrot.slane %v2678, 1
        %v3028 = vsel %vm798, %v3026, %v3027
        %v3029 = vrot.slane %v2985, 1
        %v3030 = vrot.slane %v2679, 1
        %v3031 = vsel %vm798, %v3029, %v3030
        %v3032 = vrot.slane %v2986, 1
        %v3033 = vrot.slane %v2680, 1
        %v3034 = vsel %vm798, %v3032, %v3033
        %v3035 = vrot.slane %v2987, 1
        %v3036 = vrot.slane %v2681, 1
        %v3037 = vsel %vm798, %v3035, %v3036
        %v3038 = vrot.slane %v2988, 1
        %v3039 = vrot.slane %v2682, 1
        %v3040 = vsel %vm798, %v3038, %v3039
        %v3041 = vrot.slane %v2989, 1
        %v3042 = vrot.slane %v2683, 1
        %v3043 = vsel %vm798, %v3041, %v3042
        %3044 = vrot.lane.b32.xlu0 %v2992, 8
        %v3045 = vpop.permute.xlu0 %3044
        %3046 = vrot.lane.b32.xlu0 %v2995, 8
        %v3047 = vpop.permute.xlu0 %3046
        %3048 = vrot.lane.b32.xlu0 %v2998, 8
        %v3049 = vpop.permute.xlu0 %3048
        %3050 = vrot.lane.b32.xlu0 %v3001, 8
        %v3051 = vpop.permute.xlu0 %3050
        %3052 = vrot.lane.b32.xlu0 %v3004, 8
        %v3053 = vpop.permute.xlu0 %3052
        %3054 = vrot.lane.b32.xlu0 %v3007, 8
        %v3055 = vpop.permute.xlu0 %3054
        %3056 = vrot.lane.b32.xlu0 %v3010, 8
        %v3057 = vpop.permute.xlu0 %3056
        %3058 = vrot.lane.b32.xlu0 %v3013, 8
        %v3059 = vpop.permute.xlu0 %3058
        %3060 = vrot.lane.b32.xlu0 %v3016, 8
        %v3061 = vpop.permute.xlu0 %3060
        %3062 = vrot.lane.b32.xlu0 %v3019, 8
        %v3063 = vpop.permute.xlu0 %3062
        %3064 = vrot.lane.b32.xlu0 %v3022, 8
        %v3065 = vpop.permute.xlu0 %3064
        %3066 = vrot.lane.b32.xlu0 %v3025, 8
        %v3067 = vpop.permute.xlu0 %3066
        %3068 = vrot.lane.b32.xlu0 %v3028, 8
        %v3069 = vpop.permute.xlu0 %3068
        %3070 = vrot.lane.b32.xlu0 %v3031, 8
        %v3071 = vpop.permute.xlu0 %3070
        %3072 = vrot.lane.b32.xlu0 %v3034, 8
        %v3073 = vpop.permute.xlu0 %3072
        %3074 = vrot.lane.b32.xlu0 %v3037, 8
        %v3075 = vpop.permute.xlu0 %3074
        %3076 = vrot.lane.b32.xlu0 %v3040, 8
        %v3077 = vpop.permute.xlu0 %3076
        %3078 = vrot.lane.b32.xlu0 %v3043, 8
        %v3079 = vpop.permute.xlu0 %3078
        %v3081 = vsel %vm899, %v2612, %v2901
        %v3083 = vsel %vm899, %v2613, %v2903
        %v3085 = vsel %vm899, %v2614, %v2905
        %v3087 = vsel %vm899, %v2615, %v2907
        %v3089 = vsel %vm899, %v2616, %v2909
        %v3091 = vsel %vm899, %v2617, %v2911
        %v3093 = vsel %vm899, %v2618, %v2913
        %v3095 = vsel %vm899, %v2619, %v2915
        %v3097 = vsel %vm899, %v2620, %v2917
        %v3099 = vsel %vm899, %v2621, %v2919
        %v3101 = vsel %vm899, %v2622, %v2921
        %v3103 = vsel %vm899, %v2623, %v2923
        %v3105 = vsel %vm899, %v2624, %v2925
        %v3107 = vsel %vm899, %v2625, %v2927
        %v3109 = vsel %vm899, %v2626, %v2929
        %v3111 = vsel %vm899, %v2627, %v2931
        %v3113 = vsel %vm899, %v2628, %v2933
        %v3115 = vsel %vm899, %v2629, %v2935
        %v3117 = vsel %vm940, %v3081, %v3045
        %v3119 = vsel %vm940, %v3083, %v3047
        %v3121 = vsel %vm940, %v3085, %v3049
        %v3123 = vsel %vm940, %v3087, %v3051
        %v3125 = vsel %vm940, %v3089, %v3053
        %v3127 = vsel %vm940, %v3091, %v3055
        %v3129 = vsel %vm940, %v3093, %v3057
        %v3131 = vsel %vm940, %v3095, %v3059
        %v3133 = vsel %vm940, %v3097, %v3061
        %v3135 = vsel %vm940, %v3099, %v3063
        %v3137 = vsel %vm940, %v3101, %v3065
        %v3139 = vsel %vm940, %v3103, %v3067
        %v3141 = vsel %vm940, %v3105, %v3069
        %v3143 = vsel %vm940, %v3107, %v3071
        %v3145 = vsel %vm940, %v3109, %v3073
        %v3147 = vsel %vm940, %v3111, %v3075
        %v3149 = vsel %vm940, %v3113, %v3077
        %v3151 = vsel %vm940, %v3115, %v3079
        %v3152 = vld [vmem:[%s4] sm:$0xf]
        %v3153 = vld [vmem:[%s4 + $0x4] sm:$0x3]
        %s3154 = scalar_lea.vmem %s4, 8
        %v3155 = vld [vmem:[%s3154] sm:$0xf]
        %v3156 = vld [vmem:[%s3154 + $0x4] sm:$0x3]
        %v3159 = vunpack.c.l.b16 %v3155
        %v3160 = vunpack.c.l.b16 %v3156
        %v3161 = vpack.c.b16 %v3160, %v3159
        %v3162 = vsel %vm991, %v3119, 0
        %v3164 = vsel %vm991, %v3121, 0
        %v3166 = vsel %vm991, %v3123, 0
        %v3168 = vsel %vm991, %v3125, 0
        %v3170 = vsel %vm991, %v3127, 0
        %v3172 = vsel %vm991, %v3129, 0
        %v3174 = vsel %vm991, %v3131, 0
        %v3176 = vsel %vm991, %v3133, 0
        %v3178 = vsel %vm991, %v3135, 0
        %v3180 = vsel %vm991, %v3137, 0
        %v3182 = vsel %vm991, %v3139, 0
        %v3184 = vsel %vm991, %v3141, 0
        %v3186 = vsel %vm991, %v3143, 0
        %v3188 = vsel %vm991, %v3145, 0
        %v3190 = vsel %vm991, %v3147, 0
        %v3192 = vsel %vm991, %v3149, 0
        %v3195 = vsel %vm1028, %v3161, 0
        %3197 = vmatprep.subr.bf16.mxu0 0
        %3198 = vmatpush1.bf16.msra.mxu0 %v3195
        %3199 = vmatprep.subr.bf16.mxu0 0
        %3200 = vmatpush1.bf16.msra.mxu0 0
        %3201 = vmatprep.subr.bf16.mxu0 0
        %3202 = vmatpush1.bf16.msra.mxu0 0
        %3203 = vmatprep.subr.bf16.mxu0 0
        %3204 = vmatpush1.bf16.msra.mxu0 0
        %3205 = vmatprep.subr.bf16.mxu0 0
        %3206 = vmatpush1.bf16.msra.mxu0 0
        %3207 = vmatprep.subr.bf16.mxu0 0
        %3208 = vmatpush1.bf16.msra.mxu0 0
        %3209 = vmatprep.subr.bf16.mxu0 0
        %3210 = vmatpush1.bf16.msra.mxu0 0
        %3211 = vmatprep.subr.bf16.mxu0 0
        %3212 = vmatpush1.bf16.msra.mxu0 0
        %3213 = vmatprep.subr.bf16.mxu0 0
        %3214 = vmatpush1.bf16.msra.mxu0 0
        %3215 = vmatprep.subr.bf16.mxu0 0
        %3216 = vmatpush1.bf16.msra.mxu0 0
        %3217 = vmatprep.subr.bf16.mxu0 0
        %3218 = vmatpush1.bf16.msra.mxu0 0
        %3219 = vmatprep.subr.bf16.mxu0 0
        %3220 = vmatpush1.bf16.msra.mxu0 0
        %3221 = vmatprep.subr.bf16.mxu0 0
        %3222 = vmatpush1.bf16.msra.mxu0 0
        %3223 = vmatprep.subr.bf16.mxu0 0
        %3224 = vmatpush1.bf16.msra.mxu0 0
        %3225 = vmatprep.subr.bf16.mxu0 0
        %3226 = vmatpush1.bf16.msra.mxu0 0
        %3227 = vmatprep.subr.bf16.mxu0 0
        %3228 = vmatpush1.bf16.msra.mxu0 0
        %3229 = vmatprep.mubr.bf16.mxu0 0
        %3230 = vmatmul.mubr.bf16.gmra.mrb[0].mxu0 %v3162
        %v3231 = vpop.f32.mrb[0].mxu0
        %v3232 = vadd.f32 0.0, %v3231
        %v3233 = vpop.f32.mrb[0].mxu0
        %v3234 = vpop.f32.mrb[0].mxu0
        %v3235 = vadd.f32 0.0, %v3234
        %v3236 = vpop.f32.mrb[0].mxu0
        %3237 = vmatprep.mubr.bf16.mxu0 0
        %3238 = vmatmul.mubr.bf16.gmra.mrb[0].mxu0 %v3164
        %v3239 = vpop.f32.mrb[0].mxu0
        %v3240 = vadd.f32 0.0, %v3239
        %v3241 = vpop.f32.mrb[0].mxu0
        %v3242 = vpop.f32.mrb[0].mxu0
        %v3243 = vadd.f32 0.0, %v3242
        %v3244 = vpop.f32.mrb[0].mxu0
        %3245 = vmatprep.mubr.bf16.mxu0 0
        %3246 = vmatmul.mubr.bf16.gmra.mrb[0].mxu0 %v3166
        %v3247 = vpop.f32.mrb[0].mxu0
        %v3248 = vadd.f32 0.0, %v3247
        %v3249 = vpop.f32.mrb[0].mxu0
        %v3250 = vpop.f32.mrb[0].mxu0
        %v3251 = vadd.f32 0.0, %v3250
        %v3252 = vpop.f32.mrb[0].mxu0
        %3253 = vmatprep.mubr.bf16.mxu0 0
        %3254 = vmatmul.mubr.bf16.gmra.mrb[0].mxu0 %v3168
        %v3255 = vpop.f32.mrb[0].mxu0
        %v3256 = vadd.f32 0.0, %v3255
        %v3257 = vpop.f32.mrb[0].mxu0
        %v3258 = vpop.f32.mrb[0].mxu0
        %v3259 = vadd.f32 0.0, %v3258
        %v3260 = vpop.f32.mrb[0].mxu0
        %3261 = vmatprep.mubr.bf16.mxu0 0
        %3262 = vmatmul.mubr.bf16.gmra.mrb[0].mxu0 %v3170
        %v3263 = vpop.f32.mrb[0].mxu0
        %v3264 = vadd.f32 0.0, %v3263
        %v3265 = vpop.f32.mrb[0].mxu0
        %v3266 = vpop.f32.mrb[0].mxu0
        %v3267 = vadd.f32 0.0, %v3266
        %v3268 = vpop.f32.mrb[0].mxu0
        %3269 = vmatprep.mubr.bf16.mxu0 0
        %3270 = vmatmul.mubr.bf16.gmra.mrb[0].mxu0 %v3172
        %v3271 = vpop.f32.mrb[0].mxu0
        %v3272 = vadd.f32 0.0, %v3271
        %v3273 = vpop.f32.mrb[0].mxu0
        %v3274 = vpop.f32.mrb[0].mxu0
        %v3275 = vadd.f32 0.0, %v3274
        %v3276 = vpop.f32.mrb[0].mxu0
        %3277 = vmatprep.mubr.bf16.mxu0 0
        %3278 = vmatmul.mubr.bf16.gmra.mrb[0].mxu0 %v3174
        %v3279 = vpop.f32.mrb[0].mxu0
        %v3280 = vadd.f32 0.0, %v3279
        %v3281 = vpop.f32.mrb[0].mxu0
        %v3282 = vpop.f32.mrb[0].mxu0
        %v3283 = vadd.f32 0.0, %v3282
        %v3284 = vpop.f32.mrb[0].mxu0
        %3285 = vmatprep.mubr.bf16.mxu0 0
        %3286 = vmatmul.mubr.bf16.gmra.mrb[0].mxu0 %v3176
        %v3287 = vpop.f32.mrb[0].mxu0
        %v3288 = vadd.f32 0.0, %v3287
        %v3289 = vpop.f32.mrb[0].mxu0
        %v3290 = vpop.f32.mrb[0].mxu0
        %v3291 = vadd.f32 0.0, %v3290
        %v3292 = vpop.f32.mrb[0].mxu0
        %3293 = vmatprep.mubr.bf16.mxu0 0
        %3294 = vmatmul.mubr.bf16.gmra.mrb[0].mxu0 %v3178
        %v3295 = vpop.f32.mrb[0].mxu0
        %v3296 = vadd.f32 0.0, %v3295
        %v3297 = vpop.f32.mrb[0].mxu0
        %v3298 = vpop.f32.mrb[0].mxu0
        %v3299 = vadd.f32 0.0, %v3298
        %v3300 = vpop.f32.mrb[0].mxu0
        %3301 = vmatprep.mubr.bf16.mxu0 0
        %3302 = vmatmul.mubr.bf16.gmra.mrb[0].mxu0 %v3180
        %v3303 = vpop.f32.mrb[0].mxu0
        %v3304 = vadd.f32 0.0, %v3303
        %v3305 = vpop.f32.mrb[0].mxu0
        %v3306 = vpop.f32.mrb[0].mxu0
        %v3307 = vadd.f32 0.0, %v3306
        %v3308 = vpop.f32.mrb[0].mxu0
        %3309 = vmatprep.mubr.bf16.mxu0 0
        %3310 = vmatmul.mubr.bf16.gmra.mrb[0].mxu0 %v3182
        %v3311 = vpop.f32.mrb[0].mxu0
        %v3312 = vadd.f32 0.0, %v3311
        %v3313 = vpop.f32.mrb[0].mxu0
        %v3314 = vpop.f32.mrb[0].mxu0
        %v3315 = vadd.f32 0.0, %v3314
        %v3316 = vpop.f32.mrb[0].mxu0
        %3317 = vmatprep.mubr.bf16.mxu0 0
        %3318 = vmatmul.mubr.bf16.gmra.mrb[0].mxu0 %v3184
        %v3319 = vpop.f32.mrb[0].mxu0
        %v3320 = vadd.f32 0.0, %v3319
        %v3321 = vpop.f32.mrb[0].mxu0
        %v3322 = vpop.f32.mrb[0].mxu0
        %v3323 = vadd.f32 0.0, %v3322
        %v3324 = vpop.f32.mrb[0].mxu0
        %3325 = vmatprep.mubr.bf16.mxu0 0
        %3326 = vmatmul.mubr.bf16.gmra.mrb[0].mxu0 %v3186
        %v3327 = vpop.f32.mrb[0].mxu0
        %v3328 = vadd.f32 0.0, %v3327
        %v3329 = vpop.f32.mrb[0].mxu0
        %v3330 = vpop.f32.mrb[0].mxu0
        %v3331 = vadd.f32 0.0, %v3330
        %v3332 = vpop.f32.mrb[0].mxu0
        %3333 = vmatprep.mubr.bf16.mxu0 0
        %3334 = vmatmul.mubr.bf16.gmra.mrb[0].mxu0 %v3188
        %v3335 = vpop.f32.mrb[0].mxu0
        %v3336 = vadd.f32 0.0, %v3335
        %v3337 = vpop.f32.mrb[0].mxu0
        %v3338 = vpop.f32.mrb[0].mxu0
        %v3339 = vadd.f32 0.0, %v3338
        %v3340 = vpop.f32.mrb[0].mxu0
        %3341 = vmatprep.mubr.bf16.mxu0 0
        %3342 = vmatmul.mubr.bf16.gmra.mrb[0].mxu0 %v3190
        %v3343 = vpop.f32.mrb[0].mxu0
        %v3344 = vadd.f32 0.0, %v3343
        %v3345 = vpop.f32.mrb[0].mxu0
        %v3346 = vpop.f32.mrb[0].mxu0
        %v3347 = vadd.f32 0.0, %v3346
        %v3348 = vpop.f32.mrb[0].mxu0
        %3349 = vmatprep.mubr.bf16.mxu0 0
        %3350 = vmatmul.mubr.bf16.gmra.mrb[0].mxu0 %v3192
        %v3351 = vpop.f32.mrb[0].mxu0
        %v3352 = vadd.f32 0.0, %v3351
        %v3353 = vpop.f32.mrb[0].mxu0
        %v3354 = vpop.f32.mrb[0].mxu0
        %v3355 = vadd.f32 0.0, %v3354
        %v3356 = vpop.f32.mrb[0].mxu0
        %3357 = vdwg.mxu0
        %v3360 = vunpack.c.l.b16 %v3152
        %v3361 = vunpack.c.l.b16 %v3153
        %v3362 = vpack.c.b16 %v3361, %v3360
        %v3363 = vsel %vm991, %v3117, 0
        %v3366 = vsel %vm1028, %v3362, 0
        %3368 = vmatprep.subr.bf16.mxu0 0
        %3369 = vmatpush1.bf16.msra.mxu0 %v3366
        %3370 = vmatprep.subr.bf16.mxu0 0
        %3371 = vmatpush1.bf16.msra.mxu0 0
        %3372 = vmatprep.subr.bf16.mxu0 0
        %3373 = vmatpush1.bf16.msra.mxu0 0
        %3374 = vmatprep.subr.bf16.mxu0 0
        %3375 = vmatpush1.bf16.msra.mxu0 0
        %3376 = vmatprep.subr.bf16.mxu0 0
        %3377 = vmatpush1.bf16.msra.mxu0 0
        %3378 = vmatprep.subr.bf16.mxu0 0
        %3379 = vmatpush1.bf16.msra.mxu0 0
        %3380 = vmatprep.subr.bf16.mxu0 0
        %3381 = vmatpush1.bf16.msra.mxu0 0
        %3382 = vmatprep.subr.bf16.mxu0 0
        %3383 = vmatpush1.bf16.msra.mxu0 0
        %3384 = vmatprep.subr.bf16.mxu0 0
        %3385 = vmatpush1.bf16.msra.mxu0 0
        %3386 = vmatprep.subr.bf16.mxu0 0
        %3387 = vmatpush1.bf16.msra.mxu0 0
        %3388 = vmatprep.subr.bf16.mxu0 0
        %3389 = vmatpush1.bf16.msra.mxu0 0
        %3390 = vmatprep.subr.bf16.mxu0 0
        %3391 = vmatpush1.bf16.msra.mxu0 0
        %3392 = vmatprep.subr.bf16.mxu0 0
        %3393 = vmatpush1.bf16.msra.mxu0 0
        %3394 = vmatprep.subr.bf16.mxu0 0
        %3395 = vmatpush1.bf16.msra.mxu0 0
        %3396 = vmatprep.subr.bf16.mxu0 0
        %3397 = vmatpush1.bf16.msra.mxu0 0
        %3398 = vmatprep.subr.bf16.mxu0 0
        %3399 = vmatpush1.bf16.msra.mxu0 0
        %3400 = vmatprep.mubr.bf16.mxu0 0
        %3401 = vmatmul.mubr.bf16.gmra.mrb[0].mxu0 %v3363
        %v3402 = vpop.f32.mrb[0].mxu0
        %v3403 = vadd.f32 %v3232, %v3402
        %v3404 = vpop.f32.mrb[0].mxu0
        %v3405 = vpop.f32.mrb[0].mxu0
        %v3406 = vadd.f32 %v3235, %v3405
        %v3407 = vpop.f32.mrb[0].mxu0
        %3408 = vmatprep.mubr.bf16.mxu0 0
        %3409 = vmatmul.mubr.bf16.gmra.mrb[0].mxu0 %v3162
        %v3410 = vpop.f32.mrb[0].mxu0
        %v3411 = vadd.f32 %v3240, %v3410
        %v3412 = vpop.f32.mrb[0].mxu0
        %v3413 = vpop.f32.mrb[0].mxu0
        %v3414 = vadd.f32 %v3243, %v3413
        %v3415 = vpop.f32.mrb[0].mxu0
        %3416 = vmatprep.mubr.bf16.mxu0 0
        %3417 = vmatmul.mubr.bf16.gmra.mrb[0].mxu0 %v3164
        %v3418 = vpop.f32.mrb[0].mxu0
        %v3419 = vadd.f32 %v3248, %v3418
        %v3420 = vpop.f32.mrb[0].mxu0
        %v3421 = vpop.f32.mrb[0].mxu0
        %v3422 = vadd.f32 %v3251, %v3421
        %v3423 = vpop.f32.mrb[0].mxu0
        %3424 = vmatprep.mubr.bf16.mxu0 0
        %3425 = vmatmul.mubr.bf16.gmra.mrb[0].mxu0 %v3166
        %v3426 = vpop.f32.mrb[0].mxu0
        %v3427 = vadd.f32 %v3256, %v3426
        %v3428 = vpop.f32.mrb[0].mxu0
        %v3429 = vpop.f32.mrb[0].mxu0
        %v3430 = vadd.f32 %v3259, %v3429
        %v3431 = vpop.f32.mrb[0].mxu0
        %3432 = vmatprep.mubr.bf16.mxu0 0
        %3433 = vmatmul.mubr.bf16.gmra.mrb[0].mxu0 %v3168
        %v3434 = vpop.f32.mrb[0].mxu0
        %v3435 = vadd.f32 %v3264, %v3434
        %v3436 = vpop.f32.mrb[0].mxu0
        %v3437 = vpop.f32.mrb[0].mxu0
        %v3438 = vadd.f32 %v3267, %v3437
        %v3439 = vpop.f32.mrb[0].mxu0
        %3440 = vmatprep.mubr.bf16.mxu0 0
        %3441 = vmatmul.mubr.bf16.gmra.mrb[0].mxu0 %v3170
        %v3442 = vpop.f32.mrb[0].mxu0
        %v3443 = vadd.f32 %v3272, %v3442
        %v3444 = vpop.f32.mrb[0].mxu0
        %v3445 = vpop.f32.mrb[0].mxu0
        %v3446 = vadd.f32 %v3275, %v3445
        %v3447 = vpop.f32.mrb[0].mxu0
        %3448 = vmatprep.mubr.bf16.mxu0 0
        %3449 = vmatmul.mubr.bf16.gmra.mrb[0].mxu0 %v3172
        %v3450 = vpop.f32.mrb[0].mxu0
        %v3451 = vadd.f32 %v3280, %v3450
        %v3452 = vpop.f32.mrb[0].mxu0
        %v3453 = vpop.f32.mrb[0].mxu0
        %v3454 = vadd.f32 %v3283, %v3453
        %v3455 = vpop.f32.mrb[0].mxu0
        %3456 = vmatprep.mubr.bf16.mxu0 0
        %3457 = vmatmul.mubr.bf16.gmra.mrb[0].mxu0 %v3174
        %v3458 = vpop.f32.mrb[0].mxu0
        %v3459 = vadd.f32 %v3288, %v3458
        %v3460 = vpop.f32.mrb[0].mxu0
        %v3461 = vpop.f32.mrb[0].mxu0
        %v3462 = vadd.f32 %v3291, %v3461
        %v3463 = vpop.f32.mrb[0].mxu0
        %3464 = vmatprep.mubr.bf16.mxu0 0
        %3465 = vmatmul.mubr.bf16.gmra.mrb[0].mxu0 %v3176
        %v3466 = vpop.f32.mrb[0].mxu0
        %v3467 = vadd.f32 %v3296, %v3466
        %v3468 = vpop.f32.mrb[0].mxu0
        %v3469 = vpop.f32.mrb[0].mxu0
        %v3470 = vadd.f32 %v3299, %v3469
        %v3471 = vpop.f32.mrb[0].mxu0
        %3472 = vmatprep.mubr.bf16.mxu0 0
        %3473 = vmatmul.mubr.bf16.gmra.mrb[0].mxu0 %v3178
        %v3474 = vpop.f32.mrb[0].mxu0
        %v3475 = vadd.f32 %v3304, %v3474
        %v3476 = vpop.f32.mrb[0].mxu0
        %v3477 = vpop.f32.mrb[0].mxu0
        %v3478 = vadd.f32 %v3307, %v3477
        %v3479 = vpop.f32.mrb[0].mxu0
        %3480 = vmatprep.mubr.bf16.mxu0 0
        %3481 = vmatmul.mubr.bf16.gmra.mrb[0].mxu0 %v3180
        %v3482 = vpop.f32.mrb[0].mxu0
        %v3483 = vadd.f32 %v3312, %v3482
        %v3484 = vpop.f32.mrb[0].mxu0
        %v3485 = vpop.f32.mrb[0].mxu0
        %v3486 = vadd.f32 %v3315, %v3485
        %v3487 = vpop.f32.mrb[0].mxu0
        %3488 = vmatprep.mubr.bf16.mxu0 0
        %3489 = vmatmul.mubr.bf16.gmra.mrb[0].mxu0 %v3182
        %v3490 = vpop.f32.mrb[0].mxu0
        %v3491 = vadd.f32 %v3320, %v3490
        %v3492 = vpop.f32.mrb[0].mxu0
        %v3493 = vpop.f32.mrb[0].mxu0
        %v3494 = vadd.f32 %v3323, %v3493
        %v3495 = vpop.f32.mrb[0].mxu0
        %3496 = vmatprep.mubr.bf16.mxu0 0
        %3497 = vmatmul.mubr.bf16.gmra.mrb[0].mxu0 %v3184
        %v3498 = vpop.f32.mrb[0].mxu0
        %v3499 = vadd.f32 %v3328, %v3498
        %v3500 = vpop.f32.mrb[0].mxu0
        %v3501 = vpop.f32.mrb[0].mxu0
        %v3502 = vadd.f32 %v3331, %v3501
        %v3503 = vpop.f32.mrb[0].mxu0
        %3504 = vmatprep.mubr.bf16.mxu0 0
        %3505 = vmatmul.mubr.bf16.gmra.mrb[0].mxu0 %v3186
        %v3506 = vpop.f32.mrb[0].mxu0
        %v3507 = vadd.f32 %v3336, %v3506
        %v3508 = vpop.f32.mrb[0].mxu0
        %v3509 = vpop.f32.mrb[0].mxu0
        %v3510 = vadd.f32 %v3339, %v3509
        %v3511 = vpop.f32.mrb[0].mxu0
        %3512 = vmatprep.mubr.bf16.mxu0 0
        %3513 = vmatmul.mubr.bf16.gmra.mrb[0].mxu0 %v3188
        %v3514 = vpop.f32.mrb[0].mxu0
        %v3515 = vadd.f32 %v3344, %v3514
        %v3516 = vpop.f32.mrb[0].mxu0
        %v3517 = vpop.f32.mrb[0].mxu0
        %v3518 = vadd.f32 %v3347, %v3517
        %v3519 = vpop.f32.mrb[0].mxu0
        %3520 = vmatprep.mubr.bf16.mxu0 0
        %3521 = vmatmul.mubr.bf16.gmra.mrb[0].mxu0 %v3190
        %v3522 = vpop.f32.mrb[0].mxu0
        %v3523 = vadd.f32 %v3352, %v3522
        %v3524 = vpop.f32.mrb[0].mxu0
        %v3525 = vpop.f32.mrb[0].mxu0
        %v3526 = vadd.f32 %v3355, %v3525
        %v3527 = vpop.f32.mrb[0].mxu0
        %3528 = vdwg.mxu0
        %s3529 = scalar_lea.vmem %s4, 16
        %v3530 = vld [vmem:[%s3529] sm:$0xf]
        %v3531 = vld [vmem:[%s3529 + $0x4] sm:$0x3]
        %v3534 = vunpack.c.l.b16 %v3530
        %v3535 = vunpack.c.l.b16 %v3531
        %v3536 = vpack.c.b16 %v3535, %v3534
        %v3537 = vsel %vm991, %v3151, 0
        %v3540 = vsel %vm1028, %v3536, 0
        %3542 = vmatprep.subr.bf16.mxu0 0
        %3543 = vmatpush1.bf16.msra.mxu0 %v3540
        %3544 = vmatprep.subr.bf16.mxu0 0
        %3545 = vmatpush1.bf16.msra.mxu0 0
        %3546 = vmatprep.subr.bf16.mxu0 0
        %3547 = vmatpush1.bf16.msra.mxu0 0
        %3548 = vmatprep.subr.bf16.mxu0 0
        %3549 = vmatpush1.bf16.msra.mxu0 0
        %3550 = vmatprep.subr.bf16.mxu0 0
        %3551 = vmatpush1.bf16.msra.mxu0 0
        %3552 = vmatprep.subr.bf16.mxu0 0
        %3553 = vmatpush1.bf16.msra.mxu0 0
        %3554 = vmatprep.subr.bf16.mxu0 0
        %3555 = vmatpush1.bf16.msra.mxu0 0
        %3556 = vmatprep.subr.bf16.mxu0 0
        %3557 = vmatpush1.bf16.msra.mxu0 0
        %3558 = vmatprep.subr.bf16.mxu0 0
        %3559 = vmatpush1.bf16.msra.mxu0 0
        %3560 = vmatprep.subr.bf16.mxu0 0
        %3561 = vmatpush1.bf16.msra.mxu0 0
        %3562 = vmatprep.subr.bf16.mxu0 0
        %3563 = vmatpush1.bf16.msra.mxu0 0
        %3564 = vmatprep.subr.bf16.mxu0 0
        %3565 = vmatpush1.bf16.msra.mxu0 0
        %3566 = vmatprep.subr.bf16.mxu0 0
        %3567 = vmatpush1.bf16.msra.mxu0 0
        %3568 = vmatprep.subr.bf16.mxu0 0
        %3569 = vmatpush1.bf16.msra.mxu0 0
        %3570 = vmatprep.subr.bf16.mxu0 0
        %3571 = vmatpush1.bf16.msra.mxu0 0
        %3572 = vmatprep.subr.bf16.mxu0 0
        %3573 = vmatpush1.bf16.msra.mxu0 0
        %3574 = vmatprep.mubr.bf16.mxu0 0
        %3575 = vmatmul.mubr.bf16.gmra.mrb[0].mxu0 %v3164
        %v3576 = vpop.f32.mrb[0].mxu0
        %v3577 = vadd.f32 0.0, %v3576
        %v3578 = vpop.f32.mrb[0].mxu0
        %v3579 = vpop.f32.mrb[0].mxu0
        %v3580 = vadd.f32 0.0, %v3579
        %v3581 = vpop.f32.mrb[0].mxu0
        %3582 = vmatprep.mubr.bf16.mxu0 0
        %3583 = vmatmul.mubr.bf16.gmra.mrb[0].mxu0 %v3166
        %v3584 = vpop.f32.mrb[0].mxu0
        %v3585 = vadd.f32 0.0, %v3584
        %v3586 = vpop.f32.mrb[0].mxu0
        %v3587 = vpop.f32.mrb[0].mxu0
        %v3588 = vadd.f32 0.0, %v3587
        %v3589 = vpop.f32.mrb[0].mxu0
        %3590 = vmatprep.mubr.bf16.mxu0 0
        %3591 = vmatmul.mubr.bf16.gmra.mrb[0].mxu0 %v3168
        %v3592 = vpop.f32.mrb[0].mxu0
        %v3593 = vadd.f32 0.0, %v3592
        %v3594 = vpop.f32.mrb[0].mxu0
        %v3595 = vpop.f32.mrb[0].mxu0
        %v3596 = vadd.f32 0.0, %v3595
        %v3597 = vpop.f32.mrb[0].mxu0
        %3598 = vmatprep.mubr.bf16.mxu0 0
        %3599 = vmatmul.mubr.bf16.gmra.mrb[0].mxu0 %v3170
        %v3600 = vpop.f32.mrb[0].mxu0
        %v3601 = vadd.f32 0.0, %v3600
        %v3602 = vpop.f32.mrb[0].mxu0
        %v3603 = vpop.f32.mrb[0].mxu0
        %v3604 = vadd.f32 0.0, %v3603
        %v3605 = vpop.f32.mrb[0].mxu0
        %3606 = vmatprep.mubr.bf16.mxu0 0
        %3607 = vmatmul.mubr.bf16.gmra.mrb[0].mxu0 %v3172
        %v3608 = vpop.f32.mrb[0].mxu0
        %v3609 = vadd.f32 0.0, %v3608
        %v3610 = vpop.f32.mrb[0].mxu0
        %v3611 = vpop.f32.mrb[0].mxu0
        %v3612 = vadd.f32 0.0, %v3611
        %v3613 = vpop.f32.mrb[0].mxu0
        %3614 = vmatprep.mubr.bf16.mxu0 0
        %3615 = vmatmul.mubr.bf16.gmra.mrb[0].mxu0 %v3174
        %v3616 = vpop.f32.mrb[0].mxu0
        %v3617 = vadd.f32 0.0, %v3616
        %v3618 = vpop.f32.mrb[0].mxu0
        %v3619 = vpop.f32.mrb[0].mxu0
        %v3620 = vadd.f32 0.0, %v3619
        %v3621 = vpop.f32.mrb[0].mxu0
        %3622 = vmatprep.mubr.bf16.mxu0 0
        %3623 = vmatmul.mubr.bf16.gmra.mrb[0].mxu0 %v3176
        %v3624 = vpop.f32.mrb[0].mxu0
        %v3625 = vadd.f32 0.0, %v3624
        %v3626 = vpop.f32.mrb[0].mxu0
        %v3627 = vpop.f32.mrb[0].mxu0
        %v3628 = vadd.f32 0.0, %v3627
        %v3629 = vpop.f32.mrb[0].mxu0
        %3630 = vmatprep.mubr.bf16.mxu0 0
        %3631 = vmatmul.mubr.bf16.gmra.mrb[0].mxu0 %v3178
        %v3632 = vpop.f32.mrb[0].mxu0
        %v3633 = vadd.f32 0.0, %v3632
        %v3634 = vpop.f32.mrb[0].mxu0
        %v3635 = vpop.f32.mrb[0].mxu0
        %v3636 = vadd.f32 0.0, %v3635
        %v3637 = vpop.f32.mrb[0].mxu0
        %3638 = vmatprep.mubr.bf16.mxu0 0
        %3639 = vmatmul.mubr.bf16.gmra.mrb[0].mxu0 %v3180
        %v3640 = vpop.f32.mrb[0].mxu0
        %v3641 = vadd.f32 0.0, %v3640
        %v3642 = vpop.f32.mrb[0].mxu0
        %v3643 = vpop.f32.mrb[0].mxu0
        %v3644 = vadd.f32 0.0, %v3643
        %v3645 = vpop.f32.mrb[0].mxu0
        %3646 = vmatprep.mubr.bf16.mxu0 0
        %3647 = vmatmul.mubr.bf16.gmra.mrb[0].mxu0 %v3182
        %v3648 = vpop.f32.mrb[0].mxu0
        %v3649 = vadd.f32 0.0, %v3648
        %v3650 = vpop.f32.mrb[0].mxu0
        %v3651 = vpop.f32.mrb[0].mxu0
        %v3652 = vadd.f32 0.0, %v3651
        %v3653 = vpop.f32.mrb[0].mxu0
        %3654 = vmatprep.mubr.bf16.mxu0 0
        %3655 = vmatmul.mubr.bf16.gmra.mrb[0].mxu0 %v3184
        %v3656 = vpop.f32.mrb[0].mxu0
        %v3657 = vadd.f32 0.0, %v3656
        %v3658 = vpop.f32.mrb[0].mxu0
        %v3659 = vpop.f32.mrb[0].mxu0
        %v3660 = vadd.f32 0.0, %v3659
        %v3661 = vpop.f32.mrb[0].mxu0
        %3662 = vmatprep.mubr.bf16.mxu0 0
        %3663 = vmatmul.mubr.bf16.gmra.mrb[0].mxu0 %v3186
        %v3664 = vpop.f32.mrb[0].mxu0
        %v3665 = vadd.f32 0.0, %v3664
        %v3666 = vpop.f32.mrb[0].mxu0
        %v3667 = vpop.f32.mrb[0].mxu0
        %v3668 = vadd.f32 0.0, %v3667
        %v3669 = vpop.f32.mrb[0].mxu0
        %3670 = vmatprep.mubr.bf16.mxu0 0
        %3671 = vmatmul.mubr.bf16.gmra.mrb[0].mxu0 %v3188
        %v3672 = vpop.f32.mrb[0].mxu0
        %v3673 = vadd.f32 0.0, %v3672
        %v3674 = vpop.f32.mrb[0].mxu0
        %v3675 = vpop.f32.mrb[0].mxu0
        %v3676 = vadd.f32 0.0, %v3675
        %v3677 = vpop.f32.mrb[0].mxu0
        %3678 = vmatprep.mubr.bf16.mxu0 0
        %3679 = vmatmul.mubr.bf16.gmra.mrb[0].mxu0 %v3190
        %v3680 = vpop.f32.mrb[0].mxu0
        %v3681 = vadd.f32 0.0, %v3680
        %v3682 = vpop.f32.mrb[0].mxu0
        %v3683 = vpop.f32.mrb[0].mxu0
        %v3684 = vadd.f32 0.0, %v3683
        %v3685 = vpop.f32.mrb[0].mxu0
        %3686 = vmatprep.mubr.bf16.mxu0 0
        %3687 = vmatmul.mubr.bf16.gmra.mrb[0].mxu0 %v3192
        %v3688 = vpop.f32.mrb[0].mxu0
        %v3689 = vadd.f32 0.0, %v3688
        %v3690 = vpop.f32.mrb[0].mxu0
        %v3691 = vpop.f32.mrb[0].mxu0
        %v3692 = vadd.f32 0.0, %v3691
        %v3693 = vpop.f32.mrb[0].mxu0
        %3694 = vmatprep.mubr.bf16.mxu0 0
        %3695 = vmatmul.mubr.bf16.gmra.mrb[0].mxu0 %v3537
        %v3696 = vpop.f32.mrb[0].mxu0
        %v3697 = vadd.f32 0.0, %v3696
        %v3698 = vpop.f32.mrb[0].mxu0
        %v3699 = vpop.f32.mrb[0].mxu0
        %v3700 = vadd.f32 0.0, %v3699
        %v3701 = vpop.f32.mrb[0].mxu0
        %3702 = vdwg.mxu0
        %v3703 = vadd.f32 %v3403, %v3577
        %v3704 = vadd.f32 %v3406, %v3580
        %v3705 = vadd.f32 %v3411, %v3585
        %v3706 = vadd.f32 %v3414, %v3588
        %v3707 = vadd.f32 %v3419, %v3593
        %v3708 = vadd.f32 %v3422, %v3596
        %v3709 = vadd.f32 %v3427, %v3601
        %v3710 = vadd.f32 %v3430, %v3604
        %v3711 = vadd.f32 %v3435, %v3609
        %v3712 = vadd.f32 %v3438, %v3612
        %v3713 = vadd.f32 %v3443, %v3617
        %v3714 = vadd.f32 %v3446, %v3620
        %v3715 = vadd.f32 %v3451, %v3625
        %v3716 = vadd.f32 %v3454, %v3628
        %v3717 = vadd.f32 %v3459, %v3633
        %v3718 = vadd.f32 %v3462, %v3636
        %v3719 = vadd.f32 %v3467, %v3641
        %v3720 = vadd.f32 %v3470, %v3644
        %v3721 = vadd.f32 %v3475, %v3649
        %v3722 = vadd.f32 %v3478, %v3652
        %v3723 = vadd.f32 %v3483, %v3657
        %v3724 = vadd.f32 %v3486, %v3660
        %v3725 = vadd.f32 %v3491, %v3665
        %v3726 = vadd.f32 %v3494, %v3668
        %v3727 = vadd.f32 %v3499, %v3673
        %v3728 = vadd.f32 %v3502, %v3676
        %v3729 = vadd.f32 %v3507, %v3681
        %v3730 = vadd.f32 %v3510, %v3684
        %v3731 = vadd.f32 %v3515, %v3689
        %v3732 = vadd.f32 %v3518, %v3692
        %v3733 = vadd.f32 %v3523, %v3697
        %v3734 = vadd.f32 %v3526, %v3700
        %v3735 = vunpack.c.l.bf16 %v303
        %v3736 = vunpack.c.l.bf16 %v304
        %v3737 = vunpack.c.l.bf16 %v305
        %v3738 = vunpack.c.l.bf16 %v306
        %v3739 = vunpack.c.l.bf16 %v307
        %v3740 = vunpack.c.l.bf16 %v308
        %v3741 = vunpack.c.l.bf16 %v309
        %v3742 = vunpack.c.l.bf16 %v310
        %v3743 = vunpack.c.l.bf16 %v311
        %v3744 = vunpack.c.l.bf16 %v312
        %v3745 = vunpack.c.l.bf16 %v313
        %v3746 = vunpack.c.l.bf16 %v314
        %v3747 = vunpack.c.l.bf16 %v315
        %v3748 = vunpack.c.l.bf16 %v316
        %v3749 = vunpack.c.l.bf16 %v317
        %v3750 = vunpack.c.l.bf16 %v318
        %v3751 = vunpack.c.l.bf16 %v319
        %v3752 = vunpack.c.l.bf16 %v320
        %v3753 = vunpack.c.l.bf16 %v321
        %v3754 = vunpack.c.l.bf16 %v322
        %v3755 = vunpack.c.l.bf16 %v323
        %v3756 = vunpack.c.l.bf16 %v324
        %v3757 = vunpack.c.l.bf16 %v325
        %v3758 = vunpack.c.l.bf16 %v326
        %v3759 = vunpack.c.l.bf16 %v327
        %v3760 = vunpack.c.l.bf16 %v328
        %v3761 = vunpack.c.l.bf16 %v329
        %v3762 = vunpack.c.l.bf16 %v330
        %v3763 = vunpack.c.l.bf16 %v331
        %v3764 = vunpack.c.l.bf16 %v332
        %v3765 = vunpack.c.l.bf16 %v333
        %v3766 = vunpack.c.l.bf16 %v334
        %v3767 = vunpack.c.l.bf16 %v335
        %v3768 = vunpack.c.l.bf16 %v336
        %v3769 = vunpack.c.l.bf16 %v337
        %v3770 = vunpack.c.l.bf16 %v338
        %v3771 = vunpack.c.l.bf16 %v339
        %v3772 = vunpack.c.l.bf16 %v340
        %v3773 = vunpack.c.l.bf16 %v341
        %v3774 = vunpack.c.l.bf16 %v342
        %v3775 = vunpack.c.l.bf16 %v343
        %v3776 = vunpack.c.l.bf16 %v344
        %v3777 = vunpack.c.l.bf16 %v345
        %v3778 = vunpack.c.l.bf16 %v346
        %v3779 = vunpack.c.l.bf16 %v347
        %v3780 = vunpack.c.l.bf16 %v348
        %v3781 = vunpack.c.l.bf16 %v349
        %v3782 = vunpack.c.l.bf16 %v350
        %vm3831 = vcmask 1046528
        %v3832 = vrot.slane %v3735, 1
        %v3833 = vrot.slane %v3736, 1
        %v3834 = vsel %vm3831, %v3832, %v3833
        %v3835 = vrot.slane %v3737, 1
        %v3836 = vsel %vm3831, %v3833, %v3835
        %v3837 = vrot.slane %v3738, 1
        %v3838 = vrot.slane %v3739, 1
        %v3839 = vsel %vm3831, %v3837, %v3838
        %v3840 = vrot.slane %v3740, 1
        %v3841 = vsel %vm3831, %v3838, %v3840
        %v3842 = vrot.slane %v3741, 1
        %v3843 = vrot.slane %v3742, 1
        %v3844 = vsel %vm3831, %v3842, %v3843
        %v3845 = vrot.slane %v3743, 1
        %v3846 = vsel %vm3831, %v3843, %v3845
        %v3847 = vrot.slane %v3744, 1
        %v3848 = vrot.slane %v3745, 1
        %v3849 = vsel %vm3831, %v3847, %v3848
        %v3850 = vrot.slane %v3746, 1
        %v3851 = vsel %vm3831, %v3848, %v3850
        %v3852 = vrot.slane %v3747, 1
        %v3853 = vrot.slane %v3748, 1
        %v3854 = vsel %vm3831, %v3852, %v3853
        %v3855 = vrot.slane %v3749, 1
        %v3856 = vsel %vm3831, %v3853, %v3855
        %v3857 = vrot.slane %v3750, 1
        %v3858 = vrot.slane %v3751, 1
        %v3859 = vsel %vm3831, %v3857, %v3858
        %v3860 = vrot.slane %v3752, 1
        %v3861 = vsel %vm3831, %v3858, %v3860
        %v3862 = vrot.slane %v3753, 1
        %v3863 = vrot.slane %v3754, 1
        %v3864 = vsel %vm3831, %v3862, %v3863
        %v3865 = vrot.slane %v3755, 1
        %v3866 = vsel %vm3831, %v3863, %v3865
        %v3867 = vrot.slane %v3756, 1
        %v3868 = vrot.slane %v3757, 1
        %v3869 = vsel %vm3831, %v3867, %v3868
        %v3870 = vrot.slane %v3758, 1
        %v3871 = vsel %vm3831, %v3868, %v3870
        %v3872 = vrot.slane %v3759, 1
        %v3873 = vrot.slane %v3760, 1
        %v3874 = vsel %vm3831, %v3872, %v3873
        %v3875 = vrot.slane %v3761, 1
        %v3876 = vsel %vm3831, %v3873, %v3875
        %v3877 = vrot.slane %v3762, 1
        %v3878 = vrot.slane %v3763, 1
        %v3879 = vsel %vm3831, %v3877, %v3878
        %v3880 = vrot.slane %v3764, 1
        %v3881 = vsel %vm3831, %v3878, %v3880
        %v3882 = vrot.slane %v3765, 1
        %v3883 = vrot.slane %v3766, 1
        %v3884 = vsel %vm3831, %v3882, %v3883
        %v3885 = vrot.slane %v3767, 1
        %v3886 = vsel %vm3831, %v3883, %v3885
        %v3887 = vrot.slane %v3768, 1
        %v3888 = vrot.slane %v3769, 1
        %v3889 = vsel %vm3831, %v3887, %v3888
        %v3890 = vrot.slane %v3770, 1
        %v3891 = vsel %vm3831, %v3888, %v3890
        %v3892 = vrot.slane %v3771, 1
        %v3893 = vrot.slane %v3772, 1
        %v3894 = vsel %vm3831, %v3892, %v3893
        %v3895 = vrot.slane %v3773, 1
        %v3896 = vsel %vm3831, %v3893, %v3895
        %v3897 = vrot.slane %v3774, 1
        %v3898 = vrot.slane %v3775, 1
        %v3899 = vsel %vm3831, %v3897, %v3898
        %v3900 = vrot.slane %v3776, 1
        %v3901 = vsel %vm3831, %v3898, %v3900
        %v3902 = vrot.slane %v3777, 1
        %v3903 = vrot.slane %v3778, 1
        %v3904 = vsel %vm3831, %v3902, %v3903
        %v3905 = vrot.slane %v3779, 1
        %v3906 = vsel %vm3831, %v3903, %v3905
        %v3907 = vrot.slane %v3780, 1
        %v3908 = vrot.slane %v3781, 1
        %v3909 = vsel %vm3831, %v3907, %v3908
        %v3910 = vrot.slane %v3782, 1
        %v3911 = vsel %vm3831, %v3908, %v3910
        %v3944 = vld [vmem:[%s5] sm:$0x1]
        %v3946 = vlaneseq
        %v3947 = vshrl.u32 %v3946, 7
        %v3948 = vsub.s32 0, %v3947
        %v3949 = vrot.slane %v3944, %v3948
        %v3951 = vmul.f32 %v3703, %v3949
        %v3952 = vmul.f32 %v3704, %v3949
        %v3953 = vmul.f32 %v3705, %v3949
        %v3954 = vmul.f32 %v3706, %v3949
        %v3955 = vmul.f32 %v3707, %v3949
        %v3956 = vmul.f32 %v3708, %v3949
        %v3957 = vmul.f32 %v3709, %v3949
        %v3958 = vmul.f32 %v3710, %v3949
        %v3959 = vmul.f32 %v3711, %v3949
        %v3960 = vmul.f32 %v3712, %v3949
        %v3961 = vmul.f32 %v3713, %v3949
        %v3962 = vmul.f32 %v3714, %v3949
        %v3963 = vmul.f32 %v3715, %v3949
        %v3964 = vmul.f32 %v3716, %v3949
        %v3965 = vmul.f32 %v3717, %v3949
        %v3966 = vmul.f32 %v3718, %v3949
        %v3967 = vmul.f32 %v3719, %v3949
        %v3968 = vmul.f32 %v3720, %v3949
        %v3969 = vmul.f32 %v3721, %v3949
        %v3970 = vmul.f32 %v3722, %v3949
        %v3971 = vmul.f32 %v3723, %v3949
        %v3972 = vmul.f32 %v3724, %v3949
        %v3973 = vmul.f32 %v3725, %v3949
        %v3974 = vmul.f32 %v3726, %v3949
        %v3975 = vmul.f32 %v3727, %v3949
        %v3976 = vmul.f32 %v3728, %v3949
        %v3977 = vmul.f32 %v3729, %v3949
        %v3978 = vmul.f32 %v3730, %v3949
        %v3979 = vmul.f32 %v3731, %v3949
        %v3980 = vmul.f32 %v3732, %v3949
        %v3981 = vmul.f32 %v3733, %v3949
        %v3982 = vmul.f32 %v3734, %v3949
        %v3983 = vld [vmem:[%s6] sm:$0x1]
        %v3985 = vlaneseq
        %v3986 = vshrl.u32 %v3985, 7
        %v3987 = vsub.s32 0, %v3986
        %v3988 = vrot.slane %v3983, %v3987
        %v3990 = vadd.f32 %v3951, %v3988
        %v3991 = vadd.f32 %v3952, %v3988
        %v3992 = vadd.f32 %v3953, %v3988
        %v3993 = vadd.f32 %v3954, %v3988
        %v3994 = vadd.f32 %v3955, %v3988
        %v3995 = vadd.f32 %v3956, %v3988
        %v3996 = vadd.f32 %v3957, %v3988
        %v3997 = vadd.f32 %v3958, %v3988
        %v3998 = vadd.f32 %v3959, %v3988
        %v3999 = vadd.f32 %v3960, %v3988
        %v4000 = vadd.f32 %v3961, %v3988
        %v4001 = vadd.f32 %v3962, %v3988
        %v4002 = vadd.f32 %v3963, %v3988
        %v4003 = vadd.f32 %v3964, %v3988
        %v4004 = vadd.f32 %v3965, %v3988
        %v4005 = vadd.f32 %v3966, %v3988
        %v4006 = vadd.f32 %v3967, %v3988
        %v4007 = vadd.f32 %v3968, %v3988
        %v4008 = vadd.f32 %v3969, %v3988
        %v4009 = vadd.f32 %v3970, %v3988
        %v4010 = vadd.f32 %v3971, %v3988
        %v4011 = vadd.f32 %v3972, %v3988
        %v4012 = vadd.f32 %v3973, %v3988
        %v4013 = vadd.f32 %v3974, %v3988
        %v4014 = vadd.f32 %v3975, %v3988
        %v4015 = vadd.f32 %v3976, %v3988
        %v4016 = vadd.f32 %v3977, %v3988
        %v4017 = vadd.f32 %v3978, %v3988
        %v4018 = vadd.f32 %v3979, %v3988
        %v4019 = vadd.f32 %v3980, %v3988
        %v4020 = vadd.f32 %v3981, %v3988
        %v4021 = vadd.f32 %v3982, %v3988
        %v4022 = vadd.f32 %v3990, %v3834
        %v4023 = vadd.f32 %v3991, %v3836
        %v4024 = vadd.f32 %v3992, %v3839
        %v4025 = vadd.f32 %v3993, %v3841
        %v4026 = vadd.f32 %v3994, %v3844
        %v4027 = vadd.f32 %v3995, %v3846
        %v4028 = vadd.f32 %v3996, %v3849
        %v4029 = vadd.f32 %v3997, %v3851
        %v4030 = vadd.f32 %v3998, %v3854
        %v4031 = vadd.f32 %v3999, %v3856
        %v4032 = vadd.f32 %v4000, %v3859
        %v4033 = vadd.f32 %v4001, %v3861
        %v4034 = vadd.f32 %v4002, %v3864
        %v4035 = vadd.f32 %v4003, %v3866
        %v4036 = vadd.f32 %v4004, %v3869
        %v4037 = vadd.f32 %v4005, %v3871
        %v4038 = vadd.f32 %v4006, %v3874
        %v4039 = vadd.f32 %v4007, %v3876
        %v4040 = vadd.f32 %v4008, %v3879
        %v4041 = vadd.f32 %v4009, %v3881
        %v4042 = vadd.f32 %v4010, %v3884
        %v4043 = vadd.f32 %v4011, %v3886
        %v4044 = vadd.f32 %v4012, %v3889
        %v4045 = vadd.f32 %v4013, %v3891
        %v4046 = vadd.f32 %v4014, %v3894
        %v4047 = vadd.f32 %v4015, %v3896
        %v4048 = vadd.f32 %v4016, %v3899
        %v4049 = vadd.f32 %v4017, %v3901
        %v4050 = vadd.f32 %v4018, %v3904
        %v4051 = vadd.f32 %v4019, %v3906
        %v4052 = vadd.f32 %v4020, %v3909
        %v4053 = vadd.f32 %v4021, %v3911
        %v4054 = vmax.f32 %v4022, 0.0
        %v4055 = vmax.f32 %v4023, 0.0
        %v4056 = vmax.f32 %v4024, 0.0
        %v4057 = vmax.f32 %v4025, 0.0
        %v4058 = vmax.f32 %v4026, 0.0
        %v4059 = vmax.f32 %v4027, 0.0
        %v4060 = vmax.f32 %v4028, 0.0
        %v4061 = vmax.f32 %v4029, 0.0
        %v4062 = vmax.f32 %v4030, 0.0
        %v4063 = vmax.f32 %v4031, 0.0
        %v4064 = vmax.f32 %v4032, 0.0
        %v4065 = vmax.f32 %v4033, 0.0
        %v4066 = vmax.f32 %v4034, 0.0
        %v4067 = vmax.f32 %v4035, 0.0
        %v4068 = vmax.f32 %v4036, 0.0
        %v4069 = vmax.f32 %v4037, 0.0
        %v4070 = vmax.f32 %v4038, 0.0
        %v4071 = vmax.f32 %v4039, 0.0
        %v4072 = vmax.f32 %v4040, 0.0
        %v4073 = vmax.f32 %v4041, 0.0
        %v4074 = vmax.f32 %v4042, 0.0
        %v4075 = vmax.f32 %v4043, 0.0
        %v4076 = vmax.f32 %v4044, 0.0
        %v4077 = vmax.f32 %v4045, 0.0
        %v4078 = vmax.f32 %v4046, 0.0
        %v4079 = vmax.f32 %v4047, 0.0
        %v4080 = vmax.f32 %v4048, 0.0
        %v4081 = vmax.f32 %v4049, 0.0
        %v4082 = vmax.f32 %v4050, 0.0
        %v4083 = vmax.f32 %v4051, 0.0
        %v4084 = vmax.f32 %v4052, 0.0
        %v4085 = vmax.f32 %v4053, 0.0
        %v4102 = vrot.slane %v4056, 7
        %vm4103 = vcmask 1041409
        %v4104 = vsel %vm4103, %v4102, %v4054
        %v4105 = vrot.slane %v4058, 6
        %vm4106 = vcmask 1042434
        %v4107 = vsel %vm4106, %v4105, %v4104
        %v4108 = vrot.slane %v4060, 5
        %vm4109 = vcmask 1043459
        %v4110 = vsel %vm4109, %v4108, %v4107
        %v4111 = vrot.slane %v4062, 4
        %vm4112 = vcmask 1044484
        %v4113 = vsel %vm4112, %v4111, %v4110
        %v4114 = vrot.slane %v4064, 3
        %vm4115 = vcmask 1045509
        %v4116 = vsel %vm4115, %v4114, %v4113
        %v4117 = vrot.slane %v4066, 2
        %vm4118 = vcmask 1046534
        %v4119 = vsel %vm4118, %v4117, %v4116
        %v4120 = vrot.slane %v4068, 1
        %vm4121 = vcmask 1047559
        %v4122 = vsel %vm4121, %v4120, %v4119
        %v4123 = vrot.slane %v4072, 7
        %v4124 = vsel %vm4103, %v4123, %v4070
        %v4125 = vrot.slane %v4074, 6
        %v4126 = vsel %vm4106, %v4125, %v4124
        %v4127 = vrot.slane %v4076, 5
        %v4128 = vsel %vm4109, %v4127, %v4126
        %v4129 = vrot.slane %v4078, 4
        %v4130 = vsel %vm4112, %v4129, %v4128
        %v4131 = vrot.slane %v4080, 3
        %v4132 = vsel %vm4115, %v4131, %v4130
        %v4133 = vrot.slane %v4082, 2
        %v4134 = vsel %vm4118, %v4133, %v4132
        %v4135 = vrot.slane %v4084, 1
        %v4136 = vsel %vm4121, %v4135, %v4134
        %v4139 = vrot.slane %v4054, 1
        %v4140 = vsel %vm4103, %v4056, %v4139
        %v4141 = vrot.slane %v4058, 7
        %v4142 = vsel %vm4106, %v4141, %v4140
        %v4143 = vrot.slane %v4060, 6
        %v4144 = vsel %vm4109, %v4143, %v4142
        %v4145 = vrot.slane %v4062, 5
        %v4146 = vsel %vm4112, %v4145, %v4144
        %v4147 = vrot.slane %v4064, 4
        %v4148 = vsel %vm4115, %v4147, %v4146
        %v4149 = vrot.slane %v4066, 3
        %v4150 = vsel %vm4118, %v4149, %v4148
        %v4151 = vrot.slane %v4068, 2
        %v4152 = vsel %vm4121, %v4151, %v4150
        %v4153 = vrot.slane %v4070, 1
        %v4154 = vsel %vm4103, %v4072, %v4153
        %v4155 = vrot.slane %v4074, 7
        %v4156 = vsel %vm4106, %v4155, %v4154
        %v4157 = vrot.slane %v4076, 6
        %v4158 = vsel %vm4109, %v4157, %v4156
        %v4159 = vrot.slane %v4078, 5
        %v4160 = vsel %vm4112, %v4159, %v4158
        %v4161 = vrot.slane %v4080, 4
        %v4162 = vsel %vm4115, %v4161, %v4160
        %v4163 = vrot.slane %v4082, 3
        %v4164 = vsel %vm4118, %v4163, %v4162
        %v4165 = vrot.slane %v4084, 2
        %v4166 = vsel %vm4121, %v4165, %v4164
        %4167 = vrot.lane.b32.xlu0 %v4152, 4
        %v4168 = vpop.permute.xlu0 %4167
        %4169 = vrot.lane.b32.xlu0 %v4166, 4
        %v4170 = vpop.permute.xlu0 %4169
        %v4173 = vrot.slane %v4054, 2
        %v4174 = vrot.slane %v4056, 1
        %v4175 = vsel %vm4103, %v4174, %v4173
        %v4176 = vsel %vm4106, %v4058, %v4175
        %v4177 = vrot.slane %v4060, 7
        %v4178 = vsel %vm4109, %v4177, %v4176
        %v4179 = vrot.slane %v4062, 6
        %v4180 = vsel %vm4112, %v4179, %v4178
        %v4181 = vrot.slane %v4064, 5
        %v4182 = vsel %vm4115, %v4181, %v4180
        %v4183 = vrot.slane %v4066, 4
        %v4184 = vsel %vm4118, %v4183, %v4182
        %v4185 = vrot.slane %v4068, 3
        %v4186 = vsel %vm4121, %v4185, %v4184
        %v4187 = vrot.slane %v4070, 2
        %v4188 = vrot.slane %v4072, 1
        %v4189 = vsel %vm4103, %v4188, %v4187
        %v4190 = vsel %vm4106, %v4074, %v4189
        %v4191 = vrot.slane %v4076, 7
        %v4192 = vsel %vm4109, %v4191, %v4190
        %v4193 = vrot.slane %v4078, 6
        %v4194 = vsel %vm4112, %v4193, %v4192
        %v4195 = vrot.slane %v4080, 5
        %v4196 = vsel %vm4115, %v4195, %v4194
        %v4197 = vrot.slane %v4082, 4
        %v4198 = vsel %vm4118, %v4197, %v4196
        %v4199 = vrot.slane %v4084, 3
        %v4200 = vsel %vm4121, %v4199, %v4198
        %4201 = vrot.lane.b32.xlu0 %v4186, 8
        %v4202 = vpop.permute.xlu0 %4201
        %4203 = vrot.lane.b32.xlu0 %v4200, 8
        %v4204 = vpop.permute.xlu0 %4203
        %v4207 = vrot.slane %v4054, 3
        %v4208 = vrot.slane %v4056, 2
        %v4209 = vsel %vm4103, %v4208, %v4207
        %v4210 = vrot.slane %v4058, 1
        %v4211 = vsel %vm4106, %v4210, %v4209
        %v4212 = vsel %vm4109, %v4060, %v4211
        %v4213 = vrot.slane %v4062, 7
        %v4214 = vsel %vm4112, %v4213, %v4212
        %v4215 = vrot.slane %v4064, 6
        %v4216 = vsel %vm4115, %v4215, %v4214
        %v4217 = vrot.slane %v4066, 5
        %v4218 = vsel %vm4118, %v4217, %v4216
        %v4219 = vrot.slane %v4068, 4
        %v4220 = vsel %vm4121, %v4219, %v4218
        %v4221 = vrot.slane %v4070, 3
        %v4222 = vrot.slane %v4072, 2
        %v4223 = vsel %vm4103, %v4222, %v4221
        %v4224 = vrot.slane %v4074, 1
        %v4225 = vsel %vm4106, %v4224, %v4223
        %v4226 = vsel %vm4109, %v4076, %v4225
        %v4227 = vrot.slane %v4078, 7
        %v4228 = vsel %vm4112, %v4227, %v4226
        %v4229 = vrot.slane %v4080, 6
        %v4230 = vsel %vm4115, %v4229, %v4228
        %v4231 = vrot.slane %v4082, 5
        %v4232 = vsel %vm4118, %v4231, %v4230
        %v4233 = vrot.slane %v4084, 4
        %v4234 = vsel %vm4121, %v4233, %v4232
        %4235 = vrot.lane.b32.xlu0 %v4220, 12
        %v4236 = vpop.permute.xlu0 %4235
        %4237 = vrot.lane.b32.xlu0 %v4234, 12
        %v4238 = vpop.permute.xlu0 %4237
        %v4241 = vrot.slane %v4054, 4
        %v4242 = vrot.slane %v4056, 3
        %v4243 = vsel %vm4103, %v4242, %v4241
        %v4244 = vrot.slane %v4058, 2
        %v4245 = vsel %vm4106, %v4244, %v4243
        %v4246 = vrot.slane %v4060, 1
        %v4247 = vsel %vm4109, %v4246, %v4245
        %v4248 = vsel %vm4112, %v4062, %v4247
        %v4249 = vrot.slane %v4064, 7
        %v4250 = vsel %vm4115, %v4249, %v4248
        %v4251 = vrot.slane %v4066, 6
        %v4252 = vsel %vm4118, %v4251, %v4250
        %v4253 = vrot.slane %v4068, 5
        %v4254 = vsel %vm4121, %v4253, %v4252
        %v4255 = vrot.slane %v4070, 4
        %v4256 = vrot.slane %v4072, 3
        %v4257 = vsel %vm4103, %v4256, %v4255
        %v4258 = vrot.slane %v4074, 2
        %v4259 = vsel %vm4106, %v4258, %v4257
        %v4260 = vrot.slane %v4076, 1
        %v4261 = vsel %vm4109, %v4260, %v4259
        %v4262 = vsel %vm4112, %v4078, %v4261
        %v4263 = vrot.slane %v4080, 7
        %v4264 = vsel %vm4115, %v4263, %v4262
        %v4265 = vrot.slane %v4082, 6
        %v4266 = vsel %vm4118, %v4265, %v4264
        %v4267 = vrot.slane %v4084, 5
        %v4268 = vsel %vm4121, %v4267, %v4266
        %4269 = vrot.lane.b32.xlu0 %v4254, 16
        %v4270 = vpop.permute.xlu0 %4269
        %4271 = vrot.lane.b32.xlu0 %v4268, 16
        %v4272 = vpop.permute.xlu0 %4271
        %v4275 = vrot.slane %v4054, 5
        %v4276 = vrot.slane %v4056, 4
        %v4277 = vsel %vm4103, %v4276, %v4275
        %v4278 = vrot.slane %v4058, 3
        %v4279 = vsel %vm4106, %v4278, %v4277
        %v4280 = vrot.slane %v4060, 2
        %v4281 = vsel %vm4109, %v4280, %v4279
        %v4282 = vrot.slane %v4062, 1
        %v4283 = vsel %vm4112, %v4282, %v4281
        %v4284 = vsel %vm4115, %v4064, %v4283
        %v4285 = vrot.slane %v4066, 7
        %v4286 = vsel %vm4118, %v4285, %v4284
        %v4287 = vrot.slane %v4068, 6
        %v4288 = vsel %vm4121, %v4287, %v4286
        %v4289 = vrot.slane %v4070, 5
        %v4290 = vrot.slane %v4072, 4
        %v4291 = vsel %vm4103, %v4290, %v4289
        %v4292 = vrot.slane %v4074, 3
        %v4293 = vsel %vm4106, %v4292, %v4291
        %v4294 = vrot.slane %v4076, 2
        %v4295 = vsel %vm4109, %v4294, %v4293
        %v4296 = vrot.slane %v4078, 1
        %v4297 = vsel %vm4112, %v4296, %v4295
        %v4298 = vsel %vm4115, %v4080, %v4297
        %v4299 = vrot.slane %v4082, 7
        %v4300 = vsel %vm4118, %v4299, %v4298
        %v4301 = vrot.slane %v4084, 6
        %v4302 = vsel %vm4121, %v4301, %v4300
        %4303 = vrot.lane.b32.xlu0 %v4288, 20
        %v4304 = vpop.permute.xlu0 %4303
        %4305 = vrot.lane.b32.xlu0 %v4302, 20
        %v4306 = vpop.permute.xlu0 %4305
        %v4309 = vrot.slane %v4054, 6
        %v4310 = vrot.slane %v4056, 5
        %v4311 = vsel %vm4103, %v4310, %v4309
        %v4312 = vrot.slane %v4058, 4
        %v4313 = vsel %vm4106, %v4312, %v4311
        %v4314 = vrot.slane %v4060, 3
        %v4315 = vsel %vm4109, %v4314, %v4313
        %v4316 = vrot.slane %v4062, 2
        %v4317 = vsel %vm4112, %v4316, %v4315
        %v4318 = vrot.slane %v4064, 1
        %v4319 = vsel %vm4115, %v4318, %v4317
        %v4320 = vsel %vm4118, %v4066, %v4319
        %v4321 = vrot.slane %v4068, 7
        %v4322 = vsel %vm4121, %v4321, %v4320
        %v4323 = vrot.slane %v4070, 6
        %v4324 = vrot.slane %v4072, 5
        %v4325 = vsel %vm4103, %v4324, %v4323
        %v4326 = vrot.slane %v4074, 4
        %v4327 = vsel %vm4106, %v4326, %v4325
        %v4328 = vrot.slane %v4076, 3
        %v4329 = vsel %vm4109, %v4328, %v4327
        %v4330 = vrot.slane %v4078, 2
        %v4331 = vsel %vm4112, %v4330, %v4329
        %v4332 = vrot.slane %v4080, 1
        %v4333 = vsel %vm4115, %v4332, %v4331
        %v4334 = vsel %vm4118, %v4082, %v4333
        %v4335 = vrot.slane %v4084, 7
        %v4336 = vsel %vm4121, %v4335, %v4334
        %4337 = vrot.lane.b32.xlu0 %v4322, 24
        %v4338 = vpop.permute.xlu0 %4337
        %4339 = vrot.lane.b32.xlu0 %v4336, 24
        %v4340 = vpop.permute.xlu0 %4339
        %v4343 = vrot.slane %v4054, 7
        %v4344 = vrot.slane %v4056, 6
        %v4345 = vsel %vm4103, %v4344, %v4343
        %v4346 = vrot.slane %v4058, 5
        %v4347 = vsel %vm4106, %v4346, %v4345
        %v4348 = vrot.slane %v4060, 4
        %v4349 = vsel %vm4109, %v4348, %v4347
        %v4350 = vrot.slane %v4062, 3
        %v4351 = vsel %vm4112, %v4350, %v4349
        %v4352 = vrot.slane %v4064, 2
        %v4353 = vsel %vm4115, %v4352, %v4351
        %v4354 = vrot.slane %v4066, 1
        %v4355 = vsel %vm4118, %v4354, %v4353
        %v4356 = vsel %vm4121, %v4068, %v4355
        %v4357 = vrot.slane %v4070, 7
        %v4358 = vrot.slane %v4072, 6
        %v4359 = vsel %vm4103, %v4358, %v4357
        %v4360 = vrot.slane %v4074, 5
        %v4361 = vsel %vm4106, %v4360, %v4359
        %v4362 = vrot.slane %v4076, 4
        %v4363 = vsel %vm4109, %v4362, %v4361
        %v4364 = vrot.slane %v4078, 3
        %v4365 = vsel %vm4112, %v4364, %v4363
        %v4366 = vrot.slane %v4080, 2
        %v4367 = vsel %vm4115, %v4366, %v4365
        %v4368 = vrot.slane %v4082, 1
        %v4369 = vsel %vm4118, %v4368, %v4367
        %v4370 = vsel %vm4121, %v4084, %v4369
        %4371 = vrot.lane.b32.xlu0 %v4356, 28
        %v4372 = vpop.permute.xlu0 %4371
        %4373 = vrot.lane.b32.xlu0 %v4370, 28
        %v4374 = vpop.permute.xlu0 %4373
        %v4393 = vrot.slane %v4057, 7
        %v4394 = vsel %vm4103, %v4393, %v4055
        %v4395 = vrot.slane %v4059, 6
        %v4396 = vsel %vm4106, %v4395, %v4394
        %v4397 = vrot.slane %v4061, 5
        %v4398 = vsel %vm4109, %v4397, %v4396
        %v4399 = vrot.slane %v4063, 4
        %v4400 = vsel %vm4112, %v4399, %v4398
        %v4401 = vrot.slane %v4065, 3
        %v4402 = vsel %vm4115, %v4401, %v4400
        %v4403 = vrot.slane %v4067, 2
        %v4404 = vsel %vm4118, %v4403, %v4402
        %v4405 = vrot.slane %v4069, 1
        %v4406 = vsel %vm4121, %v4405, %v4404
        %v4407 = vrot.slane %v4073, 7
        %v4408 = vsel %vm4103, %v4407, %v4071
        %v4409 = vrot.slane %v4075, 6
        %v4410 = vsel %vm4106, %v4409, %v4408
        %v4411 = vrot.slane %v4077, 5
        %v4412 = vsel %vm4109, %v4411, %v4410
        %v4413 = vrot.slane %v4079, 4
        %v4414 = vsel %vm4112, %v4413, %v4412
        %v4415 = vrot.slane %v4081, 3
        %v4416 = vsel %vm4115, %v4415, %v4414
        %v4417 = vrot.slane %v4083, 2
        %v4418 = vsel %vm4118, %v4417, %v4416
        %v4419 = vrot.slane %v4085, 1
        %v4420 = vsel %vm4121, %v4419, %v4418
        %4421 = vrot.lane.b32.xlu0 %v4406, 32
        %v4422 = vpop.permute.xlu0 %4421
        %4423 = vrot.lane.b32.xlu0 %v4420, 32
        %v4424 = vpop.permute.xlu0 %4423
        %v4427 = vrot.slane %v4055, 1
        %v4428 = vsel %vm4103, %v4057, %v4427
        %v4429 = vrot.slane %v4059, 7
        %v4430 = vsel %vm4106, %v4429, %v4428
        %v4431 = vrot.slane %v4061, 6
        %v4432 = vsel %vm4109, %v4431, %v4430
        %v4433 = vrot.slane %v4063, 5
        %v4434 = vsel %vm4112, %v4433, %v4432
        %v4435 = vrot.slane %v4065, 4
        %v4436 = vsel %vm4115, %v4435, %v4434
        %v4437 = vrot.slane %v4067, 3
        %v4438 = vsel %vm4118, %v4437, %v4436
        %v4439 = vrot.slane %v4069, 2
        %v4440 = vsel %vm4121, %v4439, %v4438
        %v4441 = vrot.slane %v4071, 1
        %v4442 = vsel %vm4103, %v4073, %v4441
        %v4443 = vrot.slane %v4075, 7
        %v4444 = vsel %vm4106, %v4443, %v4442
        %v4445 = vrot.slane %v4077, 6
        %v4446 = vsel %vm4109, %v4445, %v4444
        %v4447 = vrot.slane %v4079, 5
        %v4448 = vsel %vm4112, %v4447, %v4446
        %v4449 = vrot.slane %v4081, 4
        %v4450 = vsel %vm4115, %v4449, %v4448
        %v4451 = vrot.slane %v4083, 3
        %v4452 = vsel %vm4118, %v4451, %v4450
        %v4453 = vrot.slane %v4085, 2
        %v4454 = vsel %vm4121, %v4453, %v4452
        %4455 = vrot.lane.b32.xlu0 %v4440, 36
        %v4456 = vpop.permute.xlu0 %4455
        %4457 = vrot.lane.b32.xlu0 %v4454, 36
        %v4458 = vpop.permute.xlu0 %4457
        %v4461 = vrot.slane %v4055, 2
        %v4462 = vrot.slane %v4057, 1
        %v4463 = vsel %vm4103, %v4462, %v4461
        %v4464 = vsel %vm4106, %v4059, %v4463
        %v4465 = vrot.slane %v4061, 7
        %v4466 = vsel %vm4109, %v4465, %v4464
        %v4467 = vrot.slane %v4063, 6
        %v4468 = vsel %vm4112, %v4467, %v4466
        %v4469 = vrot.slane %v4065, 5
        %v4470 = vsel %vm4115, %v4469, %v4468
        %v4471 = vrot.slane %v4067, 4
        %v4472 = vsel %vm4118, %v4471, %v4470
        %v4473 = vrot.slane %v4069, 3
        %v4474 = vsel %vm4121, %v4473, %v4472
        %v4475 = vrot.slane %v4071, 2
        %v4476 = vrot.slane %v4073, 1
        %v4477 = vsel %vm4103, %v4476, %v4475
        %v4478 = vsel %vm4106, %v4075, %v4477
        %v4479 = vrot.slane %v4077, 7
        %v4480 = vsel %vm4109, %v4479, %v4478
        %v4481 = vrot.slane %v4079, 6
        %v4482 = vsel %vm4112, %v4481, %v4480
        %v4483 = vrot.slane %v4081, 5
        %v4484 = vsel %vm4115, %v4483, %v4482
        %v4485 = vrot.slane %v4083, 4
        %v4486 = vsel %vm4118, %v4485, %v4484
        %v4487 = vrot.slane %v4085, 3
        %v4488 = vsel %vm4121, %v4487, %v4486
        %4489 = vrot.lane.b32.xlu0 %v4474, 40
        %v4490 = vpop.permute.xlu0 %4489
        %4491 = vrot.lane.b32.xlu0 %v4488, 40
        %v4492 = vpop.permute.xlu0 %4491
        %v4495 = vrot.slane %v4055, 3
        %v4496 = vrot.slane %v4057, 2
        %v4497 = vsel %vm4103, %v4496, %v4495
        %v4498 = vrot.slane %v4059, 1
        %v4499 = vsel %vm4106, %v4498, %v4497
        %v4500 = vsel %vm4109, %v4061, %v4499
        %v4501 = vrot.slane %v4063, 7
        %v4502 = vsel %vm4112, %v4501, %v4500
        %v4503 = vrot.slane %v4065, 6
        %v4504 = vsel %vm4115, %v4503, %v4502
        %v4505 = vrot.slane %v4067, 5
        %v4506 = vsel %vm4118, %v4505, %v4504
        %v4507 = vrot.slane %v4069, 4
        %v4508 = vsel %vm4121, %v4507, %v4506
        %v4509 = vrot.slane %v4071, 3
        %v4510 = vrot.slane %v4073, 2
        %v4511 = vsel %vm4103, %v4510, %v4509
        %v4512 = vrot.slane %v4075, 1
        %v4513 = vsel %vm4106, %v4512, %v4511
        %v4514 = vsel %vm4109, %v4077, %v4513
        %v4515 = vrot.slane %v4079, 7
        %v4516 = vsel %vm4112, %v4515, %v4514
        %v4517 = vrot.slane %v4081, 6
        %v4518 = vsel %vm4115, %v4517, %v4516
        %v4519 = vrot.slane %v4083, 5
        %v4520 = vsel %vm4118, %v4519, %v4518
        %v4521 = vrot.slane %v4085, 4
        %v4522 = vsel %vm4121, %v4521, %v4520
        %4523 = vrot.lane.b32.xlu0 %v4508, 44
        %v4524 = vpop.permute.xlu0 %4523
        %4525 = vrot.lane.b32.xlu0 %v4522, 44
        %v4526 = vpop.permute.xlu0 %4525
        %v4529 = vrot.slane %v4055, 4
        %v4530 = vrot.slane %v4057, 3
        %v4531 = vsel %vm4103, %v4530, %v4529
        %v4532 = vrot.slane %v4059, 2
        %v4533 = vsel %vm4106, %v4532, %v4531
        %v4534 = vrot.slane %v4061, 1
        %v4535 = vsel %vm4109, %v4534, %v4533
        %v4536 = vsel %vm4112, %v4063, %v4535
        %v4537 = vrot.slane %v4065, 7
        %v4538 = vsel %vm4115, %v4537, %v4536
        %v4539 = vrot.slane %v4067, 6
        %v4540 = vsel %vm4118, %v4539, %v4538
        %v4541 = vrot.slane %v4069, 5
        %v4542 = vsel %vm4121, %v4541, %v4540
        %v4543 = vrot.slane %v4071, 4
        %v4544 = vrot.slane %v4073, 3
        %v4545 = vsel %vm4103, %v4544, %v4543
        %v4546 = vrot.slane %v4075, 2
        %v4547 = vsel %vm4106, %v4546, %v4545
        %v4548 = vrot.slane %v4077, 1
        %v4549 = vsel %vm4109, %v4548, %v4547
        %v4550 = vsel %vm4112, %v4079, %v4549
        %v4551 = vrot.slane %v4081, 7
        %v4552 = vsel %vm4115, %v4551, %v4550
        %v4553 = vrot.slane %v4083, 6
        %v4554 = vsel %vm4118, %v4553, %v4552
        %v4555 = vrot.slane %v4085, 5
        %v4556 = vsel %vm4121, %v4555, %v4554
        %4557 = vrot.lane.b32.xlu0 %v4542, 48
        %v4558 = vpop.permute.xlu0 %4557
        %4559 = vrot.lane.b32.xlu0 %v4556, 48
        %v4560 = vpop.permute.xlu0 %4559
        %v4563 = vrot.slane %v4055, 5
        %v4564 = vrot.slane %v4057, 4
        %v4565 = vsel %vm4103, %v4564, %v4563
        %v4566 = vrot.slane %v4059, 3
        %v4567 = vsel %vm4106, %v4566, %v4565
        %v4568 = vrot.slane %v4061, 2
        %v4569 = vsel %vm4109, %v4568, %v4567
        %v4570 = vrot.slane %v4063, 1
        %v4571 = vsel %vm4112, %v4570, %v4569
        %v4572 = vsel %vm4115, %v4065, %v4571
        %v4573 = vrot.slane %v4067, 7
        %v4574 = vsel %vm4118, %v4573, %v4572
        %v4575 = vrot.slane %v4069, 6
        %v4576 = vsel %vm4121, %v4575, %v4574
        %v4577 = vrot.slane %v4071, 5
        %v4578 = vrot.slane %v4073, 4
        %v4579 = vsel %vm4103, %v4578, %v4577
        %v4580 = vrot.slane %v4075, 3
        %v4581 = vsel %vm4106, %v4580, %v4579
        %v4582 = vrot.slane %v4077, 2
        %v4583 = vsel %vm4109, %v4582, %v4581
        %v4584 = vrot.slane %v4079, 1
        %v4585 = vsel %vm4112, %v4584, %v4583
        %v4586 = vsel %vm4115, %v4081, %v4585
        %v4587 = vrot.slane %v4083, 7
        %v4588 = vsel %vm4118, %v4587, %v4586
        %v4589 = vrot.slane %v4085, 6
        %v4590 = vsel %vm4121, %v4589, %v4588
        %4591 = vrot.lane.b32.xlu0 %v4576, 52
        %v4592 = vpop.permute.xlu0 %4591
        %4593 = vrot.lane.b32.xlu0 %v4590, 52
        %v4594 = vpop.permute.xlu0 %4593
        %v4597 = vrot.slane %v4055, 6
        %v4598 = vrot.slane %v4057, 5
        %v4599 = vsel %vm4103, %v4598, %v4597
        %v4600 = vrot.slane %v4059, 4
        %v4601 = vsel %vm4106, %v4600, %v4599
        %v4602 = vrot.slane %v4061, 3
        %v4603 = vsel %vm4109, %v4602, %v4601
        %v4604 = vrot.slane %v4063, 2
        %v4605 = vsel %vm4112, %v4604, %v4603
        %v4606 = vrot.slane %v4065, 1
        %v4607 = vsel %vm4115, %v4606, %v4605
        %v4608 = vsel %vm4118, %v4067, %v4607
        %v4609 = vrot.slane %v4069, 7
        %v4610 = vsel %vm4121, %v4609, %v4608
        %v4611 = vrot.slane %v4071, 6
        %v4612 = vrot.slane %v4073, 5
        %v4613 = vsel %vm4103, %v4612, %v4611
        %v4614 = vrot.slane %v4075, 4
        %v4615 = vsel %vm4106, %v4614, %v4613
        %v4616 = vrot.slane %v4077, 3
        %v4617 = vsel %vm4109, %v4616, %v4615
        %v4618 = vrot.slane %v4079, 2
        %v4619 = vsel %vm4112, %v4618, %v4617
        %v4620 = vrot.slane %v4081, 1
        %v4621 = vsel %vm4115, %v4620, %v4619
        %v4622 = vsel %vm4118, %v4083, %v4621
        %v4623 = vrot.slane %v4085, 7
        %v4624 = vsel %vm4121, %v4623, %v4622
        %4625 = vrot.lane.b32.xlu0 %v4610, 56
        %v4626 = vpop.permute.xlu0 %4625
        %4627 = vrot.lane.b32.xlu0 %v4624, 56
        %v4628 = vpop.permute.xlu0 %4627
        %v4631 = vrot.slane %v4055, 7
        %v4632 = vrot.slane %v4057, 6
        %v4633 = vsel %vm4103, %v4632, %v4631
        %v4634 = vrot.slane %v4059, 5
        %v4635 = vsel %vm4106, %v4634, %v4633
        %v4636 = vrot.slane %v4061, 4
        %v4637 = vsel %vm4109, %v4636, %v4635
        %v4638 = vrot.slane %v4063, 3
        %v4639 = vsel %vm4112, %v4638, %v4637
        %v4640 = vrot.slane %v4065, 2
        %v4641 = vsel %vm4115, %v4640, %v4639
        %v4642 = vrot.slane %v4067, 1
        %v4643 = vsel %vm4118, %v4642, %v4641
        %v4644 = vsel %vm4121, %v4069, %v4643
        %v4645 = vrot.slane %v4071, 7
        %v4646 = vrot.slane %v4073, 6
        %v4647 = vsel %vm4103, %v4646, %v4645
        %v4648 = vrot.slane %v4075, 5
        %v4649 = vsel %vm4106, %v4648, %v4647
        %v4650 = vrot.slane %v4077, 4
        %v4651 = vsel %vm4109, %v4650, %v4649
        %v4652 = vrot.slane %v4079, 3
        %v4653 = vsel %vm4112, %v4652, %v4651
        %v4654 = vrot.slane %v4081, 2
        %v4655 = vsel %vm4115, %v4654, %v4653
        %v4656 = vrot.slane %v4083, 1
        %v4657 = vsel %vm4118, %v4656, %v4655
        %v4658 = vsel %vm4121, %v4085, %v4657
        %4659 = vrot.lane.b32.xlu0 %v4644, 60
        %v4660 = vpop.permute.xlu0 %4659
        %4661 = vrot.lane.b32.xlu0 %v4658, 60
        %v4662 = vpop.permute.xlu0 %4661
        %v4665 = vsel %vm899, %v4122, %v4168
        %v4666 = vsel %vm899, %v4136, %v4170
        %v4667 = vsel %vm940, %v4665, %v4202
        %v4668 = vsel %vm940, %v4666, %v4204
        %v4669 = vsel %vm991, %v4667, %v4236
        %v4670 = vsel %vm991, %v4668, %v4238
        %vm4671 = vcmask 130048
        %v4672 = vsel %vm4671, %v4669, %v4270
        %v4673 = vsel %vm4671, %v4670, %v4272
        %vm4674 = vcmask 162816
        %v4675 = vsel %vm4674, %v4672, %v4304
        %v4676 = vsel %vm4674, %v4673, %v4306
        %vm4677 = vcmask 195584
        %v4678 = vsel %vm4677, %v4675, %v4338
        %v4679 = vsel %vm4677, %v4676, %v4340
        %vm4680 = vcmask 228352
        %v4681 = vsel %vm4680, %v4678, %v4372
        %v4682 = vsel %vm4680, %v4679, %v4374
        %vm4683 = vcmask 261120
        %v4684 = vsel %vm4683, %v4681, %v4422
        %v4685 = vsel %vm4683, %v4682, %v4424
        %vm4686 = vcmask 293888
        %v4687 = vsel %vm4686, %v4684, %v4456
        %v4688 = vsel %vm4686, %v4685, %v4458
        %vm4689 = vcmask 326656
        %v4690 = vsel %vm4689, %v4687, %v4490
        %v4691 = vsel %vm4689, %v4688, %v4492
        %vm4692 = vcmask 359424
        %v4693 = vsel %vm4692, %v4690, %v4524
        %v4694 = vsel %vm4692, %v4691, %v4526
        %vm4695 = vcmask 392192
        %v4696 = vsel %vm4695, %v4693, %v4558
        %v4697 = vsel %vm4695, %v4694, %v4560
        %vm4698 = vcmask 424960
        %v4699 = vsel %vm4698, %v4696, %v4592
        %v4700 = vsel %vm4698, %v4697, %v4594
        %vm4701 = vcmask 457728
        %v4702 = vsel %vm4701, %v4699, %v4626
        %v4703 = vsel %vm4701, %v4700, %v4628
        %vm4704 = vcmask 490496
        %v4705 = vsel %vm4704, %v4702, %v4660
        %v4706 = vsel %vm4704, %v4703, %v4662
        %vm4707 = vcmask 523264
        %4708 = vst.msk [vmem:[%s285] sm:$0xff] %vm4707, %v4705
        %4709 = vst.msk [vmem:[%s285 + $0x8] sm:$0xff] %vm4707, %v4706
        %s4710 = sand.u32 %s195, 1
        %s4711 = scalar_lea.sflag [#allocation4], %s4710
        %s4712 = sand.u32 %s195, 1
        %s4713 = smul.addr %s4712, 16
        %s4714 = scalar_lea.vmem [#allocation3], %s4713
        // Predicated region
        $region53: #{tpu_custom_call.1} parent=47 // pred_check
          %p4715 = pneg %p205
        $region54: #{tpu_custom_call.1} parent=47 // pred_check_branch
          %4717 = sbr.rel (%p4715) target = $region56
        $region55: #{tpu_custom_call.1} parent=47 // pred_region
          %s4718 = smul.u32 2, %s26
          %s4720 = ssub.s32 256, 256
          %4721 = vsyncadd %s4711, %s4720
          %s4722 = smul.addr %s25, 2
          %s4723 = sadd.s32 %s4718, %s4722
          %s4724 = smul.addr %s4723, 128
          %s4725 = scalar_lea.hbm %s7, %s4724
          %s4726 = sshll.u32 %s4714, 4
          %s4727 = int_to_ptr.vmem [resolvable:$true] %s4726
          %4732 = dma.vmem_to_hbm [thread:$0]  %s4727, 256, %s4725, %s4711, 128, 128, 8
        $region56: #{tpu_custom_call.1} parent=47 // pred_fallthru
          _
      $region48: #{tpu_custom_call.1} parent=5 // pred_fallthru
        _
      %p4733 = scmp.le.s32.totalorder 2, %s16
      // Predicated region
      $region57: #{tpu_custom_call.1} parent=5 // pred_check
        %p4734 = pneg %p4733
      $region58: #{tpu_custom_call.1} parent=5 // pred_check_branch
        %4736 = sbr.rel (%p4734) target = $region60
      $region59: #{tpu_custom_call.1} parent=5 // pred_region
        %s4737 = ssub.s32 %s16, 2
        // Predicated region
        $region61: #{tpu_custom_call.1} parent=59 // pred_check
          %p4738 = pneg %p211
        $region62: #{tpu_custom_call.1} parent=59 // pred_check_branch
          %4740 = sbr.rel (%p4738) target = $region64
        $region63: #{tpu_custom_call.1} parent=59 // pred_region
          %s4741 = sand.u32 %s196, 1
          %s4742 = scalar_lea.sflag [#allocation4], %s4741
          %s4743 = sand.u32 %s196, 1
          %s4744 = smul.addr %s4743, 16
          %s4745 = scalar_lea.vmem [#allocation3], %s4744
          %4746 = dma.done %s4742, 256
        $region64: #{tpu_custom_call.1} parent=59 // pred_fallthru
          _
      $region60: #{tpu_custom_call.1} parent=5 // pred_fallthru
        _
    $region6: #{tpu_custom_call.1} parent=1 // loop_footer
      %s20 = sadd.s32 1, %s16
    $region7: #{tpu_custom_call.1} parent=1 // loop_footer_branch
      %15 = sbr.rel target = $region3
    $region8: #{tpu_custom_call.1} parent=1 // loop_exit
      _
    %4747 = vsyncpa [#allocation4], 1
    %s4748 = scalar_lea.sflag [#allocation4], 1
    %4749 = vsyncpa %s4748, 1

</llo_original>
